<compile_context>
chip_gen: v6e
topology: v6e:2x2x1
jax: 0.10.0
libtpu: 0.0.40
codegen_flags: <defaults>
</compile_context>

<pallas_src>
import jax
import jax.numpy as jnp
import numpy as np
from jax import lax
from jax.experimental import pallas as pl
from jax.experimental.pallas import tpu as pltpu

# ---- neuron parameters (norse defaults; tau_mem_inv overridden to 1/0.01) ----
DT = 0.001
TAU_SYN_INV = 200.0      # 1 / 5e-3
TAU_MEM_INV = 100.0      # 1 / 0.01
V_LEAK = 0.0
V_TH = 1.0
V_RESET = 0.0
# NOTE: alpha=80 only parameterizes the SuperSpike surrogate *gradient*; the forward pass
# uses the Heaviside threshold, which is what we implement here.


def _make_recnet_kernel(F, t_chunk, compute_dtype):
    """Builds the chunked recurrent kernel (closure over static sizes)."""
    unroll = t_chunk <= 32  # fully unroll short fixed inner loops for LLO visibility

    def kernel(x_ref, wsk_ref, wout_ref,      # inputs: (tc,B,F), (F+H,H), (H,O)
               vout_ref,                      # output: (tc,B,O)
               z_s, v_s, i_s, liv_s, lii_s,   # f32 state scratch (persists across chunks)
               cat_s):                        # (B, F+H) staging buffer for fused matmul
        # Initial state at the first time-chunk of this batch tile
        # (norse: z = 0, v = v_leak, i = 0; LI: v = v_leak, i = 0)
        @pl.when(pl.program_id(1) == 0)
        def _():
            z_s[...] = jnp.zeros_like(z_s)
            v_s[...] = jnp.full_like(v_s, V_LEAK)
            i_s[...] = jnp.zeros_like(i_s)
            liv_s[...] = jnp.full_like(liv_s, V_LEAK)
            lii_s[...] = jnp.zeros_like(lii_s)

        def step(t, carry):
            # Stage [x_t | z_prev] so input + recurrent projections fuse into one matmul.
            cat_s[:, 0:F] = x_ref[t]
            cat_s[:, F:] = z_s[...].astype(compute_dtype)

            # ---------------- LIFRecurrentCell step (norse lif_step) ----------------
            v_prev = v_s[...]
            i_prev = i_s[...]

            v_dec = v_prev + DT * TAU_MEM_INV * ((V_LEAK - v_prev) + i_prev)
            i_dec = i_prev + (-DT * TAU_SYN_INV) * i_prev

            z_new = (v_dec - V_TH > 0.0).astype(jnp.float32)          # heaviside
            v_new = (1.0 - z_new) * v_dec + z_new * V_RESET

            # fused:  x_t @ w_in.T + z_prev @ w_rec.T  ==  [x_t|z_prev] @ w_stack
            i_new = i_dec + jnp.dot(cat_s[...], wsk_ref[...],
                                    preferred_element_type=jnp.float32)

            z_s[...] = z_new
            v_s[...] = v_new
            i_s[...] = i_new

            # ---------------- fc_out (Linear, no bias), pre-transposed weight --------
            y = jnp.dot(z_new.astype(compute_dtype), wout_ref[...],
                        preferred_element_type=jnp.float32)

            # ---------------- LICell step (norse li_feed_forward_step) ---------------
            li_i = lii_s[...] + y
            liv_new = liv_s[...] + DT * TAU_MEM_INV * ((V_LEAK - liv_s[...]) + li_i)
            lii_new = li_i + (-DT * TAU_SYN_INV) * li_i
            liv_s[...] = liv_new
            lii_s[...] = lii_new

            # VMEM store only; HBM writeback of the whole chunk happens once per grid step.
            vout_ref[t] = liv_new.astype(vout_ref.dtype)
            return carry

        lax.fori_loop(0, t_chunk, step, 0, unroll=unroll)

    return kernel


def recnet_forward(x, w_in, w_rec, w_out, *, t_chunk=128, compute_dtype=jnp.float32):
    """x: (T, B, C, H, W) float32.  Returns voltages (T, B, O) float32.

    compute_dtype controls the matmul operand dtype only (set jnp.bfloat16 on v6e/v7x
    for full-rate MXU + halved x HBM bytes); all state math stays f32.
    """
    T, B = x.shape[0], x.shape[1]
    F = int(np.prod(x.shape[2:]))
    H = w_in.shape[0]
    O = w_out.shape[0]

    x_flat = x.reshape(T, B, F).astype(compute_dtype)

    # One-time XLA-side weight prep (no per-step in-kernel transposes):
    #   [x_t | z_prev] @ w_stack == x_t @ w_in.T + z_prev @ w_rec.T
    w_stack = jnp.concatenate([w_in.T, w_rec.T], axis=0).astype(compute_dtype)  # (F+H, H)
    w_out_t = w_out.T.astype(compute_dtype)                                     # (H, O)

    # Time chunking: recurrent state carried in VMEM scratch across chunks.
    tc = min(T, t_chunk)
    n_chunks = -(-T // tc)
    t_pad = n_chunks * tc
    if t_pad != T:
        x_flat = jnp.pad(x_flat, ((0, t_pad - T), (0, 0), (0, 0)))

    # Batch tiling: full batch per tile at these shapes; the leading "parallel" axis lets
    # v7x's second TensorCore take batch tiles when B is large (state re-inits at chunk 0).
    tb = B
    n_btiles = B // tb

    kernel = _make_recnet_kernel(F, tc, compute_dtype)

    out = pl.pallas_call(
        kernel,
        out_shape=jax.ShapeDtypeStruct((t_pad, B, O), jnp.float32),
        grid_spec=pltpu.PrefetchScalarGridSpec(
            num_scalar_prefetch=0,
            grid=(n_btiles, n_chunks),
            in_specs=[
                pl.BlockSpec((tc, tb, F), lambda b, c: (c, b, 0)),   # x time-chunk
                pl.BlockSpec((F + H, H), lambda b, c: (0, 0)),       # stacked in+rec weights
                pl.BlockSpec((H, O), lambda b, c: (0, 0)),           # fc_out weights (pre-T)
            ],
            out_specs=pl.BlockSpec((tc, tb, O), lambda b, c: (c, b, 0)),
            scratch_shapes=[
                pltpu.VMEM((tb, H), jnp.float32),          # z
                pltpu.VMEM((tb, H), jnp.float32),          # v
                pltpu.VMEM((tb, H), jnp.float32),          # i
                pltpu.VMEM((tb, O), jnp.float32),          # LI v
                pltpu.VMEM((tb, O), jnp.float32),          # LI i
                pltpu.VMEM((tb, F + H), compute_dtype),    # [x_t | z_prev] staging
            ],
        ),
        compiler_params=pltpu.CompilerParams(
            dimension_semantics=("parallel", "arbitrary"),   # batch parallel, time sequential
        ),
    )(x_flat, w_stack, w_out_t)

    return out[:T]


def recnet_reference(x, w_in, w_rec, w_out):
    """Pure-JAX reference of the same forward pass (mirrors the PyTorch module)."""
    T, B = x.shape[0], x.shape[1]
    F = int(np.prod(x.shape[2:]))
    H = w_in.shape[0]
    O = w_out.shape[0]
    x_flat = x.reshape(T, B, F).astype(jnp.float32)

    z = jnp.zeros((B, H), jnp.float32)
    v = jnp.full((B, H), V_LEAK, jnp.float32)
    i = jnp.zeros((B, H), jnp.float32)
    liv = jnp.full((B, O), V_LEAK, jnp.float32)
    lii = jnp.zeros((B, O), jnp.float32)
    outs = []
    for t in range(T):
        dv = DT * TAU_MEM_INV * ((V_LEAK - v) + i)
        v_dec = v + dv
        i_dec = i + (-DT * TAU_SYN_INV * i)
        z_new = (v_dec - V_TH > 0.0).astype(jnp.float32)
        v = (1.0 - z_new) * v_dec + z_new * V_RESET
        i = i_dec + x_flat[t] @ w_in.T + z @ w_rec.T
        z = z_new
        y = z_new @ w_out.T
        li_i_jump = lii + y
        liv = liv + DT * TAU_MEM_INV * ((V_LEAK - liv) + li_i_jump)
        lii = li_i_jump + (-DT * TAU_SYN_INV * li_i_jump)
        outs.append(liv)
    return jnp.stack(outs)


if __name__ == "__main__":
    # Small shapes consistent with the module: input_features = C*H*W
    T, B, C, Himg, Wimg = 8, 2, 1, 16, 16
    input_features = C * Himg * Wimg      # 256
    hidden_features = 32
    output_features = 10

    key = jax.random.PRNGKey(0)
    kx, k1, k2, k3 = jax.random.split(key, 4)

    x = jax.random.normal(kx, (T, B, C, Himg, Wimg), dtype=jnp.float32) * 2.0

    # LIFRecurrentCell weights: randn * sqrt(2 / hidden_size)
    scale = np.sqrt(2.0 / hidden_features).astype(np.float32)
    w_in = jax.random.normal(k1, (hidden_features, input_features), jnp.float32) * scale
    w_rec = jax.random.normal(k2, (hidden_features, hidden_features), jnp.float32) * scale
    # fc_out (Linear, bias=False): deterministic synthetic init
    w_out = jax.random.normal(k3, (output_features, hidden_features), jnp.float32) * scale

    out = recnet_forward(x, w_in, w_rec, w_out)
    out = jax.block_until_ready(out)

    ref = jax.block_until_ready(recnet_reference(x, w_in, w_rec, w_out))
    assert out.shape == (T, B, output_features)
    np.testing.assert_allclose(np.asarray(out), np.asarray(ref), rtol=1e-4, atol=1e-4)

    print("KERNEL_OK")
</pallas_src>

<mosaic_0001>
module attributes {stable_mosaic.version = 11 : i64} {
  func.func @kernel(%arg0: i32, %arg1: i32, %arg2: memref<8x2x256xf32, #tpu.memory_space<vmem>>, %arg3: memref<288x32xf32, #tpu.memory_space<vmem>>, %arg4: memref<32x10xf32, #tpu.memory_space<vmem>>, %arg5: memref<8x2x10xf32, #tpu.memory_space<vmem>>, %arg6: memref<2x32xf32, #tpu.memory_space<vmem>>, %arg7: memref<2x32xf32, #tpu.memory_space<vmem>>, %arg8: memref<2x32xf32, #tpu.memory_space<vmem>>, %arg9: memref<2x10xf32, #tpu.memory_space<vmem>>, %arg10: memref<2x10xf32, #tpu.memory_space<vmem>>, %arg11: memref<2x288xf32, #tpu.memory_space<vmem>>) attributes {dimension_semantics = [#tpu.dimension_semantics<parallel>, #tpu.dimension_semantics<arbitrary>], iteration_bounds = array<i64: 1, 1>, scalar_prefetch = 0 : i64, scratch_operands = 6 : i64, tpu.core_type = #tpu.core_type<tc>, window_params = [{transform_indices = @transform_0, window_bounds = array<i64: 8, 2, 256>}, {pipeline_mode = #tpu.pipeline_mode<synchronous>, transform_indices = @transform_1, window_bounds = array<i64: 288, 32>}, {pipeline_mode = #tpu.pipeline_mode<synchronous>, transform_indices = @transform_2, window_bounds = array<i64: 32, 10>}, {transform_indices = @transform_3, window_bounds = array<i64: 8, 2, 10>}]} {
    %c0_i32 = arith.constant 0 : i32
    %0 = arith.cmpi eq, %arg1, %c0_i32 : i32
    %1 = arith.extui %0 : i1 to i32
    %c0_i32_0 = arith.constant 0 : i32
    %2 = arith.cmpi ne, %1, %c0_i32_0 : i32
    scf.if %2 {
      %cst_383 = arith.constant 0.000000e+00 : f32
      %459 = vector.broadcast %cst_383 : f32 to vector<2x32xf32>
      %c0_384 = arith.constant 0 : index
      %c0_385 = arith.constant 0 : index
      %460 = vector.load %arg6[%c0_384, %c0_385] : memref<2x32xf32, #tpu.memory_space<vmem>>, vector<2x32xf32>
      tpu.vector_store %arg6[%c0_384, %c0_385], %459 {strides = array<i32>} : memref<2x32xf32, #tpu.memory_space<vmem>>, vector<2x32xf32>,
      %cst_386 = arith.constant 0.000000e+00 : f32
      %461 = vector.broadcast %cst_386 : f32 to vector<2x32xf32>
      %c0_387 = arith.constant 0 : index
      %c0_388 = arith.constant 0 : index
      %462 = vector.load %arg7[%c0_387, %c0_388] : memref<2x32xf32, #tpu.memory_space<vmem>>, vector<2x32xf32>
      tpu.vector_store %arg7[%c0_387, %c0_388], %461 {strides = array<i32>} : memref<2x32xf32, #tpu.memory_space<vmem>>, vector<2x32xf32>,
      %cst_389 = arith.constant 0.000000e+00 : f32
      %463 = vector.broadcast %cst_389 : f32 to vector<2x32xf32>
      %c0_390 = arith.constant 0 : index
      %c0_391 = arith.constant 0 : index
      %464 = vector.load %arg8[%c0_390, %c0_391] : memref<2x32xf32, #tpu.memory_space<vmem>>, vector<2x32xf32>
      tpu.vector_store %arg8[%c0_390, %c0_391], %463 {strides = array<i32>} : memref<2x32xf32, #tpu.memory_space<vmem>>, vector<2x32xf32>,
      %cst_392 = arith.constant 0.000000e+00 : f32
      %465 = vector.broadcast %cst_392 : f32 to vector<2x10xf32>
      %c0_393 = arith.constant 0 : index
      %c0_394 = arith.constant 0 : index
      %466 = vector.load %arg9[%c0_393, %c0_394] : memref<2x10xf32, #tpu.memory_space<vmem>>, vector<2x10xf32>
      tpu.vector_store %arg9[%c0_393, %c0_394], %465 {strides = array<i32>} : memref<2x10xf32, #tpu.memory_space<vmem>>, vector<2x10xf32>,
      %cst_395 = arith.constant 0.000000e+00 : f32
      %467 = vector.broadcast %cst_395 : f32 to vector<2x10xf32>
      %c0_396 = arith.constant 0 : index
      %c0_397 = arith.constant 0 : index
      %468 = vector.load %arg10[%c0_396, %c0_397] : memref<2x10xf32, #tpu.memory_space<vmem>>, vector<2x10xf32>
      tpu.vector_store %arg10[%c0_396, %c0_397], %467 {strides = array<i32>} : memref<2x10xf32, #tpu.memory_space<vmem>>, vector<2x10xf32>,
    } else {
    }
    %c0_i32_1 = arith.constant 0 : i32
    %3 = arith.index_cast %c0_i32_1 : i32 to index
    %c0 = arith.constant 0 : index
    %c0_2 = arith.constant 0 : index
    %4 = vector.load %arg2[%3, %c0, %c0_2] : memref<8x2x256xf32, #tpu.memory_space<vmem>>, vector<1x2x256xf32>
    %5 = vector.shape_cast %4 : vector<1x2x256xf32> to vector<2x256xf32>
    %c0_3 = arith.constant 0 : index
    %c0_4 = arith.constant 0 : index
    %6 = vector.load %arg11[%c0_3, %c0_4] : memref<2x288xf32, #tpu.memory_space<vmem>>, vector<2x256xf32>
    tpu.vector_store %arg11[%c0_3, %c0_4], %5 {strides = array<i32>} : memref<2x288xf32, #tpu.memory_space<vmem>>, vector<2x256xf32>,
    %c0_5 = arith.constant 0 : index
    %c0_6 = arith.constant 0 : index
    %7 = vector.load %arg6[%c0_5, %c0_6] : memref<2x32xf32, #tpu.memory_space<vmem>>, vector<2x32xf32>
    %c0_7 = arith.constant 0 : index
    %c256 = arith.constant 256 : index
    %8 = vector.load %arg11[%c0_7, %c256] : memref<2x288xf32, #tpu.memory_space<vmem>>, vector<2x32xf32>
    tpu.vector_store %arg11[%c0_7, %c256], %7 {strides = array<i32>} : memref<2x288xf32, #tpu.memory_space<vmem>>, vector<2x32xf32>,
    %c0_8 = arith.constant 0 : index
    %c0_9 = arith.constant 0 : index
    %9 = vector.load %arg7[%c0_8, %c0_9] : memref<2x32xf32, #tpu.memory_space<vmem>>, vector<2x32xf32>
    %c0_10 = arith.constant 0 : index
    %c0_11 = arith.constant 0 : index
    %10 = vector.load %arg8[%c0_10, %c0_11] : memref<2x32xf32, #tpu.memory_space<vmem>>, vector<2x32xf32>
    %cst = arith.constant 0.000000e+00 : f32
    %11 = vector.broadcast %cst : f32 to vector<2x32xf32>
    %12 = arith.subf %11, %9 : vector<2x32xf32>
    %13 = arith.addf %12, %10 : vector<2x32xf32>
    %cst_12 = arith.constant 1.000000e-01 : f32
    %14 = vector.broadcast %cst_12 : f32 to vector<2x32xf32>
    %15 = arith.mulf %14, %13 : vector<2x32xf32>
    %16 = arith.addf %9, %15 : vector<2x32xf32>
    %cst_13 = arith.constant -2.000000e-01 : f32
    %17 = vector.broadcast %cst_13 : f32 to vector<2x32xf32>
    %18 = arith.mulf %17, %10 : vector<2x32xf32>
    %19 = arith.addf %10, %18 : vector<2x32xf32>
    %cst_14 = arith.constant 1.000000e+00 : f32
    %20 = vector.broadcast %cst_14 : f32 to vector<2x32xf32>
    %21 = arith.subf %16, %20 : vector<2x32xf32>
    %cst_15 = arith.constant 0.000000e+00 : f32
    %22 = vector.broadcast %cst_15 : f32 to vector<2x32xf32>
    %23 = arith.cmpf ogt, %21, %22 : vector<2x32xf32>
    %24 = arith.extui %23 : vector<2x32xi1> to vector<2x32xi32>
    %25 = arith.sitofp %24 : vector<2x32xi32> to vector<2x32xf32>
    %cst_16 = arith.constant 1.000000e+00 : f32
    %26 = vector.broadcast %cst_16 : f32 to vector<2x32xf32>
    %27 = arith.subf %26, %25 : vector<2x32xf32>
    %28 = arith.mulf %27, %16 : vector<2x32xf32>
    %cst_17 = arith.constant 0.000000e+00 : f32
    %29 = vector.broadcast %cst_17 : f32 to vector<2x32xf32>
    %30 = arith.mulf %25, %29 : vector<2x32xf32>
    %31 = arith.addf %28, %30 : vector<2x32xf32>
    %c0_18 = arith.constant 0 : index
    %c0_19 = arith.constant 0 : index
    %32 = vector.load %arg11[%c0_18, %c0_19] : memref<2x288xf32, #tpu.memory_space<vmem>>, vector<2x288xf32>
    %c0_20 = arith.constant 0 : index
    %c0_21 = arith.constant 0 : index
    %33 = vector.load %arg3[%c0_20, %c0_21] : memref<288x32xf32, #tpu.memory_space<vmem>>, vector<288x32xf32>
    %cst_22 = arith.constant dense<0.000000e+00> : vector<2x32xf32>
    %34 = tpu.matmul %32, %33, %cst_22 {dimension_numbers = #tpu.dot_dimension_numbers<[1], [0], [0], [1], [0, 0, 1, 1], [], []>} : vector<2x288xf32>, vector<288x32xf32>, vector<2x32xf32> -> vector<2x32xf32>
    %35 = arith.addf %19, %34 : vector<2x32xf32>
    %c0_23 = arith.constant 0 : index
    %c0_24 = arith.constant 0 : index
    %36 = vector.load %arg6[%c0_23, %c0_24] : memref<2x32xf32, #tpu.memory_space<vmem>>, vector<2x32xf32>
    tpu.vector_store %arg6[%c0_23, %c0_24], %25 {strides = array<i32>} : memref<2x32xf32, #tpu.memory_space<vmem>>, vector<2x32xf32>,
    %c0_25 = arith.constant 0 : index
    %c0_26 = arith.constant 0 : index
    %37 = vector.load %arg7[%c0_25, %c0_26] : memref<2x32xf32, #tpu.memory_space<vmem>>, vector<2x32xf32>
    tpu.vector_store %arg7[%c0_25, %c0_26], %31 {strides = array<i32>} : memref<2x32xf32, #tpu.memory_space<vmem>>, vector<2x32xf32>,
    %c0_27 = arith.constant 0 : index
    %c0_28 = arith.constant 0 : index
    %38 = vector.load %arg8[%c0_27, %c0_28] : memref<2x32xf32, #tpu.memory_space<vmem>>, vector<2x32xf32>
    tpu.vector_store %arg8[%c0_27, %c0_28], %35 {strides = array<i32>} : memref<2x32xf32, #tpu.memory_space<vmem>>, vector<2x32xf32>,
    %c0_29 = arith.constant 0 : index
    %c0_30 = arith.constant 0 : index
    %39 = vector.load %arg4[%c0_29, %c0_30] : memref<32x10xf32, #tpu.memory_space<vmem>>, vector<32x10xf32>
    %cst_31 = arith.constant dense<0.000000e+00> : vector<2x10xf32>
    %40 = tpu.matmul %25, %39, %cst_31 {dimension_numbers = #tpu.dot_dimension_numbers<[1], [0], [0], [1], [0, 0, 1, 1], [], []>} : vector<2x32xf32>, vector<32x10xf32>, vector<2x10xf32> -> vector<2x10xf32>
    %c0_32 = arith.constant 0 : index
    %c0_33 = arith.constant 0 : index
    %41 = vector.load %arg10[%c0_32, %c0_33] : memref<2x10xf32, #tpu.memory_space<vmem>>, vector<2x10xf32>
    %42 = arith.addf %41, %40 : vector<2x10xf32>
    %c0_34 = arith.constant 0 : index
    %c0_35 = arith.constant 0 : index
    %43 = vector.load %arg9[%c0_34, %c0_35] : memref<2x10xf32, #tpu.memory_space<vmem>>, vector<2x10xf32>
    %c0_36 = arith.constant 0 : index
    %c0_37 = arith.constant 0 : index
    %44 = vector.load %arg9[%c0_36, %c0_37] : memref<2x10xf32, #tpu.memory_space<vmem>>, vector<2x10xf32>
    %cst_38 = arith.constant 0.000000e+00 : f32
    %45 = vector.broadcast %cst_38 : f32 to vector<2x10xf32>
    %46 = arith.subf %45, %44 : vector<2x10xf32>
    %47 = arith.addf %46, %42 : vector<2x10xf32>
    %cst_39 = arith.constant 1.000000e-01 : f32
    %48 = vector.broadcast %cst_39 : f32 to vector<2x10xf32>
    %49 = arith.mulf %48, %47 : vector<2x10xf32>
    %50 = arith.addf %43, %49 : vector<2x10xf32>
    %cst_40 = arith.constant -2.000000e-01 : f32
    %51 = vector.broadcast %cst_40 : f32 to vector<2x10xf32>
    %52 = arith.mulf %51, %42 : vector<2x10xf32>
    %53 = arith.addf %42, %52 : vector<2x10xf32>
    %c0_41 = arith.constant 0 : index
    %c0_42 = arith.constant 0 : index
    %54 = vector.load %arg9[%c0_41, %c0_42] : memref<2x10xf32, #tpu.memory_space<vmem>>, vector<2x10xf32>
    tpu.vector_store %arg9[%c0_41, %c0_42], %50 {strides = array<i32>} : memref<2x10xf32, #tpu.memory_space<vmem>>, vector<2x10xf32>,
    %c0_43 = arith.constant 0 : index
    %c0_44 = arith.constant 0 : index
    %55 = vector.load %arg10[%c0_43, %c0_44] : memref<2x10xf32, #tpu.memory_space<vmem>>, vector<2x10xf32>
    tpu.vector_store %arg10[%c0_43, %c0_44], %53 {strides = array<i32>} : memref<2x10xf32, #tpu.memory_space<vmem>>, vector<2x10xf32>,
    %56 = arith.index_cast %c0_i32_1 : i32 to index
    %c0_45 = arith.constant 0 : index
    %c0_46 = arith.constant 0 : index
    %57 = vector.load %arg5[%56, %c0_45, %c0_46] : memref<8x2x10xf32, #tpu.memory_space<vmem>>, vector<1x2x10xf32>
    %58 = vector.shape_cast %57 : vector<1x2x10xf32> to vector<2x10xf32>
    %59 = vector.shape_cast %50 : vector<2x10xf32> to vector<1x2x10xf32>
    tpu.vector_store %arg5[%56, %c0_45, %c0_46], %59 {strides = array<i32>} : memref<8x2x10xf32, #tpu.memory_space<vmem>>, vector<1x2x10xf32>,
    %c1_i32 = arith.constant 1 : i32
    %60 = arith.index_cast %c1_i32 : i32 to index
    %c0_47 = arith.constant 0 : index
    %c0_48 = arith.constant 0 : index
    %61 = vector.load %arg2[%60, %c0_47, %c0_48] : memref<8x2x256xf32, #tpu.memory_space<vmem>>, vector<1x2x256xf32>
    %62 = vector.shape_cast %61 : vector<1x2x256xf32> to vector<2x256xf32>
    %c0_49 = arith.constant 0 : index
    %c0_50 = arith.constant 0 : index
    %63 = vector.load %arg11[%c0_49, %c0_50] : memref<2x288xf32, #tpu.memory_space<vmem>>, vector<2x256xf32>
    tpu.vector_store %arg11[%c0_49, %c0_50], %62 {strides = array<i32>} : memref<2x288xf32, #tpu.memory_space<vmem>>, vector<2x256xf32>,
    %c0_51 = arith.constant 0 : index
    %c0_52 = arith.constant 0 : index
    %64 = vector.load %arg6[%c0_51, %c0_52] : memref<2x32xf32, #tpu.memory_space<vmem>>, vector<2x32xf32>
    %c0_53 = arith.constant 0 : index
    %c256_54 = arith.constant 256 : index
    %65 = vector.load %arg11[%c0_53, %c256_54] : memref<2x288xf32, #tpu.memory_space<vmem>>, vector<2x32xf32>
    tpu.vector_store %arg11[%c0_53, %c256_54], %64 {strides = array<i32>} : memref<2x288xf32, #tpu.memory_space<vmem>>, vector<2x32xf32>,
    %c0_55 = arith.constant 0 : index
    %c0_56 = arith.constant 0 : index
    %66 = vector.load %arg7[%c0_55, %c0_56] : memref<2x32xf32, #tpu.memory_space<vmem>>, vector<2x32xf32>
    %c0_57 = arith.constant 0 : index
    %c0_58 = arith.constant 0 : index
    %67 = vector.load %arg8[%c0_57, %c0_58] : memref<2x32xf32, #tpu.memory_space<vmem>>, vector<2x32xf32>
    %cst_59 = arith.constant 0.000000e+00 : f32
    %68 = vector.broadcast %cst_59 : f32 to vector<2x32xf32>
    %69 = arith.subf %68, %66 : vector<2x32xf32>
    %70 = arith.addf %69, %67 : vector<2x32xf32>
    %cst_60 = arith.constant 1.000000e-01 : f32
    %71 = vector.broadcast %cst_60 : f32 to vector<2x32xf32>
    %72 = arith.mulf %71, %70 : vector<2x32xf32>
    %73 = arith.addf %66, %72 : vector<2x32xf32>
    %cst_61 = arith.constant -2.000000e-01 : f32
    %74 = vector.broadcast %cst_61 : f32 to vector<2x32xf32>
    %75 = arith.mulf %74, %67 : vector<2x32xf32>
    %76 = arith.addf %67, %75 : vector<2x32xf32>
    %cst_62 = arith.constant 1.000000e+00 : f32
    %77 = vector.broadcast %cst_62 : f32 to vector<2x32xf32>
    %78 = arith.subf %73, %77 : vector<2x32xf32>
    %cst_63 = arith.constant 0.000000e+00 : f32
    %79 = vector.broadcast %cst_63 : f32 to vector<2x32xf32>
    %80 = arith.cmpf ogt, %78, %79 : vector<2x32xf32>
    %81 = arith.extui %80 : vector<2x32xi1> to vector<2x32xi32>
    %82 = arith.sitofp %81 : vector<2x32xi32> to vector<2x32xf32>
    %cst_64 = arith.constant 1.000000e+00 : f32
    %83 = vector.broadcast %cst_64 : f32 to vector<2x32xf32>
    %84 = arith.subf %83, %82 : vector<2x32xf32>
    %85 = arith.mulf %84, %73 : vector<2x32xf32>
    %cst_65 = arith.constant 0.000000e+00 : f32
    %86 = vector.broadcast %cst_65 : f32 to vector<2x32xf32>
    %87 = arith.mulf %82, %86 : vector<2x32xf32>
    %88 = arith.addf %85, %87 : vector<2x32xf32>
    %c0_66 = arith.constant 0 : index
    %c0_67 = arith.constant 0 : index
    %89 = vector.load %arg11[%c0_66, %c0_67] : memref<2x288xf32, #tpu.memory_space<vmem>>, vector<2x288xf32>
    %c0_68 = arith.constant 0 : index
    %c0_69 = arith.constant 0 : index
    %90 = vector.load %arg3[%c0_68, %c0_69] : memref<288x32xf32, #tpu.memory_space<vmem>>, vector<288x32xf32>
    %cst_70 = arith.constant dense<0.000000e+00> : vector<2x32xf32>
    %91 = tpu.matmul %89, %90, %cst_70 {dimension_numbers = #tpu.dot_dimension_numbers<[1], [0], [0], [1], [0, 0, 1, 1], [], []>} : vector<2x288xf32>, vector<288x32xf32>, vector<2x32xf32> -> vector<2x32xf32>
    %92 = arith.addf %76, %91 : vector<2x32xf32>
    %c0_71 = arith.constant 0 : index
    %c0_72 = arith.constant 0 : index
    %93 = vector.load %arg6[%c0_71, %c0_72] : memref<2x32xf32, #tpu.memory_space<vmem>>, vector<2x32xf32>
    tpu.vector_store %arg6[%c0_71, %c0_72], %82 {strides = array<i32>} : memref<2x32xf32, #tpu.memory_space<vmem>>, vector<2x32xf32>,
    %c0_73 = arith.constant 0 : index
    %c0_74 = arith.constant 0 : index
    %94 = vector.load %arg7[%c0_73, %c0_74] : memref<2x32xf32, #tpu.memory_space<vmem>>, vector<2x32xf32>
    tpu.vector_store %arg7[%c0_73, %c0_74], %88 {strides = array<i32>} : memref<2x32xf32, #tpu.memory_space<vmem>>, vector<2x32xf32>,
    %c0_75 = arith.constant 0 : index
    %c0_76 = arith.constant 0 : index
    %95 = vector.load %arg8[%c0_75, %c0_76] : memref<2x32xf32, #tpu.memory_space<vmem>>, vector<2x32xf32>
    tpu.vector_store %arg8[%c0_75, %c0_76], %92 {strides = array<i32>} : memref<2x32xf32, #tpu.memory_space<vmem>>, vector<2x32xf32>,
    %c0_77 = arith.constant 0 : index
    %c0_78 = arith.constant 0 : index
    %96 = vector.load %arg4[%c0_77, %c0_78] : memref<32x10xf32, #tpu.memory_space<vmem>>, vector<32x10xf32>
    %cst_79 = arith.constant dense<0.000000e+00> : vector<2x10xf32>
    %97 = tpu.matmul %82, %96, %cst_79 {dimension_numbers = #tpu.dot_dimension_numbers<[1], [0], [0], [1], [0, 0, 1, 1], [], []>} : vector<2x32xf32>, vector<32x10xf32>, vector<2x10xf32> -> vector<2x10xf32>
    %c0_80 = arith.constant 0 : index
    %c0_81 = arith.constant 0 : index
    %98 = vector.load %arg10[%c0_80, %c0_81] : memref<2x10xf32, #tpu.memory_space<vmem>>, vector<2x10xf32>
    %99 = arith.addf %98, %97 : vector<2x10xf32>
    %c0_82 = arith.constant 0 : index
    %c0_83 = arith.constant 0 : index
    %100 = vector.load %arg9[%c0_82, %c0_83] : memref<2x10xf32, #tpu.memory_space<vmem>>, vector<2x10xf32>
    %c0_84 = arith.constant 0 : index
    %c0_85 = arith.constant 0 : index
    %101 = vector.load %arg9[%c0_84, %c0_85] : memref<2x10xf32, #tpu.memory_space<vmem>>, vector<2x10xf32>
    %cst_86 = arith.constant 0.000000e+00 : f32
    %102 = vector.broadcast %cst_86 : f32 to vector<2x10xf32>
    %103 = arith.subf %102, %101 : vector<2x10xf32>
    %104 = arith.addf %103, %99 : vector<2x10xf32>
    %cst_87 = arith.constant 1.000000e-01 : f32
    %105 = vector.broadcast %cst_87 : f32 to vector<2x10xf32>
    %106 = arith.mulf %105, %104 : vector<2x10xf32>
    %107 = arith.addf %100, %106 : vector<2x10xf32>
    %cst_88 = arith.constant -2.000000e-01 : f32
    %108 = vector.broadcast %cst_88 : f32 to vector<2x10xf32>
    %109 = arith.mulf %108, %99 : vector<2x10xf32>
    %110 = arith.addf %99, %109 : vector<2x10xf32>
    %c0_89 = arith.constant 0 : index
    %c0_90 = arith.constant 0 : index
    %111 = vector.load %arg9[%c0_89, %c0_90] : memref<2x10xf32, #tpu.memory_space<vmem>>, vector<2x10xf32>
    tpu.vector_store %arg9[%c0_89, %c0_90], %107 {strides = array<i32>} : memref<2x10xf32, #tpu.memory_space<vmem>>, vector<2x10xf32>,
    %c0_91 = arith.constant 0 : index
    %c0_92 = arith.constant 0 : index
    %112 = vector.load %arg10[%c0_91, %c0_92] : memref<2x10xf32, #tpu.memory_space<vmem>>, vector<2x10xf32>
    tpu.vector_store %arg10[%c0_91, %c0_92], %110 {strides = array<i32>} : memref<2x10xf32, #tpu.memory_space<vmem>>, vector<2x10xf32>,
    %113 = arith.index_cast %c1_i32 : i32 to index
    %c0_93 = arith.constant 0 : index
    %c0_94 = arith.constant 0 : index
    %114 = vector.load %arg5[%113, %c0_93, %c0_94] : memref<8x2x10xf32, #tpu.memory_space<vmem>>, vector<1x2x10xf32>
    %115 = vector.shape_cast %114 : vector<1x2x10xf32> to vector<2x10xf32>
    %116 = vector.shape_cast %107 : vector<2x10xf32> to vector<1x2x10xf32>
    tpu.vector_store %arg5[%113, %c0_93, %c0_94], %116 {strides = array<i32>} : memref<8x2x10xf32, #tpu.memory_space<vmem>>, vector<1x2x10xf32>,
    %c2_i32 = arith.constant 2 : i32
    %117 = arith.index_cast %c2_i32 : i32 to index
    %c0_95 = arith.constant 0 : index
    %c0_96 = arith.constant 0 : index
    %118 = vector.load %arg2[%117, %c0_95, %c0_96] : memref<8x2x256xf32, #tpu.memory_space<vmem>>, vector<1x2x256xf32>
    %119 = vector.shape_cast %118 : vector<1x2x256xf32> to vector<2x256xf32>
    %c0_97 = arith.constant 0 : index
    %c0_98 = arith.constant 0 : index
    %120 = vector.load %arg11[%c0_97, %c0_98] : memref<2x288xf32, #tpu.memory_space<vmem>>, vector<2x256xf32>
    tpu.vector_store %arg11[%c0_97, %c0_98], %119 {strides = array<i32>} : memref<2x288xf32, #tpu.memory_space<vmem>>, vector<2x256xf32>,
    %c0_99 = arith.constant 0 : index
    %c0_100 = arith.constant 0 : index
    %121 = vector.load %arg6[%c0_99, %c0_100] : memref<2x32xf32, #tpu.memory_space<vmem>>, vector<2x32xf32>
    %c0_101 = arith.constant 0 : index
    %c256_102 = arith.constant 256 : index
    %122 = vector.load %arg11[%c0_101, %c256_102] : memref<2x288xf32, #tpu.memory_space<vmem>>, vector<2x32xf32>
    tpu.vector_store %arg11[%c0_101, %c256_102], %121 {strides = array<i32>} : memref<2x288xf32, #tpu.memory_space<vmem>>, vector<2x32xf32>,
    %c0_103 = arith.constant 0 : index
    %c0_104 = arith.constant 0 : index
    %123 = vector.load %arg7[%c0_103, %c0_104] : memref<2x32xf32, #tpu.memory_space<vmem>>, vector<2x32xf32>
    %c0_105 = arith.constant 0 : index
    %c0_106 = arith.constant 0 : index
    %124 = vector.load %arg8[%c0_105, %c0_106] : memref<2x32xf32, #tpu.memory_space<vmem>>, vector<2x32xf32>
    %cst_107 = arith.constant 0.000000e+00 : f32
    %125 = vector.broadcast %cst_107 : f32 to vector<2x32xf32>
    %126 = arith.subf %125, %123 : vector<2x32xf32>
    %127 = arith.addf %126, %124 : vector<2x32xf32>
    %cst_108 = arith.constant 1.000000e-01 : f32
    %128 = vector.broadcast %cst_108 : f32 to vector<2x32xf32>
    %129 = arith.mulf %128, %127 : vector<2x32xf32>
    %130 = arith.addf %123, %129 : vector<2x32xf32>
    %cst_109 = arith.constant -2.000000e-01 : f32
    %131 = vector.broadcast %cst_109 : f32 to vector<2x32xf32>
    %132 = arith.mulf %131, %124 : vector<2x32xf32>
    %133 = arith.addf %124, %132 : vector<2x32xf32>
    %cst_110 = arith.constant 1.000000e+00 : f32
    %134 = vector.broadcast %cst_110 : f32 to vector<2x32xf32>
    %135 = arith.subf %130, %134 : vector<2x32xf32>
    %cst_111 = arith.constant 0.000000e+00 : f32
    %136 = vector.broadcast %cst_111 : f32 to vector<2x32xf32>
    %137 = arith.cmpf ogt, %135, %136 : vector<2x32xf32>
    %138 = arith.extui %137 : vector<2x32xi1> to vector<2x32xi32>
    %139 = arith.sitofp %138 : vector<2x32xi32> to vector<2x32xf32>
    %cst_112 = arith.constant 1.000000e+00 : f32
    %140 = vector.broadcast %cst_112 : f32 to vector<2x32xf32>
    %141 = arith.subf %140, %139 : vector<2x32xf32>
    %142 = arith.mulf %141, %130 : vector<2x32xf32>
    %cst_113 = arith.constant 0.000000e+00 : f32
    %143 = vector.broadcast %cst_113 : f32 to vector<2x32xf32>
    %144 = arith.mulf %139, %143 : vector<2x32xf32>
    %145 = arith.addf %142, %144 : vector<2x32xf32>
    %c0_114 = arith.constant 0 : index
    %c0_115 = arith.constant 0 : index
    %146 = vector.load %arg11[%c0_114, %c0_115] : memref<2x288xf32, #tpu.memory_space<vmem>>, vector<2x288xf32>
    %c0_116 = arith.constant 0 : index
    %c0_117 = arith.constant 0 : index
    %147 = vector.load %arg3[%c0_116, %c0_117] : memref<288x32xf32, #tpu.memory_space<vmem>>, vector<288x32xf32>
    %cst_118 = arith.constant dense<0.000000e+00> : vector<2x32xf32>
    %148 = tpu.matmul %146, %147, %cst_118 {dimension_numbers = #tpu.dot_dimension_numbers<[1], [0], [0], [1], [0, 0, 1, 1], [], []>} : vector<2x288xf32>, vector<288x32xf32>, vector<2x32xf32> -> vector<2x32xf32>
    %149 = arith.addf %133, %148 : vector<2x32xf32>
    %c0_119 = arith.constant 0 : index
    %c0_120 = arith.constant 0 : index
    %150 = vector.load %arg6[%c0_119, %c0_120] : memref<2x32xf32, #tpu.memory_space<vmem>>, vector<2x32xf32>
    tpu.vector_store %arg6[%c0_119, %c0_120], %139 {strides = array<i32>} : memref<2x32xf32, #tpu.memory_space<vmem>>, vector<2x32xf32>,
    %c0_121 = arith.constant 0 : index
    %c0_122 = arith.constant 0 : index
    %151 = vector.load %arg7[%c0_121, %c0_122] : memref<2x32xf32, #tpu.memory_space<vmem>>, vector<2x32xf32>
    tpu.vector_store %arg7[%c0_121, %c0_122], %145 {strides = array<i32>} : memref<2x32xf32, #tpu.memory_space<vmem>>, vector<2x32xf32>,
    %c0_123 = arith.constant 0 : index
    %c0_124 = arith.constant 0 : index
    %152 = vector.load %arg8[%c0_123, %c0_124] : memref<2x32xf32, #tpu.memory_space<vmem>>, vector<2x32xf32>
    tpu.vector_store %arg8[%c0_123, %c0_124], %149 {strides = array<i32>} : memref<2x32xf32, #tpu.memory_space<vmem>>, vector<2x32xf32>,
    %c0_125 = arith.constant 0 : index
    %c0_126 = arith.constant 0 : index
    %153 = vector.load %arg4[%c0_125, %c0_126] : memref<32x10xf32, #tpu.memory_space<vmem>>, vector<32x10xf32>
    %cst_127 = arith.constant dense<0.000000e+00> : vector<2x10xf32>
    %154 = tpu.matmul %139, %153, %cst_127 {dimension_numbers = #tpu.dot_dimension_numbers<[1], [0], [0], [1], [0, 0, 1, 1], [], []>} : vector<2x32xf32>, vector<32x10xf32>, vector<2x10xf32> -> vector<2x10xf32>
    %c0_128 = arith.constant 0 : index
    %c0_129 = arith.constant 0 : index
    %155 = vector.load %arg10[%c0_128, %c0_129] : memref<2x10xf32, #tpu.memory_space<vmem>>, vector<2x10xf32>
    %156 = arith.addf %155, %154 : vector<2x10xf32>
    %c0_130 = arith.constant 0 : index
    %c0_131 = arith.constant 0 : index
    %157 = vector.load %arg9[%c0_130, %c0_131] : memref<2x10xf32, #tpu.memory_space<vmem>>, vector<2x10xf32>
    %c0_132 = arith.constant 0 : index
    %c0_133 = arith.constant 0 : index
    %158 = vector.load %arg9[%c0_132, %c0_133] : memref<2x10xf32, #tpu.memory_space<vmem>>, vector<2x10xf32>
    %cst_134 = arith.constant 0.000000e+00 : f32
    %159 = vector.broadcast %cst_134 : f32 to vector<2x10xf32>
    %160 = arith.subf %159, %158 : vector<2x10xf32>
    %161 = arith.addf %160, %156 : vector<2x10xf32>
    %cst_135 = arith.constant 1.000000e-01 : f32
    %162 = vector.broadcast %cst_135 : f32 to vector<2x10xf32>
    %163 = arith.mulf %162, %161 : vector<2x10xf32>
    %164 = arith.addf %157, %163 : vector<2x10xf32>
    %cst_136 = arith.constant -2.000000e-01 : f32
    %165 = vector.broadcast %cst_136 : f32 to vector<2x10xf32>
    %166 = arith.mulf %165, %156 : vector<2x10xf32>
    %167 = arith.addf %156, %166 : vector<2x10xf32>
    %c0_137 = arith.constant 0 : index
    %c0_138 = arith.constant 0 : index
    %168 = vector.load %arg9[%c0_137, %c0_138] : memref<2x10xf32, #tpu.memory_space<vmem>>, vector<2x10xf32>
    tpu.vector_store %arg9[%c0_137, %c0_138], %164 {strides = array<i32>} : memref<2x10xf32, #tpu.memory_space<vmem>>, vector<2x10xf32>,
    %c0_139 = arith.constant 0 : index
    %c0_140 = arith.constant 0 : index
    %169 = vector.load %arg10[%c0_139, %c0_140] : memref<2x10xf32, #tpu.memory_space<vmem>>, vector<2x10xf32>
    tpu.vector_store %arg10[%c0_139, %c0_140], %167 {strides = array<i32>} : memref<2x10xf32, #tpu.memory_space<vmem>>, vector<2x10xf32>,
    %170 = arith.index_cast %c2_i32 : i32 to index
    %c0_141 = arith.constant 0 : index
    %c0_142 = arith.constant 0 : index
    %171 = vector.load %arg5[%170, %c0_141, %c0_142] : memref<8x2x10xf32, #tpu.memory_space<vmem>>, vector<1x2x10xf32>
    %172 = vector.shape_cast %171 : vector<1x2x10xf32> to vector<2x10xf32>
    %173 = vector.shape_cast %164 : vector<2x10xf32> to vector<1x2x10xf32>
    tpu.vector_store %arg5[%170, %c0_141, %c0_142], %173 {strides = array<i32>} : memref<8x2x10xf32, #tpu.memory_space<vmem>>, vector<1x2x10xf32>,
    %c3_i32 = arith.constant 3 : i32
    %174 = arith.index_cast %c3_i32 : i32 to index
    %c0_143 = arith.constant 0 : index
    %c0_144 = arith.constant 0 : index
    %175 = vector.load %arg2[%174, %c0_143, %c0_144] : memref<8x2x256xf32, #tpu.memory_space<vmem>>, vector<1x2x256xf32>
    %176 = vector.shape_cast %175 : vector<1x2x256xf32> to vector<2x256xf32>
    %c0_145 = arith.constant 0 : index
    %c0_146 = arith.constant 0 : index
    %177 = vector.load %arg11[%c0_145, %c0_146] : memref<2x288xf32, #tpu.memory_space<vmem>>, vector<2x256xf32>
    tpu.vector_store %arg11[%c0_145, %c0_146], %176 {strides = array<i32>} : memref<2x288xf32, #tpu.memory_space<vmem>>, vector<2x256xf32>,
    %c0_147 = arith.constant 0 : index
    %c0_148 = arith.constant 0 : index
    %178 = vector.load %arg6[%c0_147, %c0_148] : memref<2x32xf32, #tpu.memory_space<vmem>>, vector<2x32xf32>
    %c0_149 = arith.constant 0 : index
    %c256_150 = arith.constant 256 : index
    %179 = vector.load %arg11[%c0_149, %c256_150] : memref<2x288xf32, #tpu.memory_space<vmem>>, vector<2x32xf32>
    tpu.vector_store %arg11[%c0_149, %c256_150], %178 {strides = array<i32>} : memref<2x288xf32, #tpu.memory_space<vmem>>, vector<2x32xf32>,
    %c0_151 = arith.constant 0 : index
    %c0_152 = arith.constant 0 : index
    %180 = vector.load %arg7[%c0_151, %c0_152] : memref<2x32xf32, #tpu.memory_space<vmem>>, vector<2x32xf32>
    %c0_153 = arith.constant 0 : index
    %c0_154 = arith.constant 0 : index
    %181 = vector.load %arg8[%c0_153, %c0_154] : memref<2x32xf32, #tpu.memory_space<vmem>>, vector<2x32xf32>
    %cst_155 = arith.constant 0.000000e+00 : f32
    %182 = vector.broadcast %cst_155 : f32 to vector<2x32xf32>
    %183 = arith.subf %182, %180 : vector<2x32xf32>
    %184 = arith.addf %183, %181 : vector<2x32xf32>
    %cst_156 = arith.constant 1.000000e-01 : f32
    %185 = vector.broadcast %cst_156 : f32 to vector<2x32xf32>
    %186 = arith.mulf %185, %184 : vector<2x32xf32>
    %187 = arith.addf %180, %186 : vector<2x32xf32>
    %cst_157 = arith.constant -2.000000e-01 : f32
    %188 = vector.broadcast %cst_157 : f32 to vector<2x32xf32>
    %189 = arith.mulf %188, %181 : vector<2x32xf32>
    %190 = arith.addf %181, %189 : vector<2x32xf32>
    %cst_158 = arith.constant 1.000000e+00 : f32
    %191 = vector.broadcast %cst_158 : f32 to vector<2x32xf32>
    %192 = arith.subf %187, %191 : vector<2x32xf32>
    %cst_159 = arith.constant 0.000000e+00 : f32
    %193 = vector.broadcast %cst_159 : f32 to vector<2x32xf32>
    %194 = arith.cmpf ogt, %192, %193 : vector<2x32xf32>
    %195 = arith.extui %194 : vector<2x32xi1> to vector<2x32xi32>
    %196 = arith.sitofp %195 : vector<2x32xi32> to vector<2x32xf32>
    %cst_160 = arith.constant 1.000000e+00 : f32
    %197 = vector.broadcast %cst_160 : f32 to vector<2x32xf32>
    %198 = arith.subf %197, %196 : vector<2x32xf32>
    %199 = arith.mulf %198, %187 : vector<2x32xf32>
    %cst_161 = arith.constant 0.000000e+00 : f32
    %200 = vector.broadcast %cst_161 : f32 to vector<2x32xf32>
    %201 = arith.mulf %196, %200 : vector<2x32xf32>
    %202 = arith.addf %199, %201 : vector<2x32xf32>
    %c0_162 = arith.constant 0 : index
    %c0_163 = arith.constant 0 : index
    %203 = vector.load %arg11[%c0_162, %c0_163] : memref<2x288xf32, #tpu.memory_space<vmem>>, vector<2x288xf32>
    %c0_164 = arith.constant 0 : index
    %c0_165 = arith.constant 0 : index
    %204 = vector.load %arg3[%c0_164, %c0_165] : memref<288x32xf32, #tpu.memory_space<vmem>>, vector<288x32xf32>
    %cst_166 = arith.constant dense<0.000000e+00> : vector<2x32xf32>
    %205 = tpu.matmul %203, %204, %cst_166 {dimension_numbers = #tpu.dot_dimension_numbers<[1], [0], [0], [1], [0, 0, 1, 1], [], []>} : vector<2x288xf32>, vector<288x32xf32>, vector<2x32xf32> -> vector<2x32xf32>
    %206 = arith.addf %190, %205 : vector<2x32xf32>
    %c0_167 = arith.constant 0 : index
    %c0_168 = arith.constant 0 : index
    %207 = vector.load %arg6[%c0_167, %c0_168] : memref<2x32xf32, #tpu.memory_space<vmem>>, vector<2x32xf32>
    tpu.vector_store %arg6[%c0_167, %c0_168], %196 {strides = array<i32>} : memref<2x32xf32, #tpu.memory_space<vmem>>, vector<2x32xf32>,
    %c0_169 = arith.constant 0 : index
    %c0_170 = arith.constant 0 : index
    %208 = vector.load %arg7[%c0_169, %c0_170] : memref<2x32xf32, #tpu.memory_space<vmem>>, vector<2x32xf32>
    tpu.vector_store %arg7[%c0_169, %c0_170], %202 {strides = array<i32>} : memref<2x32xf32, #tpu.memory_space<vmem>>, vector<2x32xf32>,
    %c0_171 = arith.constant 0 : index
    %c0_172 = arith.constant 0 : index
    %209 = vector.load %arg8[%c0_171, %c0_172] : memref<2x32xf32, #tpu.memory_space<vmem>>, vector<2x32xf32>
    tpu.vector_store %arg8[%c0_171, %c0_172], %206 {strides = array<i32>} : memref<2x32xf32, #tpu.memory_space<vmem>>, vector<2x32xf32>,
    %c0_173 = arith.constant 0 : index
    %c0_174 = arith.constant 0 : index
    %210 = vector.load %arg4[%c0_173, %c0_174] : memref<32x10xf32, #tpu.memory_space<vmem>>, vector<32x10xf32>
    %cst_175 = arith.constant dense<0.000000e+00> : vector<2x10xf32>
    %211 = tpu.matmul %196, %210, %cst_175 {dimension_numbers = #tpu.dot_dimension_numbers<[1], [0], [0], [1], [0, 0, 1, 1], [], []>} : vector<2x32xf32>, vector<32x10xf32>, vector<2x10xf32> -> vector<2x10xf32>
    %c0_176 = arith.constant 0 : index
    %c0_177 = arith.constant 0 : index
    %212 = vector.load %arg10[%c0_176, %c0_177] : memref<2x10xf32, #tpu.memory_space<vmem>>, vector<2x10xf32>
    %213 = arith.addf %212, %211 : vector<2x10xf32>
    %c0_178 = arith.constant 0 : index
    %c0_179 = arith.constant 0 : index
    %214 = vector.load %arg9[%c0_178, %c0_179] : memref<2x10xf32, #tpu.memory_space<vmem>>, vector<2x10xf32>
    %c0_180 = arith.constant 0 : index
    %c0_181 = arith.constant 0 : index
    %215 = vector.load %arg9[%c0_180, %c0_181] : memref<2x10xf32, #tpu.memory_space<vmem>>, vector<2x10xf32>
    %cst_182 = arith.constant 0.000000e+00 : f32
    %216 = vector.broadcast %cst_182 : f32 to vector<2x10xf32>
    %217 = arith.subf %216, %215 : vector<2x10xf32>
    %218 = arith.addf %217, %213 : vector<2x10xf32>
    %cst_183 = arith.constant 1.000000e-01 : f32
    %219 = vector.broadcast %cst_183 : f32 to vector<2x10xf32>
    %220 = arith.mulf %219, %218 : vector<2x10xf32>
    %221 = arith.addf %214, %220 : vector<2x10xf32>
    %cst_184 = arith.constant -2.000000e-01 : f32
    %222 = vector.broadcast %cst_184 : f32 to vector<2x10xf32>
    %223 = arith.mulf %222, %213 : vector<2x10xf32>
    %224 = arith.addf %213, %223 : vector<2x10xf32>
    %c0_185 = arith.constant 0 : index
    %c0_186 = arith.constant 0 : index
    %225 = vector.load %arg9[%c0_185, %c0_186] : memref<2x10xf32, #tpu.memory_space<vmem>>, vector<2x10xf32>
    tpu.vector_store %arg9[%c0_185, %c0_186], %221 {strides = array<i32>} : memref<2x10xf32, #tpu.memory_space<vmem>>, vector<2x10xf32>,
    %c0_187 = arith.constant 0 : index
    %c0_188 = arith.constant 0 : index
    %226 = vector.load %arg10[%c0_187, %c0_188] : memref<2x10xf32, #tpu.memory_space<vmem>>, vector<2x10xf32>
    tpu.vector_store %arg10[%c0_187, %c0_188], %224 {strides = array<i32>} : memref<2x10xf32, #tpu.memory_space<vmem>>, vector<2x10xf32>,
    %227 = arith.index_cast %c3_i32 : i32 to index
    %c0_189 = arith.constant 0 : index
    %c0_190 = arith.constant 0 : index
    %228 = vector.load %arg5[%227, %c0_189, %c0_190] : memref<8x2x10xf32, #tpu.memory_space<vmem>>, vector<1x2x10xf32>
    %229 = vector.shape_cast %228 : vector<1x2x10xf32> to vector<2x10xf32>
    %230 = vector.shape_cast %221 : vector<2x10xf32> to vector<1x2x10xf32>
    tpu.vector_store %arg5[%227, %c0_189, %c0_190], %230 {strides = array<i32>} : memref<8x2x10xf32, #tpu.memory_space<vmem>>, vector<1x2x10xf32>,
    %c4_i32 = arith.constant 4 : i32
    %231 = arith.index_cast %c4_i32 : i32 to index
    %c0_191 = arith.constant 0 : index
    %c0_192 = arith.constant 0 : index
    %232 = vector.load %arg2[%231, %c0_191, %c0_192] : memref<8x2x256xf32, #tpu.memory_space<vmem>>, vector<1x2x256xf32>
    %233 = vector.shape_cast %232 : vector<1x2x256xf32> to vector<2x256xf32>
    %c0_193 = arith.constant 0 : index
    %c0_194 = arith.constant 0 : index
    %234 = vector.load %arg11[%c0_193, %c0_194] : memref<2x288xf32, #tpu.memory_space<vmem>>, vector<2x256xf32>
    tpu.vector_store %arg11[%c0_193, %c0_194], %233 {strides = array<i32>} : memref<2x288xf32, #tpu.memory_space<vmem>>, vector<2x256xf32>,
    %c0_195 = arith.constant 0 : index
    %c0_196 = arith.constant 0 : index
    %235 = vector.load %arg6[%c0_195, %c0_196] : memref<2x32xf32, #tpu.memory_space<vmem>>, vector<2x32xf32>
    %c0_197 = arith.constant 0 : index
    %c256_198 = arith.constant 256 : index
    %236 = vector.load %arg11[%c0_197, %c256_198] : memref<2x288xf32, #tpu.memory_space<vmem>>, vector<2x32xf32>
    tpu.vector_store %arg11[%c0_197, %c256_198], %235 {strides = array<i32>} : memref<2x288xf32, #tpu.memory_space<vmem>>, vector<2x32xf32>,
    %c0_199 = arith.constant 0 : index
    %c0_200 = arith.constant 0 : index
    %237 = vector.load %arg7[%c0_199, %c0_200] : memref<2x32xf32, #tpu.memory_space<vmem>>, vector<2x32xf32>
    %c0_201 = arith.constant 0 : index
    %c0_202 = arith.constant 0 : index
    %238 = vector.load %arg8[%c0_201, %c0_202] : memref<2x32xf32, #tpu.memory_space<vmem>>, vector<2x32xf32>
    %cst_203 = arith.constant 0.000000e+00 : f32
    %239 = vector.broadcast %cst_203 : f32 to vector<2x32xf32>
    %240 = arith.subf %239, %237 : vector<2x32xf32>
    %241 = arith.addf %240, %238 : vector<2x32xf32>
    %cst_204 = arith.constant 1.000000e-01 : f32
    %242 = vector.broadcast %cst_204 : f32 to vector<2x32xf32>
    %243 = arith.mulf %242, %241 : vector<2x32xf32>
    %244 = arith.addf %237, %243 : vector<2x32xf32>
    %cst_205 = arith.constant -2.000000e-01 : f32
    %245 = vector.broadcast %cst_205 : f32 to vector<2x32xf32>
    %246 = arith.mulf %245, %238 : vector<2x32xf32>
    %247 = arith.addf %238, %246 : vector<2x32xf32>
    %cst_206 = arith.constant 1.000000e+00 : f32
    %248 = vector.broadcast %cst_206 : f32 to vector<2x32xf32>
    %249 = arith.subf %244, %248 : vector<2x32xf32>
    %cst_207 = arith.constant 0.000000e+00 : f32
    %250 = vector.broadcast %cst_207 : f32 to vector<2x32xf32>
    %251 = arith.cmpf ogt, %249, %250 : vector<2x32xf32>
    %252 = arith.extui %251 : vector<2x32xi1> to vector<2x32xi32>
    %253 = arith.sitofp %252 : vector<2x32xi32> to vector<2x32xf32>
    %cst_208 = arith.constant 1.000000e+00 : f32
    %254 = vector.broadcast %cst_208 : f32 to vector<2x32xf32>
    %255 = arith.subf %254, %253 : vector<2x32xf32>
    %256 = arith.mulf %255, %244 : vector<2x32xf32>
    %cst_209 = arith.constant 0.000000e+00 : f32
    %257 = vector.broadcast %cst_209 : f32 to vector<2x32xf32>
    %258 = arith.mulf %253, %257 : vector<2x32xf32>
    %259 = arith.addf %256, %258 : vector<2x32xf32>
    %c0_210 = arith.constant 0 : index
    %c0_211 = arith.constant 0 : index
    %260 = vector.load %arg11[%c0_210, %c0_211] : memref<2x288xf32, #tpu.memory_space<vmem>>, vector<2x288xf32>
    %c0_212 = arith.constant 0 : index
    %c0_213 = arith.constant 0 : index
    %261 = vector.load %arg3[%c0_212, %c0_213] : memref<288x32xf32, #tpu.memory_space<vmem>>, vector<288x32xf32>
    %cst_214 = arith.constant dense<0.000000e+00> : vector<2x32xf32>
    %262 = tpu.matmul %260, %261, %cst_214 {dimension_numbers = #tpu.dot_dimension_numbers<[1], [0], [0], [1], [0, 0, 1, 1], [], []>} : vector<2x288xf32>, vector<288x32xf32>, vector<2x32xf32> -> vector<2x32xf32>
    %263 = arith.addf %247, %262 : vector<2x32xf32>
    %c0_215 = arith.constant 0 : index
    %c0_216 = arith.constant 0 : index
    %264 = vector.load %arg6[%c0_215, %c0_216] : memref<2x32xf32, #tpu.memory_space<vmem>>, vector<2x32xf32>
    tpu.vector_store %arg6[%c0_215, %c0_216], %253 {strides = array<i32>} : memref<2x32xf32, #tpu.memory_space<vmem>>, vector<2x32xf32>,
    %c0_217 = arith.constant 0 : index
    %c0_218 = arith.constant 0 : index
    %265 = vector.load %arg7[%c0_217, %c0_218] : memref<2x32xf32, #tpu.memory_space<vmem>>, vector<2x32xf32>
    tpu.vector_store %arg7[%c0_217, %c0_218], %259 {strides = array<i32>} : memref<2x32xf32, #tpu.memory_space<vmem>>, vector<2x32xf32>,
    %c0_219 = arith.constant 0 : index
    %c0_220 = arith.constant 0 : index
    %266 = vector.load %arg8[%c0_219, %c0_220] : memref<2x32xf32, #tpu.memory_space<vmem>>, vector<2x32xf32>
    tpu.vector_store %arg8[%c0_219, %c0_220], %263 {strides = array<i32>} : memref<2x32xf32, #tpu.memory_space<vmem>>, vector<2x32xf32>,
    %c0_221 = arith.constant 0 : index
    %c0_222 = arith.constant 0 : index
    %267 = vector.load %arg4[%c0_221, %c0_222] : memref<32x10xf32, #tpu.memory_space<vmem>>, vector<32x10xf32>
    %cst_223 = arith.constant dense<0.000000e+00> : vector<2x10xf32>
    %268 = tpu.matmul %253, %267, %cst_223 {dimension_numbers = #tpu.dot_dimension_numbers<[1], [0], [0], [1], [0, 0, 1, 1], [], []>} : vector<2x32xf32>, vector<32x10xf32>, vector<2x10xf32> -> vector<2x10xf32>
    %c0_224 = arith.constant 0 : index
    %c0_225 = arith.constant 0 : index
    %269 = vector.load %arg10[%c0_224, %c0_225] : memref<2x10xf32, #tpu.memory_space<vmem>>, vector<2x10xf32>
    %270 = arith.addf %269, %268 : vector<2x10xf32>
    %c0_226 = arith.constant 0 : index
    %c0_227 = arith.constant 0 : index
    %271 = vector.load %arg9[%c0_226, %c0_227] : memref<2x10xf32, #tpu.memory_space<vmem>>, vector<2x10xf32>
    %c0_228 = arith.constant 0 : index
    %c0_229 = arith.constant 0 : index
    %272 = vector.load %arg9[%c0_228, %c0_229] : memref<2x10xf32, #tpu.memory_space<vmem>>, vector<2x10xf32>
    %cst_230 = arith.constant 0.000000e+00 : f32
    %273 = vector.broadcast %cst_230 : f32 to vector<2x10xf32>
    %274 = arith.subf %273, %272 : vector<2x10xf32>
    %275 = arith.addf %274, %270 : vector<2x10xf32>
    %cst_231 = arith.constant 1.000000e-01 : f32
    %276 = vector.broadcast %cst_231 : f32 to vector<2x10xf32>
    %277 = arith.mulf %276, %275 : vector<2x10xf32>
    %278 = arith.addf %271, %277 : vector<2x10xf32>
    %cst_232 = arith.constant -2.000000e-01 : f32
    %279 = vector.broadcast %cst_232 : f32 to vector<2x10xf32>
    %280 = arith.mulf %279, %270 : vector<2x10xf32>
    %281 = arith.addf %270, %280 : vector<2x10xf32>
    %c0_233 = arith.constant 0 : index
    %c0_234 = arith.constant 0 : index
    %282 = vector.load %arg9[%c0_233, %c0_234] : memref<2x10xf32, #tpu.memory_space<vmem>>, vector<2x10xf32>
    tpu.vector_store %arg9[%c0_233, %c0_234], %278 {strides = array<i32>} : memref<2x10xf32, #tpu.memory_space<vmem>>, vector<2x10xf32>,
    %c0_235 = arith.constant 0 : index
    %c0_236 = arith.constant 0 : index
    %283 = vector.load %arg10[%c0_235, %c0_236] : memref<2x10xf32, #tpu.memory_space<vmem>>, vector<2x10xf32>
    tpu.vector_store %arg10[%c0_235, %c0_236], %281 {strides = array<i32>} : memref<2x10xf32, #tpu.memory_space<vmem>>, vector<2x10xf32>,
    %284 = arith.index_cast %c4_i32 : i32 to index
    %c0_237 = arith.constant 0 : index
    %c0_238 = arith.constant 0 : index
    %285 = vector.load %arg5[%284, %c0_237, %c0_238] : memref<8x2x10xf32, #tpu.memory_space<vmem>>, vector<1x2x10xf32>
    %286 = vector.shape_cast %285 : vector<1x2x10xf32> to vector<2x10xf32>
    %287 = vector.shape_cast %278 : vector<2x10xf32> to vector<1x2x10xf32>
    tpu.vector_store %arg5[%284, %c0_237, %c0_238], %287 {strides = array<i32>} : memref<8x2x10xf32, #tpu.memory_space<vmem>>, vector<1x2x10xf32>,
    %c5_i32 = arith.constant 5 : i32
    %288 = arith.index_cast %c5_i32 : i32 to index
    %c0_239 = arith.constant 0 : index
    %c0_240 = arith.constant 0 : index
    %289 = vector.load %arg2[%288, %c0_239, %c0_240] : memref<8x2x256xf32, #tpu.memory_space<vmem>>, vector<1x2x256xf32>
    %290 = vector.shape_cast %289 : vector<1x2x256xf32> to vector<2x256xf32>
    %c0_241 = arith.constant 0 : index
    %c0_242 = arith.constant 0 : index
    %291 = vector.load %arg11[%c0_241, %c0_242] : memref<2x288xf32, #tpu.memory_space<vmem>>, vector<2x256xf32>
    tpu.vector_store %arg11[%c0_241, %c0_242], %290 {strides = array<i32>} : memref<2x288xf32, #tpu.memory_space<vmem>>, vector<2x256xf32>,
    %c0_243 = arith.constant 0 : index
    %c0_244 = arith.constant 0 : index
    %292 = vector.load %arg6[%c0_243, %c0_244] : memref<2x32xf32, #tpu.memory_space<vmem>>, vector<2x32xf32>
    %c0_245 = arith.constant 0 : index
    %c256_246 = arith.constant 256 : index
    %293 = vector.load %arg11[%c0_245, %c256_246] : memref<2x288xf32, #tpu.memory_space<vmem>>, vector<2x32xf32>
    tpu.vector_store %arg11[%c0_245, %c256_246], %292 {strides = array<i32>} : memref<2x288xf32, #tpu.memory_space<vmem>>, vector<2x32xf32>,
    %c0_247 = arith.constant 0 : index
    %c0_248 = arith.constant 0 : index
    %294 = vector.load %arg7[%c0_247, %c0_248] : memref<2x32xf32, #tpu.memory_space<vmem>>, vector<2x32xf32>
    %c0_249 = arith.constant 0 : index
    %c0_250 = arith.constant 0 : index
    %295 = vector.load %arg8[%c0_249, %c0_250] : memref<2x32xf32, #tpu.memory_space<vmem>>, vector<2x32xf32>
    %cst_251 = arith.constant 0.000000e+00 : f32
    %296 = vector.broadcast %cst_251 : f32 to vector<2x32xf32>
    %297 = arith.subf %296, %294 : vector<2x32xf32>
    %298 = arith.addf %297, %295 : vector<2x32xf32>
    %cst_252 = arith.constant 1.000000e-01 : f32
    %299 = vector.broadcast %cst_252 : f32 to vector<2x32xf32>
    %300 = arith.mulf %299, %298 : vector<2x32xf32>
    %301 = arith.addf %294, %300 : vector<2x32xf32>
    %cst_253 = arith.constant -2.000000e-01 : f32
    %302 = vector.broadcast %cst_253 : f32 to vector<2x32xf32>
    %303 = arith.mulf %302, %295 : vector<2x32xf32>
    %304 = arith.addf %295, %303 : vector<2x32xf32>
    %cst_254 = arith.constant 1.000000e+00 : f32
    %305 = vector.broadcast %cst_254 : f32 to vector<2x32xf32>
    %306 = arith.subf %301, %305 : vector<2x32xf32>
    %cst_255 = arith.constant 0.000000e+00 : f32
    %307 = vector.broadcast %cst_255 : f32 to vector<2x32xf32>
    %308 = arith.cmpf ogt, %306, %307 : vector<2x32xf32>
    %309 = arith.extui %308 : vector<2x32xi1> to vector<2x32xi32>
    %310 = arith.sitofp %309 : vector<2x32xi32> to vector<2x32xf32>
    %cst_256 = arith.constant 1.000000e+00 : f32
    %311 = vector.broadcast %cst_256 : f32 to vector<2x32xf32>
    %312 = arith.subf %311, %310 : vector<2x32xf32>
    %313 = arith.mulf %312, %301 : vector<2x32xf32>
    %cst_257 = arith.constant 0.000000e+00 : f32
    %314 = vector.broadcast %cst_257 : f32 to vector<2x32xf32>
    %315 = arith.mulf %310, %314 : vector<2x32xf32>
    %316 = arith.addf %313, %315 : vector<2x32xf32>
    %c0_258 = arith.constant 0 : index
    %c0_259 = arith.constant 0 : index
    %317 = vector.load %arg11[%c0_258, %c0_259] : memref<2x288xf32, #tpu.memory_space<vmem>>, vector<2x288xf32>
    %c0_260 = arith.constant 0 : index
    %c0_261 = arith.constant 0 : index
    %318 = vector.load %arg3[%c0_260, %c0_261] : memref<288x32xf32, #tpu.memory_space<vmem>>, vector<288x32xf32>
    %cst_262 = arith.constant dense<0.000000e+00> : vector<2x32xf32>
    %319 = tpu.matmul %317, %318, %cst_262 {dimension_numbers = #tpu.dot_dimension_numbers<[1], [0], [0], [1], [0, 0, 1, 1], [], []>} : vector<2x288xf32>, vector<288x32xf32>, vector<2x32xf32> -> vector<2x32xf32>
    %320 = arith.addf %304, %319 : vector<2x32xf32>
    %c0_263 = arith.constant 0 : index
    %c0_264 = arith.constant 0 : index
    %321 = vector.load %arg6[%c0_263, %c0_264] : memref<2x32xf32, #tpu.memory_space<vmem>>, vector<2x32xf32>
    tpu.vector_store %arg6[%c0_263, %c0_264], %310 {strides = array<i32>} : memref<2x32xf32, #tpu.memory_space<vmem>>, vector<2x32xf32>,
    %c0_265 = arith.constant 0 : index
    %c0_266 = arith.constant 0 : index
    %322 = vector.load %arg7[%c0_265, %c0_266] : memref<2x32xf32, #tpu.memory_space<vmem>>, vector<2x32xf32>
    tpu.vector_store %arg7[%c0_265, %c0_266], %316 {strides = array<i32>} : memref<2x32xf32, #tpu.memory_space<vmem>>, vector<2x32xf32>,
    %c0_267 = arith.constant 0 : index
    %c0_268 = arith.constant 0 : index
    %323 = vector.load %arg8[%c0_267, %c0_268] : memref<2x32xf32, #tpu.memory_space<vmem>>, vector<2x32xf32>
    tpu.vector_store %arg8[%c0_267, %c0_268], %320 {strides = array<i32>} : memref<2x32xf32, #tpu.memory_space<vmem>>, vector<2x32xf32>,
    %c0_269 = arith.constant 0 : index
    %c0_270 = arith.constant 0 : index
    %324 = vector.load %arg4[%c0_269, %c0_270] : memref<32x10xf32, #tpu.memory_space<vmem>>, vector<32x10xf32>
    %cst_271 = arith.constant dense<0.000000e+00> : vector<2x10xf32>
    %325 = tpu.matmul %310, %324, %cst_271 {dimension_numbers = #tpu.dot_dimension_numbers<[1], [0], [0], [1], [0, 0, 1, 1], [], []>} : vector<2x32xf32>, vector<32x10xf32>, vector<2x10xf32> -> vector<2x10xf32>
    %c0_272 = arith.constant 0 : index
    %c0_273 = arith.constant 0 : index
    %326 = vector.load %arg10[%c0_272, %c0_273] : memref<2x10xf32, #tpu.memory_space<vmem>>, vector<2x10xf32>
    %327 = arith.addf %326, %325 : vector<2x10xf32>
    %c0_274 = arith.constant 0 : index
    %c0_275 = arith.constant 0 : index
    %328 = vector.load %arg9[%c0_274, %c0_275] : memref<2x10xf32, #tpu.memory_space<vmem>>, vector<2x10xf32>
    %c0_276 = arith.constant 0 : index
    %c0_277 = arith.constant 0 : index
    %329 = vector.load %arg9[%c0_276, %c0_277] : memref<2x10xf32, #tpu.memory_space<vmem>>, vector<2x10xf32>
    %cst_278 = arith.constant 0.000000e+00 : f32
    %330 = vector.broadcast %cst_278 : f32 to vector<2x10xf32>
    %331 = arith.subf %330, %329 : vector<2x10xf32>
    %332 = arith.addf %331, %327 : vector<2x10xf32>
    %cst_279 = arith.constant 1.000000e-01 : f32
    %333 = vector.broadcast %cst_279 : f32 to vector<2x10xf32>
    %334 = arith.mulf %333, %332 : vector<2x10xf32>
    %335 = arith.addf %328, %334 : vector<2x10xf32>
    %cst_280 = arith.constant -2.000000e-01 : f32
    %336 = vector.broadcast %cst_280 : f32 to vector<2x10xf32>
    %337 = arith.mulf %336, %327 : vector<2x10xf32>
    %338 = arith.addf %327, %337 : vector<2x10xf32>
    %c0_281 = arith.constant 0 : index
    %c0_282 = arith.constant 0 : index
    %339 = vector.load %arg9[%c0_281, %c0_282] : memref<2x10xf32, #tpu.memory_space<vmem>>, vector<2x10xf32>
    tpu.vector_store %arg9[%c0_281, %c0_282], %335 {strides = array<i32>} : memref<2x10xf32, #tpu.memory_space<vmem>>, vector<2x10xf32>,
    %c0_283 = arith.constant 0 : index
    %c0_284 = arith.constant 0 : index
    %340 = vector.load %arg10[%c0_283, %c0_284] : memref<2x10xf32, #tpu.memory_space<vmem>>, vector<2x10xf32>
    tpu.vector_store %arg10[%c0_283, %c0_284], %338 {strides = array<i32>} : memref<2x10xf32, #tpu.memory_space<vmem>>, vector<2x10xf32>,
    %341 = arith.index_cast %c5_i32 : i32 to index
    %c0_285 = arith.constant 0 : index
    %c0_286 = arith.constant 0 : index
    %342 = vector.load %arg5[%341, %c0_285, %c0_286] : memref<8x2x10xf32, #tpu.memory_space<vmem>>, vector<1x2x10xf32>
    %343 = vector.shape_cast %342 : vector<1x2x10xf32> to vector<2x10xf32>
    %344 = vector.shape_cast %335 : vector<2x10xf32> to vector<1x2x10xf32>
    tpu.vector_store %arg5[%341, %c0_285, %c0_286], %344 {strides = array<i32>} : memref<8x2x10xf32, #tpu.memory_space<vmem>>, vector<1x2x10xf32>,
    %c6_i32 = arith.constant 6 : i32
    %345 = arith.index_cast %c6_i32 : i32 to index
    %c0_287 = arith.constant 0 : index
    %c0_288 = arith.constant 0 : index
    %346 = vector.load %arg2[%345, %c0_287, %c0_288] : memref<8x2x256xf32, #tpu.memory_space<vmem>>, vector<1x2x256xf32>
    %347 = vector.shape_cast %346 : vector<1x2x256xf32> to vector<2x256xf32>
    %c0_289 = arith.constant 0 : index
    %c0_290 = arith.constant 0 : index
    %348 = vector.load %arg11[%c0_289, %c0_290] : memref<2x288xf32, #tpu.memory_space<vmem>>, vector<2x256xf32>
    tpu.vector_store %arg11[%c0_289, %c0_290], %347 {strides = array<i32>} : memref<2x288xf32, #tpu.memory_space<vmem>>, vector<2x256xf32>,
    %c0_291 = arith.constant 0 : index
    %c0_292 = arith.constant 0 : index
    %349 = vector.load %arg6[%c0_291, %c0_292] : memref<2x32xf32, #tpu.memory_space<vmem>>, vector<2x32xf32>
    %c0_293 = arith.constant 0 : index
    %c256_294 = arith.constant 256 : index
    %350 = vector.load %arg11[%c0_293, %c256_294] : memref<2x288xf32, #tpu.memory_space<vmem>>, vector<2x32xf32>
    tpu.vector_store %arg11[%c0_293, %c256_294], %349 {strides = array<i32>} : memref<2x288xf32, #tpu.memory_space<vmem>>, vector<2x32xf32>,
    %c0_295 = arith.constant 0 : index
    %c0_296 = arith.constant 0 : index
    %351 = vector.load %arg7[%c0_295, %c0_296] : memref<2x32xf32, #tpu.memory_space<vmem>>, vector<2x32xf32>
    %c0_297 = arith.constant 0 : index
    %c0_298 = arith.constant 0 : index
    %352 = vector.load %arg8[%c0_297, %c0_298] : memref<2x32xf32, #tpu.memory_space<vmem>>, vector<2x32xf32>
    %cst_299 = arith.constant 0.000000e+00 : f32
    %353 = vector.broadcast %cst_299 : f32 to vector<2x32xf32>
    %354 = arith.subf %353, %351 : vector<2x32xf32>
    %355 = arith.addf %354, %352 : vector<2x32xf32>
    %cst_300 = arith.constant 1.000000e-01 : f32
    %356 = vector.broadcast %cst_300 : f32 to vector<2x32xf32>
    %357 = arith.mulf %356, %355 : vector<2x32xf32>
    %358 = arith.addf %351, %357 : vector<2x32xf32>
    %cst_301 = arith.constant -2.000000e-01 : f32
    %359 = vector.broadcast %cst_301 : f32 to vector<2x32xf32>
    %360 = arith.mulf %359, %352 : vector<2x32xf32>
    %361 = arith.addf %352, %360 : vector<2x32xf32>
    %cst_302 = arith.constant 1.000000e+00 : f32
    %362 = vector.broadcast %cst_302 : f32 to vector<2x32xf32>
    %363 = arith.subf %358, %362 : vector<2x32xf32>
    %cst_303 = arith.constant 0.000000e+00 : f32
    %364 = vector.broadcast %cst_303 : f32 to vector<2x32xf32>
    %365 = arith.cmpf ogt, %363, %364 : vector<2x32xf32>
    %366 = arith.extui %365 : vector<2x32xi1> to vector<2x32xi32>
    %367 = arith.sitofp %366 : vector<2x32xi32> to vector<2x32xf32>
    %cst_304 = arith.constant 1.000000e+00 : f32
    %368 = vector.broadcast %cst_304 : f32 to vector<2x32xf32>
    %369 = arith.subf %368, %367 : vector<2x32xf32>
    %370 = arith.mulf %369, %358 : vector<2x32xf32>
    %cst_305 = arith.constant 0.000000e+00 : f32
    %371 = vector.broadcast %cst_305 : f32 to vector<2x32xf32>
    %372 = arith.mulf %367, %371 : vector<2x32xf32>
    %373 = arith.addf %370, %372 : vector<2x32xf32>
    %c0_306 = arith.constant 0 : index
    %c0_307 = arith.constant 0 : index
    %374 = vector.load %arg11[%c0_306, %c0_307] : memref<2x288xf32, #tpu.memory_space<vmem>>, vector<2x288xf32>
    %c0_308 = arith.constant 0 : index
    %c0_309 = arith.constant 0 : index
    %375 = vector.load %arg3[%c0_308, %c0_309] : memref<288x32xf32, #tpu.memory_space<vmem>>, vector<288x32xf32>
    %cst_310 = arith.constant dense<0.000000e+00> : vector<2x32xf32>
    %376 = tpu.matmul %374, %375, %cst_310 {dimension_numbers = #tpu.dot_dimension_numbers<[1], [0], [0], [1], [0, 0, 1, 1], [], []>} : vector<2x288xf32>, vector<288x32xf32>, vector<2x32xf32> -> vector<2x32xf32>
    %377 = arith.addf %361, %376 : vector<2x32xf32>
    %c0_311 = arith.constant 0 : index
    %c0_312 = arith.constant 0 : index
    %378 = vector.load %arg6[%c0_311, %c0_312] : memref<2x32xf32, #tpu.memory_space<vmem>>, vector<2x32xf32>
    tpu.vector_store %arg6[%c0_311, %c0_312], %367 {strides = array<i32>} : memref<2x32xf32, #tpu.memory_space<vmem>>, vector<2x32xf32>,
    %c0_313 = arith.constant 0 : index
    %c0_314 = arith.constant 0 : index
    %379 = vector.load %arg7[%c0_313, %c0_314] : memref<2x32xf32, #tpu.memory_space<vmem>>, vector<2x32xf32>
    tpu.vector_store %arg7[%c0_313, %c0_314], %373 {strides = array<i32>} : memref<2x32xf32, #tpu.memory_space<vmem>>, vector<2x32xf32>,
    %c0_315 = arith.constant 0 : index
    %c0_316 = arith.constant 0 : index
    %380 = vector.load %arg8[%c0_315, %c0_316] : memref<2x32xf32, #tpu.memory_space<vmem>>, vector<2x32xf32>
    tpu.vector_store %arg8[%c0_315, %c0_316], %377 {strides = array<i32>} : memref<2x32xf32, #tpu.memory_space<vmem>>, vector<2x32xf32>,
    %c0_317 = arith.constant 0 : index
    %c0_318 = arith.constant 0 : index
    %381 = vector.load %arg4[%c0_317, %c0_318] : memref<32x10xf32, #tpu.memory_space<vmem>>, vector<32x10xf32>
    %cst_319 = arith.constant dense<0.000000e+00> : vector<2x10xf32>
    %382 = tpu.matmul %367, %381, %cst_319 {dimension_numbers = #tpu.dot_dimension_numbers<[1], [0], [0], [1], [0, 0, 1, 1], [], []>} : vector<2x32xf32>, vector<32x10xf32>, vector<2x10xf32> -> vector<2x10xf32>
    %c0_320 = arith.constant 0 : index
    %c0_321 = arith.constant 0 : index
    %383 = vector.load %arg10[%c0_320, %c0_321] : memref<2x10xf32, #tpu.memory_space<vmem>>, vector<2x10xf32>
    %384 = arith.addf %383, %382 : vector<2x10xf32>
    %c0_322 = arith.constant 0 : index
    %c0_323 = arith.constant 0 : index
    %385 = vector.load %arg9[%c0_322, %c0_323] : memref<2x10xf32, #tpu.memory_space<vmem>>, vector<2x10xf32>
    %c0_324 = arith.constant 0 : index
    %c0_325 = arith.constant 0 : index
    %386 = vector.load %arg9[%c0_324, %c0_325] : memref<2x10xf32, #tpu.memory_space<vmem>>, vector<2x10xf32>
    %cst_326 = arith.constant 0.000000e+00 : f32
    %387 = vector.broadcast %cst_326 : f32 to vector<2x10xf32>
    %388 = arith.subf %387, %386 : vector<2x10xf32>
    %389 = arith.addf %388, %384 : vector<2x10xf32>
    %cst_327 = arith.constant 1.000000e-01 : f32
    %390 = vector.broadcast %cst_327 : f32 to vector<2x10xf32>
    %391 = arith.mulf %390, %389 : vector<2x10xf32>
    %392 = arith.addf %385, %391 : vector<2x10xf32>
    %cst_328 = arith.constant -2.000000e-01 : f32
    %393 = vector.broadcast %cst_328 : f32 to vector<2x10xf32>
    %394 = arith.mulf %393, %384 : vector<2x10xf32>
    %395 = arith.addf %384, %394 : vector<2x10xf32>
    %c0_329 = arith.constant 0 : index
    %c0_330 = arith.constant 0 : index
    %396 = vector.load %arg9[%c0_329, %c0_330] : memref<2x10xf32, #tpu.memory_space<vmem>>, vector<2x10xf32>
    tpu.vector_store %arg9[%c0_329, %c0_330], %392 {strides = array<i32>} : memref<2x10xf32, #tpu.memory_space<vmem>>, vector<2x10xf32>,
    %c0_331 = arith.constant 0 : index
    %c0_332 = arith.constant 0 : index
    %397 = vector.load %arg10[%c0_331, %c0_332] : memref<2x10xf32, #tpu.memory_space<vmem>>, vector<2x10xf32>
    tpu.vector_store %arg10[%c0_331, %c0_332], %395 {strides = array<i32>} : memref<2x10xf32, #tpu.memory_space<vmem>>, vector<2x10xf32>,
    %398 = arith.index_cast %c6_i32 : i32 to index
    %c0_333 = arith.constant 0 : index
    %c0_334 = arith.constant 0 : index
    %399 = vector.load %arg5[%398, %c0_333, %c0_334] : memref<8x2x10xf32, #tpu.memory_space<vmem>>, vector<1x2x10xf32>
    %400 = vector.shape_cast %399 : vector<1x2x10xf32> to vector<2x10xf32>
    %401 = vector.shape_cast %392 : vector<2x10xf32> to vector<1x2x10xf32>
    tpu.vector_store %arg5[%398, %c0_333, %c0_334], %401 {strides = array<i32>} : memref<8x2x10xf32, #tpu.memory_space<vmem>>, vector<1x2x10xf32>,
    %c7_i32 = arith.constant 7 : i32
    %402 = arith.index_cast %c7_i32 : i32 to index
    %c0_335 = arith.constant 0 : index
    %c0_336 = arith.constant 0 : index
    %403 = vector.load %arg2[%402, %c0_335, %c0_336] : memref<8x2x256xf32, #tpu.memory_space<vmem>>, vector<1x2x256xf32>
    %404 = vector.shape_cast %403 : vector<1x2x256xf32> to vector<2x256xf32>
    %c0_337 = arith.constant 0 : index
    %c0_338 = arith.constant 0 : index
    %405 = vector.load %arg11[%c0_337, %c0_338] : memref<2x288xf32, #tpu.memory_space<vmem>>, vector<2x256xf32>
    tpu.vector_store %arg11[%c0_337, %c0_338], %404 {strides = array<i32>} : memref<2x288xf32, #tpu.memory_space<vmem>>, vector<2x256xf32>,
    %c0_339 = arith.constant 0 : index
    %c0_340 = arith.constant 0 : index
    %406 = vector.load %arg6[%c0_339, %c0_340] : memref<2x32xf32, #tpu.memory_space<vmem>>, vector<2x32xf32>
    %c0_341 = arith.constant 0 : index
    %c256_342 = arith.constant 256 : index
    %407 = vector.load %arg11[%c0_341, %c256_342] : memref<2x288xf32, #tpu.memory_space<vmem>>, vector<2x32xf32>
    tpu.vector_store %arg11[%c0_341, %c256_342], %406 {strides = array<i32>} : memref<2x288xf32, #tpu.memory_space<vmem>>, vector<2x32xf32>,
    %c0_343 = arith.constant 0 : index
    %c0_344 = arith.constant 0 : index
    %408 = vector.load %arg7[%c0_343, %c0_344] : memref<2x32xf32, #tpu.memory_space<vmem>>, vector<2x32xf32>
    %c0_345 = arith.constant 0 : index
    %c0_346 = arith.constant 0 : index
    %409 = vector.load %arg8[%c0_345, %c0_346] : memref<2x32xf32, #tpu.memory_space<vmem>>, vector<2x32xf32>
    %cst_347 = arith.constant 0.000000e+00 : f32
    %410 = vector.broadcast %cst_347 : f32 to vector<2x32xf32>
    %411 = arith.subf %410, %408 : vector<2x32xf32>
    %412 = arith.addf %411, %409 : vector<2x32xf32>
    %cst_348 = arith.constant 1.000000e-01 : f32
    %413 = vector.broadcast %cst_348 : f32 to vector<2x32xf32>
    %414 = arith.mulf %413, %412 : vector<2x32xf32>
    %415 = arith.addf %408, %414 : vector<2x32xf32>
    %cst_349 = arith.constant -2.000000e-01 : f32
    %416 = vector.broadcast %cst_349 : f32 to vector<2x32xf32>
    %417 = arith.mulf %416, %409 : vector<2x32xf32>
    %418 = arith.addf %409, %417 : vector<2x32xf32>
    %cst_350 = arith.constant 1.000000e+00 : f32
    %419 = vector.broadcast %cst_350 : f32 to vector<2x32xf32>
    %420 = arith.subf %415, %419 : vector<2x32xf32>
    %cst_351 = arith.constant 0.000000e+00 : f32
    %421 = vector.broadcast %cst_351 : f32 to vector<2x32xf32>
    %422 = arith.cmpf ogt, %420, %421 : vector<2x32xf32>
    %423 = arith.extui %422 : vector<2x32xi1> to vector<2x32xi32>
    %424 = arith.sitofp %423 : vector<2x32xi32> to vector<2x32xf32>
    %cst_352 = arith.constant 1.000000e+00 : f32
    %425 = vector.broadcast %cst_352 : f32 to vector<2x32xf32>
    %426 = arith.subf %425, %424 : vector<2x32xf32>
    %427 = arith.mulf %426, %415 : vector<2x32xf32>
    %cst_353 = arith.constant 0.000000e+00 : f32
    %428 = vector.broadcast %cst_353 : f32 to vector<2x32xf32>
    %429 = arith.mulf %424, %428 : vector<2x32xf32>
    %430 = arith.addf %427, %429 : vector<2x32xf32>
    %c0_354 = arith.constant 0 : index
    %c0_355 = arith.constant 0 : index
    %431 = vector.load %arg11[%c0_354, %c0_355] : memref<2x288xf32, #tpu.memory_space<vmem>>, vector<2x288xf32>
    %c0_356 = arith.constant 0 : index
    %c0_357 = arith.constant 0 : index
    %432 = vector.load %arg3[%c0_356, %c0_357] : memref<288x32xf32, #tpu.memory_space<vmem>>, vector<288x32xf32>
    %cst_358 = arith.constant dense<0.000000e+00> : vector<2x32xf32>
    %433 = tpu.matmul %431, %432, %cst_358 {dimension_numbers = #tpu.dot_dimension_numbers<[1], [0], [0], [1], [0, 0, 1, 1], [], []>} : vector<2x288xf32>, vector<288x32xf32>, vector<2x32xf32> -> vector<2x32xf32>
    %434 = arith.addf %418, %433 : vector<2x32xf32>
    %c0_359 = arith.constant 0 : index
    %c0_360 = arith.constant 0 : index
    %435 = vector.load %arg6[%c0_359, %c0_360] : memref<2x32xf32, #tpu.memory_space<vmem>>, vector<2x32xf32>
    tpu.vector_store %arg6[%c0_359, %c0_360], %424 {strides = array<i32>} : memref<2x32xf32, #tpu.memory_space<vmem>>, vector<2x32xf32>,
    %c0_361 = arith.constant 0 : index
    %c0_362 = arith.constant 0 : index
    %436 = vector.load %arg7[%c0_361, %c0_362] : memref<2x32xf32, #tpu.memory_space<vmem>>, vector<2x32xf32>
    tpu.vector_store %arg7[%c0_361, %c0_362], %430 {strides = array<i32>} : memref<2x32xf32, #tpu.memory_space<vmem>>, vector<2x32xf32>,
    %c0_363 = arith.constant 0 : index
    %c0_364 = arith.constant 0 : index
    %437 = vector.load %arg8[%c0_363, %c0_364] : memref<2x32xf32, #tpu.memory_space<vmem>>, vector<2x32xf32>
    tpu.vector_store %arg8[%c0_363, %c0_364], %434 {strides = array<i32>} : memref<2x32xf32, #tpu.memory_space<vmem>>, vector<2x32xf32>,
    %c0_365 = arith.constant 0 : index
    %c0_366 = arith.constant 0 : index
    %438 = vector.load %arg4[%c0_365, %c0_366] : memref<32x10xf32, #tpu.memory_space<vmem>>, vector<32x10xf32>
    %cst_367 = arith.constant dense<0.000000e+00> : vector<2x10xf32>
    %439 = tpu.matmul %424, %438, %cst_367 {dimension_numbers = #tpu.dot_dimension_numbers<[1], [0], [0], [1], [0, 0, 1, 1], [], []>} : vector<2x32xf32>, vector<32x10xf32>, vector<2x10xf32> -> vector<2x10xf32>
    %c0_368 = arith.constant 0 : index
    %c0_369 = arith.constant 0 : index
    %440 = vector.load %arg10[%c0_368, %c0_369] : memref<2x10xf32, #tpu.memory_space<vmem>>, vector<2x10xf32>
    %441 = arith.addf %440, %439 : vector<2x10xf32>
    %c0_370 = arith.constant 0 : index
    %c0_371 = arith.constant 0 : index
    %442 = vector.load %arg9[%c0_370, %c0_371] : memref<2x10xf32, #tpu.memory_space<vmem>>, vector<2x10xf32>
    %c0_372 = arith.constant 0 : index
    %c0_373 = arith.constant 0 : index
    %443 = vector.load %arg9[%c0_372, %c0_373] : memref<2x10xf32, #tpu.memory_space<vmem>>, vector<2x10xf32>
    %cst_374 = arith.constant 0.000000e+00 : f32
    %444 = vector.broadcast %cst_374 : f32 to vector<2x10xf32>
    %445 = arith.subf %444, %443 : vector<2x10xf32>
    %446 = arith.addf %445, %441 : vector<2x10xf32>
    %cst_375 = arith.constant 1.000000e-01 : f32
    %447 = vector.broadcast %cst_375 : f32 to vector<2x10xf32>
    %448 = arith.mulf %447, %446 : vector<2x10xf32>
    %449 = arith.addf %442, %448 : vector<2x10xf32>
    %cst_376 = arith.constant -2.000000e-01 : f32
    %450 = vector.broadcast %cst_376 : f32 to vector<2x10xf32>
    %451 = arith.mulf %450, %441 : vector<2x10xf32>
    %452 = arith.addf %441, %451 : vector<2x10xf32>
    %c0_377 = arith.constant 0 : index
    %c0_378 = arith.constant 0 : index
    %453 = vector.load %arg9[%c0_377, %c0_378] : memref<2x10xf32, #tpu.memory_space<vmem>>, vector<2x10xf32>
    tpu.vector_store %arg9[%c0_377, %c0_378], %449 {strides = array<i32>} : memref<2x10xf32, #tpu.memory_space<vmem>>, vector<2x10xf32>,
    %c0_379 = arith.constant 0 : index
    %c0_380 = arith.constant 0 : index
    %454 = vector.load %arg10[%c0_379, %c0_380] : memref<2x10xf32, #tpu.memory_space<vmem>>, vector<2x10xf32>
    tpu.vector_store %arg10[%c0_379, %c0_380], %452 {strides = array<i32>} : memref<2x10xf32, #tpu.memory_space<vmem>>, vector<2x10xf32>,
    %455 = arith.index_cast %c7_i32 : i32 to index
    %c0_381 = arith.constant 0 : index
    %c0_382 = arith.constant 0 : index
    %456 = vector.load %arg5[%455, %c0_381, %c0_382] : memref<8x2x10xf32, #tpu.memory_space<vmem>>, vector<1x2x10xf32>
    %457 = vector.shape_cast %456 : vector<1x2x10xf32> to vector<2x10xf32>
    %458 = vector.shape_cast %449 : vector<2x10xf32> to vector<1x2x10xf32>
    tpu.vector_store %arg5[%455, %c0_381, %c0_382], %458 {strides = array<i32>} : memref<8x2x10xf32, #tpu.memory_space<vmem>>, vector<1x2x10xf32>,
    %c8_i32 = arith.constant 8 : i32
    return
  }
  func.func @transform_0(%arg0: i32, %arg1: i32) -> (i32, i32, i32) {
    %c0_i32 = arith.constant 0 : i32
    %c0_i32_0 = arith.constant 0 : i32
    return %arg1, %arg0, %c0_i32 : i32, i32, i32
  }
  func.func @transform_1(%arg0: i32, %arg1: i32) -> (i32, i32) {
    %c0_i32 = arith.constant 0 : i32
    %c0_i32_0 = arith.constant 0 : i32
    %c0_i32_1 = arith.constant 0 : i32
    return %c0_i32, %c0_i32_0 : i32, i32
  }
  func.func @transform_2(%arg0: i32, %arg1: i32) -> (i32, i32) {
    %c0_i32 = arith.constant 0 : i32
    %c0_i32_0 = arith.constant 0 : i32
    %c0_i32_1 = arith.constant 0 : i32
    return %c0_i32, %c0_i32_0 : i32, i32
  }
  func.func @transform_3(%arg0: i32, %arg1: i32) -> (i32, i32, i32) {
    %c0_i32 = arith.constant 0 : i32
    %c0_i32_0 = arith.constant 0 : i32
    return %arg1, %arg0, %c0_i32 : i32, i32, i32
  }
}

</mosaic_0001>

<llo_original>
// kernel: tpu_custom_call.1
$region0: #{tpu_custom_call.1}
  #allocation0 [shape = 'u32[]', space=smem, size = 0x4, offset = 0x4, fixed_abs, tag = 'smem constant byte address 0x4 - core index']
  #allocation1 [shape = 'u32[144,128]{1,0:T(1,128)}', space=vmem, size = 0x12000, scoped, tag = 'internal scratch']
  #allocation2 [shape = 'f32[2,32]{1,0:T(2,128)}', space=vmem, size = 0x400, scoped, tag = 'scratch operand']
  #allocation3 [shape = 'f32[2,32]{1,0:T(2,128)}', space=vmem, size = 0x400, scoped, tag = 'scratch operand']
  #allocation4 [shape = 'f32[2,32]{1,0:T(2,128)}', space=vmem, size = 0x400, scoped, tag = 'scratch operand']
  #allocation5 [shape = 'f32[2,10]{1,0:T(2,128)}', space=vmem, size = 0x400, scoped, tag = 'scratch operand']
  #allocation6 [shape = 'f32[2,10]{1,0:T(2,128)}', space=vmem, size = 0x400, scoped, tag = 'scratch operand']
  #allocation7 [shape = 'f32[2,288]{1,0:T(2,128)}', space=vmem, size = 0xc00, scoped, tag = 'scratch operand']
  %s0 = inlined_call_operand.vmem [shape: f32[8,2,256], index: 0, kind: input, shape index: {}]
  %s1 = inlined_call_operand.vmem [shape: f32[288,32], index: 1, kind: input, shape index: {}]
  %s2 = inlined_call_operand.vmem [shape: f32[32,10], index: 2, kind: input, shape index: {}]
  %s3 = inlined_call_operand.hbm [shape: f32[8,2,10], index: 3, kind: output, shape index: {}]
  %s4 = sld [smem:[#allocation0]]
  $region26: #{tpu_custom_call.1} parent=0
    _
  %s6 = ssub.s32 1, %s4
  %s7 = scalar_select 0, %s6, %s4
  $region1: #{tpu_custom_call.1} parent=0
    #allocation8 [shape = 'u8[8192]{0}', space=vmem, size = 0x2000, scoped, tag = 'output window, operand 0, single buffered']
    #allocation9 [shape = 's32[1]{0}', space=sflag, size = 0x4, scoped, tag = 'scoped memory for tpu_custom_call.1']
    %8 = vsyncpa [#allocation9], 0
    // Predicated region
    $region2: #{tpu_custom_call.1} parent=1 // pred_check
      _
    $region3: #{tpu_custom_call.1} parent=1 // pred_check_branch
      %10 = sbr.rel (0) target = $region5
    $region4: #{tpu_custom_call.1} parent=1 // pred_region
      _
    $region5: #{tpu_custom_call.1} parent=1 // pred_fallthru
      _
    // Predicated region
    $region6: #{tpu_custom_call.1} parent=1 // pred_check
      _
    $region7: #{tpu_custom_call.1} parent=1 // pred_check_branch
      %12 = sbr.rel (0) target = $region9
    $region8: #{tpu_custom_call.1} parent=1 // pred_region
      _
    $region9: #{tpu_custom_call.1} parent=1 // pred_fallthru
      _
    // Predicated region
    $region10: #{tpu_custom_call.1} parent=1 // pred_check
      _
    $region11: #{tpu_custom_call.1} parent=1 // pred_check_branch
      %14 = sbr.rel (0) target = $region13
    $region12: #{tpu_custom_call.1} parent=1 // pred_region
      _
    $region13: #{tpu_custom_call.1} parent=1 // pred_fallthru
      _
    %p15 = scmp.eq.s32.totalorder 0, 0
    // Predicated region
    $region14: #{tpu_custom_call.1} parent=1 // pred_check
      %p16 = pneg %p15
    $region15: #{tpu_custom_call.1} parent=1 // pred_check_branch
      %18 = sbr.rel (%p16) target = $region17
    $region16: #{tpu_custom_call.1} parent=1 // pred_region
      %vm19 = vcmask 254976
      %20 = vst.msk [vmem:[#allocation2] sm:$0x3] %vm19, 0.0
      %21 = vst.msk [vmem:[#allocation3] sm:$0x3] %vm19, 0.0
      %22 = vst.msk [vmem:[#allocation4] sm:$0x3] %vm19, 0.0
      %vm23 = vcmask 74752
      %24 = vst.msk [vmem:[#allocation5] sm:$0x3] %vm23, 0.0
      %25 = vst.msk [vmem:[#allocation6] sm:$0x3] %vm23, 0.0
    $region17: #{tpu_custom_call.1} parent=1 // pred_fallthru
      _
    %v26 = vld [vmem:[%s0] sm:$0xf]
    %27 = vst [vmem:[#allocation7] sm:$0xf] %v26
    %v28 = vld [vmem:[#allocation2] sm:$0x3]
    %vm29 = vcmask 254976
    %30 = vst.msk [vmem:[#allocation7 + $0x4] sm:$0x3] %vm29, %v28
    %v31 = vld [vmem:[#allocation3] sm:$0x3]
    %v32 = vld [vmem:[#allocation4] sm:$0x3]
    %v33 = vsub.f32 0.0, %v31
    %v34 = vadd.f32 %v33, %v32
    %v35 = vmul.f32 %v34, 0.1
    %v36 = vadd.f32 %v31, %v35
    %v37 = vmul.f32 %v32, -0.2
    %v38 = vadd.f32 %v32, %v37
    %v39 = vsub.f32 %v36, 1.0
    %vm40 = vcmp.gt.f32.partialorder %v39, 0.0
    %v41 = vsel %vm40, 1, 0
    %v42 = vcvt.s32.f32 %v41
    %v43 = vsub.f32 1.0, %v42
    %v44 = vmul.f32 %v43, %v36
    %v45 = vmul.f32 %v42, 0.0
    %v46 = vadd.f32 %v44, %v45
    %v47 = vld [vmem:[#allocation7] sm:$0x3f]
    %v48 = vld [vmem:[%s1] sm:$0xff]
    %v49 = vld [vmem:[%s1 + $0x8] sm:$0xff]
    %v50 = vld [vmem:[%s1 + $0x10] sm:$0xff]
    %v51 = vld [vmem:[%s1 + $0x18] sm:$0xff]
    %v52 = vld [vmem:[%s1 + $0x20] sm:$0xff]
    %v53 = vld [vmem:[%s1 + $0x28] sm:$0xff]
    %v54 = vld [vmem:[%s1 + $0x30] sm:$0xff]
    %v55 = vld [vmem:[%s1 + $0x38] sm:$0xff]
    %v56 = vld [vmem:[%s1 + $0x40] sm:$0xff]
    %v57 = vld [vmem:[%s1 + $0x48] sm:$0xff]
    %v58 = vld [vmem:[%s1 + $0x50] sm:$0xff]
    %v59 = vld [vmem:[%s1 + $0x58] sm:$0xff]
    %v60 = vld [vmem:[%s1 + $0x60] sm:$0xff]
    %v61 = vld [vmem:[%s1 + $0x68] sm:$0xff]
    %v62 = vld [vmem:[%s1 + $0x70] sm:$0xff]
    %v63 = vld [vmem:[%s1 + $0x78] sm:$0xff]
    %v64 = vld [vmem:[%s1 + $0x80] sm:$0xff]
    %v65 = vld [vmem:[%s1 + $0x88] sm:$0xff]
    %v66 = vld [vmem:[%s1 + $0x90] sm:$0xff]
    %v67 = vld [vmem:[%s1 + $0x98] sm:$0xff]
    %v68 = vld [vmem:[%s1 + $0xa0] sm:$0xff]
    %v69 = vld [vmem:[%s1 + $0xa8] sm:$0xff]
    %v70 = vld [vmem:[%s1 + $0xb0] sm:$0xff]
    %v71 = vld [vmem:[%s1 + $0xb8] sm:$0xff]
    %v72 = vld [vmem:[%s1 + $0xc0] sm:$0xff]
    %v73 = vld [vmem:[%s1 + $0xc8] sm:$0xff]
    %v74 = vld [vmem:[%s1 + $0xd0] sm:$0xff]
    %v75 = vld [vmem:[%s1 + $0xd8] sm:$0xff]
    %v76 = vld [vmem:[%s1 + $0xe0] sm:$0xff]
    %v77 = vld [vmem:[%s1 + $0xe8] sm:$0xff]
    %v78 = vld [vmem:[%s1 + $0xf0] sm:$0xff]
    %v79 = vld [vmem:[%s1 + $0xf8] sm:$0xff]
    %v80 = vld [vmem:[%s1 + $0x100] sm:$0xff]
    %v81 = vld [vmem:[%s1 + $0x108] sm:$0xff]
    %v82 = vld [vmem:[%s1 + $0x110] sm:$0xff]
    %v83 = vld [vmem:[%s1 + $0x118] sm:$0xff]
    %v85 = vcombine.high %v47, %v47
    %v87 = vunpack.c.l.s4 1983009808
    %v88 = vunpack.c.0.s8 %v87
    %v89 = vlaneseq
    %v90 = vshrl.u32 %v89, 7
    %v91 = vsub.s32 %v88, %v90
    %v92 = vrot.slane %v47, %v91
    %v94 = vunpack.c.l.s4 1983009808
    %v95 = vunpack.c.0.s8 %v94
    %v96 = vlaneseq
    %v97 = vshrl.u32 %v96, 7
    %v98 = vsub.s32 %v95, %v97
    %v99 = vrot.slane %v85, %v98
    %v100 = vcombine.high %v92, %v92
    %vm103 = vcmask 261120
    %v104 = vsel %vm103, %v99, 0
    %106 = vmatprep.subr.mxu0 0.0
    %107 = vmatpush1.msra.mxu0 %v63
    %108 = vmatprep.subr.mxu0 0.0
    %109 = vmatpush1.msra.mxu0 %v62
    %110 = vmatprep.subr.mxu0 0.0
    %111 = vmatpush1.msra.mxu0 %v61
    %112 = vmatprep.subr.mxu0 0.0
    %113 = vmatpush1.msra.mxu0 %v60
    %114 = vmatprep.subr.mxu0 0.0
    %115 = vmatpush1.msra.mxu0 %v59
    %116 = vmatprep.subr.mxu0 0.0
    %117 = vmatpush1.msra.mxu0 %v58
    %118 = vmatprep.subr.mxu0 0.0
    %119 = vmatpush1.msra.mxu0 %v57
    %120 = vmatprep.subr.mxu0 0.0
    %121 = vmatpush1.msra.mxu0 %v56
    %122 = vmatprep.subr.mxu0 0.0
    %123 = vmatpush1.msra.mxu0 %v55
    %124 = vmatprep.subr.mxu0 0.0
    %125 = vmatpush1.msra.mxu0 %v54
    %126 = vmatprep.subr.mxu0 0.0
    %127 = vmatpush1.msra.mxu0 %v53
    %128 = vmatprep.subr.mxu0 0.0
    %129 = vmatpush1.msra.mxu0 %v52
    %130 = vmatprep.subr.mxu0 0.0
    %131 = vmatpush1.msra.mxu0 %v51
    %132 = vmatprep.subr.mxu0 0.0
    %133 = vmatpush1.msra.mxu0 %v50
    %134 = vmatprep.subr.mxu0 0.0
    %135 = vmatpush1.msra.mxu0 %v49
    %136 = vmatprep.subr.mxu0 0.0
    %137 = vmatpush1.msra.mxu0 %v48
    %138 = vmatprep.subr.mxu0 0.0
    %139 = vmatpush2.msra.mxu0 %v79
    %140 = vmatprep.subr.mxu0 0.0
    %141 = vmatpush2.msra.mxu0 %v78
    %142 = vmatprep.subr.mxu0 0.0
    %143 = vmatpush2.msra.mxu0 %v77
    %144 = vmatprep.subr.mxu0 0.0
    %145 = vmatpush2.msra.mxu0 %v76
    %146 = vmatprep.subr.mxu0 0.0
    %147 = vmatpush2.msra.mxu0 %v75
    %148 = vmatprep.subr.mxu0 0.0
    %149 = vmatpush2.msra.mxu0 %v74
    %150 = vmatprep.subr.mxu0 0.0
    %151 = vmatpush2.msra.mxu0 %v73
    %152 = vmatprep.subr.mxu0 0.0
    %153 = vmatpush2.msra.mxu0 %v72
    %154 = vmatprep.subr.mxu0 0.0
    %155 = vmatpush2.msra.mxu0 %v71
    %156 = vmatprep.subr.mxu0 0.0
    %157 = vmatpush2.msra.mxu0 %v70
    %158 = vmatprep.subr.mxu0 0.0
    %159 = vmatpush2.msra.mxu0 %v69
    %160 = vmatprep.subr.mxu0 0.0
    %161 = vmatpush2.msra.mxu0 %v68
    %162 = vmatprep.subr.mxu0 0.0
    %163 = vmatpush2.msra.mxu0 %v67
    %164 = vmatprep.subr.mxu0 0.0
    %165 = vmatpush2.msra.mxu0 %v66
    %166 = vmatprep.subr.mxu0 0.0
    %167 = vmatpush2.msra.mxu0 %v65
    %168 = vmatprep.subr.mxu0 0.0
    %169 = vmatpush2.msra.mxu0 %v64
    %170 = vmatprep.mubr.f32.mxu0 %v100
    %171 = vmatmul.mubr.f32.gmra.mxu0 %v92
    %v172 = vpop.f32.mrf.mxu0
    %v173 = vadd.f32 0.0, %v172
    %v174 = vpop.f32.mrf.mxu0
    %175 = vdwg.mxu0
    %176 = vmatprep.subr.mxu0 0.0
    %177 = vmatpush1.msra.mxu0 0.0
    %178 = vmatprep.subr.mxu0 0.0
    %179 = vmatpush1.msra.mxu0 0.0
    %180 = vmatprep.subr.mxu0 0.0
    %181 = vmatpush1.msra.mxu0 0.0
    %182 = vmatprep.subr.mxu0 0.0
    %183 = vmatpush1.msra.mxu0 0.0
    %184 = vmatprep.subr.mxu0 0.0
    %185 = vmatpush1.msra.mxu0 0.0
    %186 = vmatprep.subr.mxu0 0.0
    %187 = vmatpush1.msra.mxu0 0.0
    %188 = vmatprep.subr.mxu0 0.0
    %189 = vmatpush1.msra.mxu0 0.0
    %190 = vmatprep.subr.mxu0 0.0
    %191 = vmatpush1.msra.mxu0 0.0
    %192 = vmatprep.subr.mxu0 0.0
    %193 = vmatpush1.msra.mxu0 0.0
    %194 = vmatprep.subr.mxu0 0.0
    %195 = vmatpush1.msra.mxu0 0.0
    %196 = vmatprep.subr.mxu0 0.0
    %197 = vmatpush1.msra.mxu0 0.0
    %198 = vmatprep.subr.mxu0 0.0
    %199 = vmatpush1.msra.mxu0 0.0
    %200 = vmatprep.subr.mxu0 0.0
    %201 = vmatpush1.msra.mxu0 %v83
    %202 = vmatprep.subr.mxu0 0.0
    %203 = vmatpush1.msra.mxu0 %v82
    %204 = vmatprep.subr.mxu0 0.0
    %205 = vmatpush1.msra.mxu0 %v81
    %206 = vmatprep.subr.mxu0 0.0
    %207 = vmatpush1.msra.mxu0 %v80
    %208 = vmatprep.subr.mxu0 0.0
    %209 = vmatpush2.msra.mxu0 0.0
    %210 = vmatprep.subr.mxu0 0.0
    %211 = vmatpush2.msra.mxu0 0.0
    %212 = vmatprep.subr.mxu0 0.0
    %213 = vmatpush2.msra.mxu0 0.0
    %214 = vmatprep.subr.mxu0 0.0
    %215 = vmatpush2.msra.mxu0 0.0
    %216 = vmatprep.subr.mxu0 0.0
    %217 = vmatpush2.msra.mxu0 0.0
    %218 = vmatprep.subr.mxu0 0.0
    %219 = vmatpush2.msra.mxu0 0.0
    %220 = vmatprep.subr.mxu0 0.0
    %221 = vmatpush2.msra.mxu0 0.0
    %222 = vmatprep.subr.mxu0 0.0
    %223 = vmatpush2.msra.mxu0 0.0
    %224 = vmatprep.subr.mxu0 0.0
    %225 = vmatpush2.msra.mxu0 0.0
    %226 = vmatprep.subr.mxu0 0.0
    %227 = vmatpush2.msra.mxu0 0.0
    %228 = vmatprep.subr.mxu0 0.0
    %229 = vmatpush2.msra.mxu0 0.0
    %230 = vmatprep.subr.mxu0 0.0
    %231 = vmatpush2.msra.mxu0 0.0
    %232 = vmatprep.subr.mxu0 0.0
    %233 = vmatpush2.msra.mxu0 0.0
    %234 = vmatprep.subr.mxu0 0.0
    %235 = vmatpush2.msra.mxu0 0.0
    %236 = vmatprep.subr.mxu0 0.0
    %237 = vmatpush2.msra.mxu0 0.0
    %238 = vmatprep.subr.mxu0 0.0
    %239 = vmatpush2.msra.mxu0 0.0
    %240 = vmatprep.mubr.f32.mxu0 0.0
    %241 = vmatmul.mubr.f32.gmra.mxu0 %v104
    %v242 = vpop.f32.mrf.mxu0
    %v243 = vadd.f32 %v173, %v242
    %v244 = vpop.f32.mrf.mxu0
    %245 = vdwg.mxu0
    %v246 = vadd.f32 %v38, %v243
    %247 = vst.msk [vmem:[#allocation2] sm:$0x3] %vm29, %v42
    %248 = vst.msk [vmem:[#allocation3] sm:$0x3] %vm29, %v46
    %249 = vst.msk [vmem:[#allocation4] sm:$0x3] %vm29, %v246
    %v250 = vld [vmem:[%s2] sm:$0xff]
    %v251 = vld [vmem:[%s2 + $0x8] sm:$0xff]
    %v252 = vld [vmem:[%s2 + $0x10] sm:$0xff]
    %v253 = vld [vmem:[%s2 + $0x18] sm:$0xff]
    %v255 = vsel %vm103, %v42, 0
    %257 = vmatprep.subr.mxu0 0.0
    %258 = vmatpush1.msra.mxu0 0.0
    %259 = vmatprep.subr.mxu0 0.0
    %260 = vmatpush1.msra.mxu0 0.0
    %261 = vmatprep.subr.mxu0 0.0
    %262 = vmatpush1.msra.mxu0 0.0
    %263 = vmatprep.subr.mxu0 0.0
    %264 = vmatpush1.msra.mxu0 0.0
    %265 = vmatprep.subr.mxu0 0.0
    %266 = vmatpush1.msra.mxu0 0.0
    %267 = vmatprep.subr.mxu0 0.0
    %268 = vmatpush1.msra.mxu0 0.0
    %269 = vmatprep.subr.mxu0 0.0
    %270 = vmatpush1.msra.mxu0 0.0
    %271 = vmatprep.subr.mxu0 0.0
    %272 = vmatpush1.msra.mxu0 0.0
    %273 = vmatprep.subr.mxu0 0.0
    %274 = vmatpush1.msra.mxu0 0.0
    %275 = vmatprep.subr.mxu0 0.0
    %276 = vmatpush1.msra.mxu0 0.0
    %277 = vmatprep.subr.mxu0 0.0
    %278 = vmatpush1.msra.mxu0 0.0
    %279 = vmatprep.subr.mxu0 0.0
    %280 = vmatpush1.msra.mxu0 0.0
    %281 = vmatprep.subr.mxu0 0.0
    %282 = vmatpush1.msra.mxu0 %v253
    %283 = vmatprep.subr.mxu0 0.0
    %284 = vmatpush1.msra.mxu0 %v252
    %285 = vmatprep.subr.mxu0 0.0
    %286 = vmatpush1.msra.mxu0 %v251
    %287 = vmatprep.subr.mxu0 0.0
    %288 = vmatpush1.msra.mxu0 %v250
    %289 = vmatprep.subr.mxu0 0.0
    %290 = vmatpush2.msra.mxu0 0.0
    %291 = vmatprep.subr.mxu0 0.0
    %292 = vmatpush2.msra.mxu0 0.0
    %293 = vmatprep.subr.mxu0 0.0
    %294 = vmatpush2.msra.mxu0 0.0
    %295 = vmatprep.subr.mxu0 0.0
    %296 = vmatpush2.msra.mxu0 0.0
    %297 = vmatprep.subr.mxu0 0.0
    %298 = vmatpush2.msra.mxu0 0.0
    %299 = vmatprep.subr.mxu0 0.0
    %300 = vmatpush2.msra.mxu0 0.0
    %301 = vmatprep.subr.mxu0 0.0
    %302 = vmatpush2.msra.mxu0 0.0
    %303 = vmatprep.subr.mxu0 0.0
    %304 = vmatpush2.msra.mxu0 0.0
    %305 = vmatprep.subr.mxu0 0.0
    %306 = vmatpush2.msra.mxu0 0.0
    %307 = vmatprep.subr.mxu0 0.0
    %308 = vmatpush2.msra.mxu0 0.0
    %309 = vmatprep.subr.mxu0 0.0
    %310 = vmatpush2.msra.mxu0 0.0
    %311 = vmatprep.subr.mxu0 0.0
    %312 = vmatpush2.msra.mxu0 0.0
    %313 = vmatprep.subr.mxu0 0.0
    %314 = vmatpush2.msra.mxu0 0.0
    %315 = vmatprep.subr.mxu0 0.0
    %316 = vmatpush2.msra.mxu0 0.0
    %317 = vmatprep.subr.mxu0 0.0
    %318 = vmatpush2.msra.mxu0 0.0
    %319 = vmatprep.subr.mxu0 0.0
    %320 = vmatpush2.msra.mxu0 0.0
    %321 = vmatprep.mubr.f32.mxu0 0.0
    %322 = vmatmul.mubr.f32.gmra.mxu0 %v255
    %v323 = vpop.f32.mrf.mxu0
    %v324 = vadd.f32 0.0, %v323
    %v325 = vpop.f32.mrf.mxu0
    %326 = vdwg.mxu0
    %v327 = vld [vmem:[#allocation6] sm:$0x3]
    %v328 = vadd.f32 %v327, %v324
    %v329 = vld [vmem:[#allocation5] sm:$0x3]
    %v330 = vsub.f32 0.0, %v329
    %v331 = vadd.f32 %v330, %v328
    %v332 = vmul.f32 %v331, 0.1
    %v333 = vadd.f32 %v329, %v332
    %v334 = vmul.f32 %v328, -0.2
    %v335 = vadd.f32 %v328, %v334
    %vm336 = vcmask 74752
    %337 = vst.msk [vmem:[#allocation5] sm:$0x3] %vm336, %v333
    %338 = vst.msk [vmem:[#allocation6] sm:$0x3] %vm336, %v335
    %339 = vst.msk [vmem:[#allocation8] sm:$0x3] %vm336, %v333
    %s340 = scalar_lea.vmem %s0, 4
    %v341 = vld [vmem:[%s340] sm:$0xf]
    %342 = vst [vmem:[#allocation7] sm:$0xf] %v341
    %v343 = vld [vmem:[#allocation2] sm:$0x3]
    %344 = vst.msk [vmem:[#allocation7 + $0x4] sm:$0x3] %vm29, %v343
    %v345 = vld [vmem:[#allocation3] sm:$0x3]
    %v346 = vld [vmem:[#allocation4] sm:$0x3]
    %v347 = vsub.f32 0.0, %v345
    %v348 = vadd.f32 %v347, %v346
    %v349 = vmul.f32 %v348, 0.1
    %v350 = vadd.f32 %v345, %v349
    %v351 = vmul.f32 %v346, -0.2
    %v352 = vadd.f32 %v346, %v351
    %v353 = vsub.f32 %v350, 1.0
    %vm354 = vcmp.gt.f32.partialorder %v353, 0.0
    %v355 = vsel %vm354, 1, 0
    %v356 = vcvt.s32.f32 %v355
    %v357 = vsub.f32 1.0, %v356
    %v358 = vmul.f32 %v357, %v350
    %v359 = vmul.f32 %v356, 0.0
    %v360 = vadd.f32 %v358, %v359
    %v361 = vld [vmem:[#allocation7] sm:$0x3f]
    %v362 = vld [vmem:[%s1] sm:$0xff]
    %v363 = vld [vmem:[%s1 + $0x8] sm:$0xff]
    %v364 = vld [vmem:[%s1 + $0x10] sm:$0xff]
    %v365 = vld [vmem:[%s1 + $0x18] sm:$0xff]
    %v366 = vld [vmem:[%s1 + $0x20] sm:$0xff]
    %v367 = vld [vmem:[%s1 + $0x28] sm:$0xff]
    %v368 = vld [vmem:[%s1 + $0x30] sm:$0xff]
    %v369 = vld [vmem:[%s1 + $0x38] sm:$0xff]
    %v370 = vld [vmem:[%s1 + $0x40] sm:$0xff]
    %v371 = vld [vmem:[%s1 + $0x48] sm:$0xff]
    %v372 = vld [vmem:[%s1 + $0x50] sm:$0xff]
    %v373 = vld [vmem:[%s1 + $0x58] sm:$0xff]
    %v374 = vld [vmem:[%s1 + $0x60] sm:$0xff]
    %v375 = vld [vmem:[%s1 + $0x68] sm:$0xff]
    %v376 = vld [vmem:[%s1 + $0x70] sm:$0xff]
    %v377 = vld [vmem:[%s1 + $0x78] sm:$0xff]
    %v378 = vld [vmem:[%s1 + $0x80] sm:$0xff]
    %v379 = vld [vmem:[%s1 + $0x88] sm:$0xff]
    %v380 = vld [vmem:[%s1 + $0x90] sm:$0xff]
    %v381 = vld [vmem:[%s1 + $0x98] sm:$0xff]
    %v382 = vld [vmem:[%s1 + $0xa0] sm:$0xff]
    %v383 = vld [vmem:[%s1 + $0xa8] sm:$0xff]
    %v384 = vld [vmem:[%s1 + $0xb0] sm:$0xff]
    %v385 = vld [vmem:[%s1 + $0xb8] sm:$0xff]
    %v386 = vld [vmem:[%s1 + $0xc0] sm:$0xff]
    %v387 = vld [vmem:[%s1 + $0xc8] sm:$0xff]
    %v388 = vld [vmem:[%s1 + $0xd0] sm:$0xff]
    %v389 = vld [vmem:[%s1 + $0xd8] sm:$0xff]
    %v390 = vld [vmem:[%s1 + $0xe0] sm:$0xff]
    %v391 = vld [vmem:[%s1 + $0xe8] sm:$0xff]
    %v392 = vld [vmem:[%s1 + $0xf0] sm:$0xff]
    %v393 = vld [vmem:[%s1 + $0xf8] sm:$0xff]
    %v394 = vld [vmem:[%s1 + $0x100] sm:$0xff]
    %v395 = vld [vmem:[%s1 + $0x108] sm:$0xff]
    %v396 = vld [vmem:[%s1 + $0x110] sm:$0xff]
    %v397 = vld [vmem:[%s1 + $0x118] sm:$0xff]
    %v399 = vcombine.high %v361, %v361
    %v401 = vunpack.c.l.s4 1983009808
    %v402 = vunpack.c.0.s8 %v401
    %v403 = vlaneseq
    %v404 = vshrl.u32 %v403, 7
    %v405 = vsub.s32 %v402, %v404
    %v406 = vrot.slane %v361, %v405
    %v408 = vunpack.c.l.s4 1983009808
    %v409 = vunpack.c.0.s8 %v408
    %v410 = vlaneseq
    %v411 = vshrl.u32 %v410, 7
    %v412 = vsub.s32 %v409, %v411
    %v413 = vrot.slane %v399, %v412
    %v414 = vcombine.high %v406, %v406
    %v417 = vsel %vm103, %v413, 0
    %419 = vmatprep.subr.mxu0 0.0
    %420 = vmatpush1.msra.mxu0 %v377
    %421 = vmatprep.subr.mxu0 0.0
    %422 = vmatpush1.msra.mxu0 %v376
    %423 = vmatprep.subr.mxu0 0.0
    %424 = vmatpush1.msra.mxu0 %v375
    %425 = vmatprep.subr.mxu0 0.0
    %426 = vmatpush1.msra.mxu0 %v374
    %427 = vmatprep.subr.mxu0 0.0
    %428 = vmatpush1.msra.mxu0 %v373
    %429 = vmatprep.subr.mxu0 0.0
    %430 = vmatpush1.msra.mxu0 %v372
    %431 = vmatprep.subr.mxu0 0.0
    %432 = vmatpush1.msra.mxu0 %v371
    %433 = vmatprep.subr.mxu0 0.0
    %434 = vmatpush1.msra.mxu0 %v370
    %435 = vmatprep.subr.mxu0 0.0
    %436 = vmatpush1.msra.mxu0 %v369
    %437 = vmatprep.subr.mxu0 0.0
    %438 = vmatpush1.msra.mxu0 %v368
    %439 = vmatprep.subr.mxu0 0.0
    %440 = vmatpush1.msra.mxu0 %v367
    %441 = vmatprep.subr.mxu0 0.0
    %442 = vmatpush1.msra.mxu0 %v366
    %443 = vmatprep.subr.mxu0 0.0
    %444 = vmatpush1.msra.mxu0 %v365
    %445 = vmatprep.subr.mxu0 0.0
    %446 = vmatpush1.msra.mxu0 %v364
    %447 = vmatprep.subr.mxu0 0.0
    %448 = vmatpush1.msra.mxu0 %v363
    %449 = vmatprep.subr.mxu0 0.0
    %450 = vmatpush1.msra.mxu0 %v362
    %451 = vmatprep.subr.mxu0 0.0
    %452 = vmatpush2.msra.mxu0 %v393
    %453 = vmatprep.subr.mxu0 0.0
    %454 = vmatpush2.msra.mxu0 %v392
    %455 = vmatprep.subr.mxu0 0.0
    %456 = vmatpush2.msra.mxu0 %v391
    %457 = vmatprep.subr.mxu0 0.0
    %458 = vmatpush2.msra.mxu0 %v390
    %459 = vmatprep.subr.mxu0 0.0
    %460 = vmatpush2.msra.mxu0 %v389
    %461 = vmatprep.subr.mxu0 0.0
    %462 = vmatpush2.msra.mxu0 %v388
    %463 = vmatprep.subr.mxu0 0.0
    %464 = vmatpush2.msra.mxu0 %v387
    %465 = vmatprep.subr.mxu0 0.0
    %466 = vmatpush2.msra.mxu0 %v386
    %467 = vmatprep.subr.mxu0 0.0
    %468 = vmatpush2.msra.mxu0 %v385
    %469 = vmatprep.subr.mxu0 0.0
    %470 = vmatpush2.msra.mxu0 %v384
    %471 = vmatprep.subr.mxu0 0.0
    %472 = vmatpush2.msra.mxu0 %v383
    %473 = vmatprep.subr.mxu0 0.0
    %474 = vmatpush2.msra.mxu0 %v382
    %475 = vmatprep.subr.mxu0 0.0
    %476 = vmatpush2.msra.mxu0 %v381
    %477 = vmatprep.subr.mxu0 0.0
    %478 = vmatpush2.msra.mxu0 %v380
    %479 = vmatprep.subr.mxu0 0.0
    %480 = vmatpush2.msra.mxu0 %v379
    %481 = vmatprep.subr.mxu0 0.0
    %482 = vmatpush2.msra.mxu0 %v378
    %483 = vmatprep.mubr.f32.mxu0 %v414
    %484 = vmatmul.mubr.f32.gmra.mxu0 %v406
    %v485 = vpop.f32.mrf.mxu0
    %v486 = vadd.f32 0.0, %v485
    %v487 = vpop.f32.mrf.mxu0
    %488 = vdwg.mxu0
    %489 = vmatprep.subr.mxu0 0.0
    %490 = vmatpush1.msra.mxu0 0.0
    %491 = vmatprep.subr.mxu0 0.0
    %492 = vmatpush1.msra.mxu0 0.0
    %493 = vmatprep.subr.mxu0 0.0
    %494 = vmatpush1.msra.mxu0 0.0
    %495 = vmatprep.subr.mxu0 0.0
    %496 = vmatpush1.msra.mxu0 0.0
    %497 = vmatprep.subr.mxu0 0.0
    %498 = vmatpush1.msra.mxu0 0.0
    %499 = vmatprep.subr.mxu0 0.0
    %500 = vmatpush1.msra.mxu0 0.0
    %501 = vmatprep.subr.mxu0 0.0
    %502 = vmatpush1.msra.mxu0 0.0
    %503 = vmatprep.subr.mxu0 0.0
    %504 = vmatpush1.msra.mxu0 0.0
    %505 = vmatprep.subr.mxu0 0.0
    %506 = vmatpush1.msra.mxu0 0.0
    %507 = vmatprep.subr.mxu0 0.0
    %508 = vmatpush1.msra.mxu0 0.0
    %509 = vmatprep.subr.mxu0 0.0
    %510 = vmatpush1.msra.mxu0 0.0
    %511 = vmatprep.subr.mxu0 0.0
    %512 = vmatpush1.msra.mxu0 0.0
    %513 = vmatprep.subr.mxu0 0.0
    %514 = vmatpush1.msra.mxu0 %v397
    %515 = vmatprep.subr.mxu0 0.0
    %516 = vmatpush1.msra.mxu0 %v396
    %517 = vmatprep.subr.mxu0 0.0
    %518 = vmatpush1.msra.mxu0 %v395
    %519 = vmatprep.subr.mxu0 0.0
    %520 = vmatpush1.msra.mxu0 %v394
    %521 = vmatprep.subr.mxu0 0.0
    %522 = vmatpush2.msra.mxu0 0.0
    %523 = vmatprep.subr.mxu0 0.0
    %524 = vmatpush2.msra.mxu0 0.0
    %525 = vmatprep.subr.mxu0 0.0
    %526 = vmatpush2.msra.mxu0 0.0
    %527 = vmatprep.subr.mxu0 0.0
    %528 = vmatpush2.msra.mxu0 0.0
    %529 = vmatprep.subr.mxu0 0.0
    %530 = vmatpush2.msra.mxu0 0.0
    %531 = vmatprep.subr.mxu0 0.0
    %532 = vmatpush2.msra.mxu0 0.0
    %533 = vmatprep.subr.mxu0 0.0
    %534 = vmatpush2.msra.mxu0 0.0
    %535 = vmatprep.subr.mxu0 0.0
    %536 = vmatpush2.msra.mxu0 0.0
    %537 = vmatprep.subr.mxu0 0.0
    %538 = vmatpush2.msra.mxu0 0.0
    %539 = vmatprep.subr.mxu0 0.0
    %540 = vmatpush2.msra.mxu0 0.0
    %541 = vmatprep.subr.mxu0 0.0
    %542 = vmatpush2.msra.mxu0 0.0
    %543 = vmatprep.subr.mxu0 0.0
    %544 = vmatpush2.msra.mxu0 0.0
    %545 = vmatprep.subr.mxu0 0.0
    %546 = vmatpush2.msra.mxu0 0.0
    %547 = vmatprep.subr.mxu0 0.0
    %548 = vmatpush2.msra.mxu0 0.0
    %549 = vmatprep.subr.mxu0 0.0
    %550 = vmatpush2.msra.mxu0 0.0
    %551 = vmatprep.subr.mxu0 0.0
    %552 = vmatpush2.msra.mxu0 0.0
    %553 = vmatprep.mubr.f32.mxu0 0.0
    %554 = vmatmul.mubr.f32.gmra.mxu0 %v417
    %v555 = vpop.f32.mrf.mxu0
    %v556 = vadd.f32 %v486, %v555
    %v557 = vpop.f32.mrf.mxu0
    %558 = vdwg.mxu0
    %v559 = vadd.f32 %v352, %v556
    %560 = vst.msk [vmem:[#allocation2] sm:$0x3] %vm29, %v356
    %561 = vst.msk [vmem:[#allocation3] sm:$0x3] %vm29, %v360
    %562 = vst.msk [vmem:[#allocation4] sm:$0x3] %vm29, %v559
    %v563 = vld [vmem:[%s2] sm:$0xff]
    %v564 = vld [vmem:[%s2 + $0x8] sm:$0xff]
    %v565 = vld [vmem:[%s2 + $0x10] sm:$0xff]
    %v566 = vld [vmem:[%s2 + $0x18] sm:$0xff]
    %v568 = vsel %vm103, %v356, 0
    %570 = vmatprep.subr.mxu0 0.0
    %571 = vmatpush1.msra.mxu0 0.0
    %572 = vmatprep.subr.mxu0 0.0
    %573 = vmatpush1.msra.mxu0 0.0
    %574 = vmatprep.subr.mxu0 0.0
    %575 = vmatpush1.msra.mxu0 0.0
    %576 = vmatprep.subr.mxu0 0.0
    %577 = vmatpush1.msra.mxu0 0.0
    %578 = vmatprep.subr.mxu0 0.0
    %579 = vmatpush1.msra.mxu0 0.0
    %580 = vmatprep.subr.mxu0 0.0
    %581 = vmatpush1.msra.mxu0 0.0
    %582 = vmatprep.subr.mxu0 0.0
    %583 = vmatpush1.msra.mxu0 0.0
    %584 = vmatprep.subr.mxu0 0.0
    %585 = vmatpush1.msra.mxu0 0.0
    %586 = vmatprep.subr.mxu0 0.0
    %587 = vmatpush1.msra.mxu0 0.0
    %588 = vmatprep.subr.mxu0 0.0
    %589 = vmatpush1.msra.mxu0 0.0
    %590 = vmatprep.subr.mxu0 0.0
    %591 = vmatpush1.msra.mxu0 0.0
    %592 = vmatprep.subr.mxu0 0.0
    %593 = vmatpush1.msra.mxu0 0.0
    %594 = vmatprep.subr.mxu0 0.0
    %595 = vmatpush1.msra.mxu0 %v566
    %596 = vmatprep.subr.mxu0 0.0
    %597 = vmatpush1.msra.mxu0 %v565
    %598 = vmatprep.subr.mxu0 0.0
    %599 = vmatpush1.msra.mxu0 %v564
    %600 = vmatprep.subr.mxu0 0.0
    %601 = vmatpush1.msra.mxu0 %v563
    %602 = vmatprep.subr.mxu0 0.0
    %603 = vmatpush2.msra.mxu0 0.0
    %604 = vmatprep.subr.mxu0 0.0
    %605 = vmatpush2.msra.mxu0 0.0
    %606 = vmatprep.subr.mxu0 0.0
    %607 = vmatpush2.msra.mxu0 0.0
    %608 = vmatprep.subr.mxu0 0.0
    %609 = vmatpush2.msra.mxu0 0.0
    %610 = vmatprep.subr.mxu0 0.0
    %611 = vmatpush2.msra.mxu0 0.0
    %612 = vmatprep.subr.mxu0 0.0
    %613 = vmatpush2.msra.mxu0 0.0
    %614 = vmatprep.subr.mxu0 0.0
    %615 = vmatpush2.msra.mxu0 0.0
    %616 = vmatprep.subr.mxu0 0.0
    %617 = vmatpush2.msra.mxu0 0.0
    %618 = vmatprep.subr.mxu0 0.0
    %619 = vmatpush2.msra.mxu0 0.0
    %620 = vmatprep.subr.mxu0 0.0
    %621 = vmatpush2.msra.mxu0 0.0
    %622 = vmatprep.subr.mxu0 0.0
    %623 = vmatpush2.msra.mxu0 0.0
    %624 = vmatprep.subr.mxu0 0.0
    %625 = vmatpush2.msra.mxu0 0.0
    %626 = vmatprep.subr.mxu0 0.0
    %627 = vmatpush2.msra.mxu0 0.0
    %628 = vmatprep.subr.mxu0 0.0
    %629 = vmatpush2.msra.mxu0 0.0
    %630 = vmatprep.subr.mxu0 0.0
    %631 = vmatpush2.msra.mxu0 0.0
    %632 = vmatprep.subr.mxu0 0.0
    %633 = vmatpush2.msra.mxu0 0.0
    %634 = vmatprep.mubr.f32.mxu0 0.0
    %635 = vmatmul.mubr.f32.gmra.mxu0 %v568
    %v636 = vpop.f32.mrf.mxu0
    %v637 = vadd.f32 0.0, %v636
    %v638 = vpop.f32.mrf.mxu0
    %639 = vdwg.mxu0
    %v640 = vld [vmem:[#allocation6] sm:$0x3]
    %v641 = vadd.f32 %v640, %v637
    %v642 = vld [vmem:[#allocation5] sm:$0x3]
    %v643 = vsub.f32 0.0, %v642
    %v644 = vadd.f32 %v643, %v641
    %v645 = vmul.f32 %v644, 0.1
    %v646 = vadd.f32 %v642, %v645
    %v647 = vmul.f32 %v641, -0.2
    %v648 = vadd.f32 %v641, %v647
    %649 = vst.msk [vmem:[#allocation5] sm:$0x3] %vm336, %v646
    %650 = vst.msk [vmem:[#allocation6] sm:$0x3] %vm336, %v648
    %s651 = scalar_lea.vmem [#allocation8], 2
    %652 = vst.msk [vmem:[%s651] sm:$0x3] %vm336, %v646
    %s653 = scalar_lea.vmem %s0, 8
    %v654 = vld [vmem:[%s653] sm:$0xf]
    %655 = vst [vmem:[#allocation7] sm:$0xf] %v654
    %v656 = vld [vmem:[#allocation2] sm:$0x3]
    %657 = vst.msk [vmem:[#allocation7 + $0x4] sm:$0x3] %vm29, %v656
    %v658 = vld [vmem:[#allocation3] sm:$0x3]
    %v659 = vld [vmem:[#allocation4] sm:$0x3]
    %v660 = vsub.f32 0.0, %v658
    %v661 = vadd.f32 %v660, %v659
    %v662 = vmul.f32 %v661, 0.1
    %v663 = vadd.f32 %v658, %v662
    %v664 = vmul.f32 %v659, -0.2
    %v665 = vadd.f32 %v659, %v664
    %v666 = vsub.f32 %v663, 1.0
    %vm667 = vcmp.gt.f32.partialorder %v666, 0.0
    %v668 = vsel %vm667, 1, 0
    %v669 = vcvt.s32.f32 %v668
    %v670 = vsub.f32 1.0, %v669
    %v671 = vmul.f32 %v670, %v663
    %v672 = vmul.f32 %v669, 0.0
    %v673 = vadd.f32 %v671, %v672
    %v674 = vld [vmem:[#allocation7] sm:$0x3f]
    %v675 = vld [vmem:[%s1] sm:$0xff]
    %v676 = vld [vmem:[%s1 + $0x8] sm:$0xff]
    %v677 = vld [vmem:[%s1 + $0x10] sm:$0xff]
    %v678 = vld [vmem:[%s1 + $0x18] sm:$0xff]
    %v679 = vld [vmem:[%s1 + $0x20] sm:$0xff]
    %v680 = vld [vmem:[%s1 + $0x28] sm:$0xff]
    %v681 = vld [vmem:[%s1 + $0x30] sm:$0xff]
    %v682 = vld [vmem:[%s1 + $0x38] sm:$0xff]
    %v683 = vld [vmem:[%s1 + $0x40] sm:$0xff]
    %v684 = vld [vmem:[%s1 + $0x48] sm:$0xff]
    %v685 = vld [vmem:[%s1 + $0x50] sm:$0xff]
    %v686 = vld [vmem:[%s1 + $0x58] sm:$0xff]
    %v687 = vld [vmem:[%s1 + $0x60] sm:$0xff]
    %v688 = vld [vmem:[%s1 + $0x68] sm:$0xff]
    %v689 = vld [vmem:[%s1 + $0x70] sm:$0xff]
    %v690 = vld [vmem:[%s1 + $0x78] sm:$0xff]
    %v691 = vld [vmem:[%s1 + $0x80] sm:$0xff]
    %v692 = vld [vmem:[%s1 + $0x88] sm:$0xff]
    %v693 = vld [vmem:[%s1 + $0x90] sm:$0xff]
    %v694 = vld [vmem:[%s1 + $0x98] sm:$0xff]
    %v695 = vld [vmem:[%s1 + $0xa0] sm:$0xff]
    %v696 = vld [vmem:[%s1 + $0xa8] sm:$0xff]
    %v697 = vld [vmem:[%s1 + $0xb0] sm:$0xff]
    %v698 = vld [vmem:[%s1 + $0xb8] sm:$0xff]
    %v699 = vld [vmem:[%s1 + $0xc0] sm:$0xff]
    %v700 = vld [vmem:[%s1 + $0xc8] sm:$0xff]
    %v701 = vld [vmem:[%s1 + $0xd0] sm:$0xff]
    %v702 = vld [vmem:[%s1 + $0xd8] sm:$0xff]
    %v703 = vld [vmem:[%s1 + $0xe0] sm:$0xff]
    %v704 = vld [vmem:[%s1 + $0xe8] sm:$0xff]
    %v705 = vld [vmem:[%s1 + $0xf0] sm:$0xff]
    %v706 = vld [vmem:[%s1 + $0xf8] sm:$0xff]
    %v707 = vld [vmem:[%s1 + $0x100] sm:$0xff]
    %v708 = vld [vmem:[%s1 + $0x108] sm:$0xff]
    %v709 = vld [vmem:[%s1 + $0x110] sm:$0xff]
    %v710 = vld [vmem:[%s1 + $0x118] sm:$0xff]
    %v712 = vcombine.high %v674, %v674
    %v714 = vunpack.c.l.s4 1983009808
    %v715 = vunpack.c.0.s8 %v714
    %v716 = vlaneseq
    %v717 = vshrl.u32 %v716, 7
    %v718 = vsub.s32 %v715, %v717
    %v719 = vrot.slane %v674, %v718
    %v721 = vunpack.c.l.s4 1983009808
    %v722 = vunpack.c.0.s8 %v721
    %v723 = vlaneseq
    %v724 = vshrl.u32 %v723, 7
    %v725 = vsub.s32 %v722, %v724
    %v726 = vrot.slane %v712, %v725
    %v727 = vcombine.high %v719, %v719
    %v730 = vsel %vm103, %v726, 0
    %732 = vmatprep.subr.mxu0 0.0
    %733 = vmatpush1.msra.mxu0 %v690
    %734 = vmatprep.subr.mxu0 0.0
    %735 = vmatpush1.msra.mxu0 %v689
    %736 = vmatprep.subr.mxu0 0.0
    %737 = vmatpush1.msra.mxu0 %v688
    %738 = vmatprep.subr.mxu0 0.0
    %739 = vmatpush1.msra.mxu0 %v687
    %740 = vmatprep.subr.mxu0 0.0
    %741 = vmatpush1.msra.mxu0 %v686
    %742 = vmatprep.subr.mxu0 0.0
    %743 = vmatpush1.msra.mxu0 %v685
    %744 = vmatprep.subr.mxu0 0.0
    %745 = vmatpush1.msra.mxu0 %v684
    %746 = vmatprep.subr.mxu0 0.0
    %747 = vmatpush1.msra.mxu0 %v683
    %748 = vmatprep.subr.mxu0 0.0
    %749 = vmatpush1.msra.mxu0 %v682
    %750 = vmatprep.subr.mxu0 0.0
    %751 = vmatpush1.msra.mxu0 %v681
    %752 = vmatprep.subr.mxu0 0.0
    %753 = vmatpush1.msra.mxu0 %v680
    %754 = vmatprep.subr.mxu0 0.0
    %755 = vmatpush1.msra.mxu0 %v679
    %756 = vmatprep.subr.mxu0 0.0
    %757 = vmatpush1.msra.mxu0 %v678
    %758 = vmatprep.subr.mxu0 0.0
    %759 = vmatpush1.msra.mxu0 %v677
    %760 = vmatprep.subr.mxu0 0.0
    %761 = vmatpush1.msra.mxu0 %v676
    %762 = vmatprep.subr.mxu0 0.0
    %763 = vmatpush1.msra.mxu0 %v675
    %764 = vmatprep.subr.mxu0 0.0
    %765 = vmatpush2.msra.mxu0 %v706
    %766 = vmatprep.subr.mxu0 0.0
    %767 = vmatpush2.msra.mxu0 %v705
    %768 = vmatprep.subr.mxu0 0.0
    %769 = vmatpush2.msra.mxu0 %v704
    %770 = vmatprep.subr.mxu0 0.0
    %771 = vmatpush2.msra.mxu0 %v703
    %772 = vmatprep.subr.mxu0 0.0
    %773 = vmatpush2.msra.mxu0 %v702
    %774 = vmatprep.subr.mxu0 0.0
    %775 = vmatpush2.msra.mxu0 %v701
    %776 = vmatprep.subr.mxu0 0.0
    %777 = vmatpush2.msra.mxu0 %v700
    %778 = vmatprep.subr.mxu0 0.0
    %779 = vmatpush2.msra.mxu0 %v699
    %780 = vmatprep.subr.mxu0 0.0
    %781 = vmatpush2.msra.mxu0 %v698
    %782 = vmatprep.subr.mxu0 0.0
    %783 = vmatpush2.msra.mxu0 %v697
    %784 = vmatprep.subr.mxu0 0.0
    %785 = vmatpush2.msra.mxu0 %v696
    %786 = vmatprep.subr.mxu0 0.0
    %787 = vmatpush2.msra.mxu0 %v695
    %788 = vmatprep.subr.mxu0 0.0
    %789 = vmatpush2.msra.mxu0 %v694
    %790 = vmatprep.subr.mxu0 0.0
    %791 = vmatpush2.msra.mxu0 %v693
    %792 = vmatprep.subr.mxu0 0.0
    %793 = vmatpush2.msra.mxu0 %v692
    %794 = vmatprep.subr.mxu0 0.0
    %795 = vmatpush2.msra.mxu0 %v691
    %796 = vmatprep.mubr.f32.mxu0 %v727
    %797 = vmatmul.mubr.f32.gmra.mxu0 %v719
    %v798 = vpop.f32.mrf.mxu0
    %v799 = vadd.f32 0.0, %v798
    %v800 = vpop.f32.mrf.mxu0
    %801 = vdwg.mxu0
    %802 = vmatprep.subr.mxu0 0.0
    %803 = vmatpush1.msra.mxu0 0.0
    %804 = vmatprep.subr.mxu0 0.0
    %805 = vmatpush1.msra.mxu0 0.0
    %806 = vmatprep.subr.mxu0 0.0
    %807 = vmatpush1.msra.mxu0 0.0
    %808 = vmatprep.subr.mxu0 0.0
    %809 = vmatpush1.msra.mxu0 0.0
    %810 = vmatprep.subr.mxu0 0.0
    %811 = vmatpush1.msra.mxu0 0.0
    %812 = vmatprep.subr.mxu0 0.0
    %813 = vmatpush1.msra.mxu0 0.0
    %814 = vmatprep.subr.mxu0 0.0
    %815 = vmatpush1.msra.mxu0 0.0
    %816 = vmatprep.subr.mxu0 0.0
    %817 = vmatpush1.msra.mxu0 0.0
    %818 = vmatprep.subr.mxu0 0.0
    %819 = vmatpush1.msra.mxu0 0.0
    %820 = vmatprep.subr.mxu0 0.0
    %821 = vmatpush1.msra.mxu0 0.0
    %822 = vmatprep.subr.mxu0 0.0
    %823 = vmatpush1.msra.mxu0 0.0
    %824 = vmatprep.subr.mxu0 0.0
    %825 = vmatpush1.msra.mxu0 0.0
    %826 = vmatprep.subr.mxu0 0.0
    %827 = vmatpush1.msra.mxu0 %v710
    %828 = vmatprep.subr.mxu0 0.0
    %829 = vmatpush1.msra.mxu0 %v709
    %830 = vmatprep.subr.mxu0 0.0
    %831 = vmatpush1.msra.mxu0 %v708
    %832 = vmatprep.subr.mxu0 0.0
    %833 = vmatpush1.msra.mxu0 %v707
    %834 = vmatprep.subr.mxu0 0.0
    %835 = vmatpush2.msra.mxu0 0.0
    %836 = vmatprep.subr.mxu0 0.0
    %837 = vmatpush2.msra.mxu0 0.0
    %838 = vmatprep.subr.mxu0 0.0
    %839 = vmatpush2.msra.mxu0 0.0
    %840 = vmatprep.subr.mxu0 0.0
    %841 = vmatpush2.msra.mxu0 0.0
    %842 = vmatprep.subr.mxu0 0.0
    %843 = vmatpush2.msra.mxu0 0.0
    %844 = vmatprep.subr.mxu0 0.0
    %845 = vmatpush2.msra.mxu0 0.0
    %846 = vmatprep.subr.mxu0 0.0
    %847 = vmatpush2.msra.mxu0 0.0
    %848 = vmatprep.subr.mxu0 0.0
    %849 = vmatpush2.msra.mxu0 0.0
    %850 = vmatprep.subr.mxu0 0.0
    %851 = vmatpush2.msra.mxu0 0.0
    %852 = vmatprep.subr.mxu0 0.0
    %853 = vmatpush2.msra.mxu0 0.0
    %854 = vmatprep.subr.mxu0 0.0
    %855 = vmatpush2.msra.mxu0 0.0
    %856 = vmatprep.subr.mxu0 0.0
    %857 = vmatpush2.msra.mxu0 0.0
    %858 = vmatprep.subr.mxu0 0.0
    %859 = vmatpush2.msra.mxu0 0.0
    %860 = vmatprep.subr.mxu0 0.0
    %861 = vmatpush2.msra.mxu0 0.0
    %862 = vmatprep.subr.mxu0 0.0
    %863 = vmatpush2.msra.mxu0 0.0
    %864 = vmatprep.subr.mxu0 0.0
    %865 = vmatpush2.msra.mxu0 0.0
    %866 = vmatprep.mubr.f32.mxu0 0.0
    %867 = vmatmul.mubr.f32.gmra.mxu0 %v730
    %v868 = vpop.f32.mrf.mxu0
    %v869 = vadd.f32 %v799, %v868
    %v870 = vpop.f32.mrf.mxu0
    %871 = vdwg.mxu0
    %v872 = vadd.f32 %v665, %v869
    %873 = vst.msk [vmem:[#allocation2] sm:$0x3] %vm29, %v669
    %874 = vst.msk [vmem:[#allocation3] sm:$0x3] %vm29, %v673
    %875 = vst.msk [vmem:[#allocation4] sm:$0x3] %vm29, %v872
    %v876 = vld [vmem:[%s2] sm:$0xff]
    %v877 = vld [vmem:[%s2 + $0x8] sm:$0xff]
    %v878 = vld [vmem:[%s2 + $0x10] sm:$0xff]
    %v879 = vld [vmem:[%s2 + $0x18] sm:$0xff]
    %v881 = vsel %vm103, %v669, 0
    %883 = vmatprep.subr.mxu0 0.0
    %884 = vmatpush1.msra.mxu0 0.0
    %885 = vmatprep.subr.mxu0 0.0
    %886 = vmatpush1.msra.mxu0 0.0
    %887 = vmatprep.subr.mxu0 0.0
    %888 = vmatpush1.msra.mxu0 0.0
    %889 = vmatprep.subr.mxu0 0.0
    %890 = vmatpush1.msra.mxu0 0.0
    %891 = vmatprep.subr.mxu0 0.0
    %892 = vmatpush1.msra.mxu0 0.0
    %893 = vmatprep.subr.mxu0 0.0
    %894 = vmatpush1.msra.mxu0 0.0
    %895 = vmatprep.subr.mxu0 0.0
    %896 = vmatpush1.msra.mxu0 0.0
    %897 = vmatprep.subr.mxu0 0.0
    %898 = vmatpush1.msra.mxu0 0.0
    %899 = vmatprep.subr.mxu0 0.0
    %900 = vmatpush1.msra.mxu0 0.0
    %901 = vmatprep.subr.mxu0 0.0
    %902 = vmatpush1.msra.mxu0 0.0
    %903 = vmatprep.subr.mxu0 0.0
    %904 = vmatpush1.msra.mxu0 0.0
    %905 = vmatprep.subr.mxu0 0.0
    %906 = vmatpush1.msra.mxu0 0.0
    %907 = vmatprep.subr.mxu0 0.0
    %908 = vmatpush1.msra.mxu0 %v879
    %909 = vmatprep.subr.mxu0 0.0
    %910 = vmatpush1.msra.mxu0 %v878
    %911 = vmatprep.subr.mxu0 0.0
    %912 = vmatpush1.msra.mxu0 %v877
    %913 = vmatprep.subr.mxu0 0.0
    %914 = vmatpush1.msra.mxu0 %v876
    %915 = vmatprep.subr.mxu0 0.0
    %916 = vmatpush2.msra.mxu0 0.0
    %917 = vmatprep.subr.mxu0 0.0
    %918 = vmatpush2.msra.mxu0 0.0
    %919 = vmatprep.subr.mxu0 0.0
    %920 = vmatpush2.msra.mxu0 0.0
    %921 = vmatprep.subr.mxu0 0.0
    %922 = vmatpush2.msra.mxu0 0.0
    %923 = vmatprep.subr.mxu0 0.0
    %924 = vmatpush2.msra.mxu0 0.0
    %925 = vmatprep.subr.mxu0 0.0
    %926 = vmatpush2.msra.mxu0 0.0
    %927 = vmatprep.subr.mxu0 0.0
    %928 = vmatpush2.msra.mxu0 0.0
    %929 = vmatprep.subr.mxu0 0.0
    %930 = vmatpush2.msra.mxu0 0.0
    %931 = vmatprep.subr.mxu0 0.0
    %932 = vmatpush2.msra.mxu0 0.0
    %933 = vmatprep.subr.mxu0 0.0
    %934 = vmatpush2.msra.mxu0 0.0
    %935 = vmatprep.subr.mxu0 0.0
    %936 = vmatpush2.msra.mxu0 0.0
    %937 = vmatprep.subr.mxu0 0.0
    %938 = vmatpush2.msra.mxu0 0.0
    %939 = vmatprep.subr.mxu0 0.0
    %940 = vmatpush2.msra.mxu0 0.0
    %941 = vmatprep.subr.mxu0 0.0
    %942 = vmatpush2.msra.mxu0 0.0
    %943 = vmatprep.subr.mxu0 0.0
    %944 = vmatpush2.msra.mxu0 0.0
    %945 = vmatprep.subr.mxu0 0.0
    %946 = vmatpush2.msra.mxu0 0.0
    %947 = vmatprep.mubr.f32.mxu0 0.0
    %948 = vmatmul.mubr.f32.gmra.mxu0 %v881
    %v949 = vpop.f32.mrf.mxu0
    %v950 = vadd.f32 0.0, %v949
    %v951 = vpop.f32.mrf.mxu0
    %952 = vdwg.mxu0
    %v953 = vld [vmem:[#allocation6] sm:$0x3]
    %v954 = vadd.f32 %v953, %v950
    %v955 = vld [vmem:[#allocation5] sm:$0x3]
    %v956 = vsub.f32 0.0, %v955
    %v957 = vadd.f32 %v956, %v954
    %v958 = vmul.f32 %v957, 0.1
    %v959 = vadd.f32 %v955, %v958
    %v960 = vmul.f32 %v954, -0.2
    %v961 = vadd.f32 %v954, %v960
    %962 = vst.msk [vmem:[#allocation5] sm:$0x3] %vm336, %v959
    %963 = vst.msk [vmem:[#allocation6] sm:$0x3] %vm336, %v961
    %s964 = scalar_lea.vmem [#allocation8], 4
    %965 = vst.msk [vmem:[%s964] sm:$0x3] %vm336, %v959
    %s966 = scalar_lea.vmem %s0, 12
    %v967 = vld [vmem:[%s966] sm:$0xf]
    %968 = vst [vmem:[#allocation7] sm:$0xf] %v967
    %v969 = vld [vmem:[#allocation2] sm:$0x3]
    %970 = vst.msk [vmem:[#allocation7 + $0x4] sm:$0x3] %vm29, %v969
    %v971 = vld [vmem:[#allocation3] sm:$0x3]
    %v972 = vld [vmem:[#allocation4] sm:$0x3]
    %v973 = vsub.f32 0.0, %v971
    %v974 = vadd.f32 %v973, %v972
    %v975 = vmul.f32 %v974, 0.1
    %v976 = vadd.f32 %v971, %v975
    %v977 = vmul.f32 %v972, -0.2
    %v978 = vadd.f32 %v972, %v977
    %v979 = vsub.f32 %v976, 1.0
    %vm980 = vcmp.gt.f32.partialorder %v979, 0.0
    %v981 = vsel %vm980, 1, 0
    %v982 = vcvt.s32.f32 %v981
    %v983 = vsub.f32 1.0, %v982
    %v984 = vmul.f32 %v983, %v976
    %v985 = vmul.f32 %v982, 0.0
    %v986 = vadd.f32 %v984, %v985
    %v987 = vld [vmem:[#allocation7] sm:$0x3f]
    %v988 = vld [vmem:[%s1] sm:$0xff]
    %v989 = vld [vmem:[%s1 + $0x8] sm:$0xff]
    %v990 = vld [vmem:[%s1 + $0x10] sm:$0xff]
    %v991 = vld [vmem:[%s1 + $0x18] sm:$0xff]
    %v992 = vld [vmem:[%s1 + $0x20] sm:$0xff]
    %v993 = vld [vmem:[%s1 + $0x28] sm:$0xff]
    %v994 = vld [vmem:[%s1 + $0x30] sm:$0xff]
    %v995 = vld [vmem:[%s1 + $0x38] sm:$0xff]
    %v996 = vld [vmem:[%s1 + $0x40] sm:$0xff]
    %v997 = vld [vmem:[%s1 + $0x48] sm:$0xff]
    %v998 = vld [vmem:[%s1 + $0x50] sm:$0xff]
    %v999 = vld [vmem:[%s1 + $0x58] sm:$0xff]
    %v1000 = vld [vmem:[%s1 + $0x60] sm:$0xff]
    %v1001 = vld [vmem:[%s1 + $0x68] sm:$0xff]
    %v1002 = vld [vmem:[%s1 + $0x70] sm:$0xff]
    %v1003 = vld [vmem:[%s1 + $0x78] sm:$0xff]
    %v1004 = vld [vmem:[%s1 + $0x80] sm:$0xff]
    %v1005 = vld [vmem:[%s1 + $0x88] sm:$0xff]
    %v1006 = vld [vmem:[%s1 + $0x90] sm:$0xff]
    %v1007 = vld [vmem:[%s1 + $0x98] sm:$0xff]
    %v1008 = vld [vmem:[%s1 + $0xa0] sm:$0xff]
    %v1009 = vld [vmem:[%s1 + $0xa8] sm:$0xff]
    %v1010 = vld [vmem:[%s1 + $0xb0] sm:$0xff]
    %v1011 = vld [vmem:[%s1 + $0xb8] sm:$0xff]
    %v1012 = vld [vmem:[%s1 + $0xc0] sm:$0xff]
    %v1013 = vld [vmem:[%s1 + $0xc8] sm:$0xff]
    %v1014 = vld [vmem:[%s1 + $0xd0] sm:$0xff]
    %v1015 = vld [vmem:[%s1 + $0xd8] sm:$0xff]
    %v1016 = vld [vmem:[%s1 + $0xe0] sm:$0xff]
    %v1017 = vld [vmem:[%s1 + $0xe8] sm:$0xff]
    %v1018 = vld [vmem:[%s1 + $0xf0] sm:$0xff]
    %v1019 = vld [vmem:[%s1 + $0xf8] sm:$0xff]
    %v1020 = vld [vmem:[%s1 + $0x100] sm:$0xff]
    %v1021 = vld [vmem:[%s1 + $0x108] sm:$0xff]
    %v1022 = vld [vmem:[%s1 + $0x110] sm:$0xff]
    %v1023 = vld [vmem:[%s1 + $0x118] sm:$0xff]
    %v1025 = vcombine.high %v987, %v987
    %v1027 = vunpack.c.l.s4 1983009808
    %v1028 = vunpack.c.0.s8 %v1027
    %v1029 = vlaneseq
    %v1030 = vshrl.u32 %v1029, 7
    %v1031 = vsub.s32 %v1028, %v1030
    %v1032 = vrot.slane %v987, %v1031
    %v1034 = vunpack.c.l.s4 1983009808
    %v1035 = vunpack.c.0.s8 %v1034
    %v1036 = vlaneseq
    %v1037 = vshrl.u32 %v1036, 7
    %v1038 = vsub.s32 %v1035, %v1037
    %v1039 = vrot.slane %v1025, %v1038
    %v1040 = vcombine.high %v1032, %v1032
    %v1043 = vsel %vm103, %v1039, 0
    %1045 = vmatprep.subr.mxu0 0.0
    %1046 = vmatpush1.msra.mxu0 %v1003
    %1047 = vmatprep.subr.mxu0 0.0
    %1048 = vmatpush1.msra.mxu0 %v1002
    %1049 = vmatprep.subr.mxu0 0.0
    %1050 = vmatpush1.msra.mxu0 %v1001
    %1051 = vmatprep.subr.mxu0 0.0
    %1052 = vmatpush1.msra.mxu0 %v1000
    %1053 = vmatprep.subr.mxu0 0.0
    %1054 = vmatpush1.msra.mxu0 %v999
    %1055 = vmatprep.subr.mxu0 0.0
    %1056 = vmatpush1.msra.mxu0 %v998
    %1057 = vmatprep.subr.mxu0 0.0
    %1058 = vmatpush1.msra.mxu0 %v997
    %1059 = vmatprep.subr.mxu0 0.0
    %1060 = vmatpush1.msra.mxu0 %v996
    %1061 = vmatprep.subr.mxu0 0.0
    %1062 = vmatpush1.msra.mxu0 %v995
    %1063 = vmatprep.subr.mxu0 0.0
    %1064 = vmatpush1.msra.mxu0 %v994
    %1065 = vmatprep.subr.mxu0 0.0
    %1066 = vmatpush1.msra.mxu0 %v993
    %1067 = vmatprep.subr.mxu0 0.0
    %1068 = vmatpush1.msra.mxu0 %v992
    %1069 = vmatprep.subr.mxu0 0.0
    %1070 = vmatpush1.msra.mxu0 %v991
    %1071 = vmatprep.subr.mxu0 0.0
    %1072 = vmatpush1.msra.mxu0 %v990
    %1073 = vmatprep.subr.mxu0 0.0
    %1074 = vmatpush1.msra.mxu0 %v989
    %1075 = vmatprep.subr.mxu0 0.0
    %1076 = vmatpush1.msra.mxu0 %v988
    %1077 = vmatprep.subr.mxu0 0.0
    %1078 = vmatpush2.msra.mxu0 %v1019
    %1079 = vmatprep.subr.mxu0 0.0
    %1080 = vmatpush2.msra.mxu0 %v1018
    %1081 = vmatprep.subr.mxu0 0.0
    %1082 = vmatpush2.msra.mxu0 %v1017
    %1083 = vmatprep.subr.mxu0 0.0
    %1084 = vmatpush2.msra.mxu0 %v1016
    %1085 = vmatprep.subr.mxu0 0.0
    %1086 = vmatpush2.msra.mxu0 %v1015
    %1087 = vmatprep.subr.mxu0 0.0
    %1088 = vmatpush2.msra.mxu0 %v1014
    %1089 = vmatprep.subr.mxu0 0.0
    %1090 = vmatpush2.msra.mxu0 %v1013
    %1091 = vmatprep.subr.mxu0 0.0
    %1092 = vmatpush2.msra.mxu0 %v1012
    %1093 = vmatprep.subr.mxu0 0.0
    %1094 = vmatpush2.msra.mxu0 %v1011
    %1095 = vmatprep.subr.mxu0 0.0
    %1096 = vmatpush2.msra.mxu0 %v1010
    %1097 = vmatprep.subr.mxu0 0.0
    %1098 = vmatpush2.msra.mxu0 %v1009
    %1099 = vmatprep.subr.mxu0 0.0
    %1100 = vmatpush2.msra.mxu0 %v1008
    %1101 = vmatprep.subr.mxu0 0.0
    %1102 = vmatpush2.msra.mxu0 %v1007
    %1103 = vmatprep.subr.mxu0 0.0
    %1104 = vmatpush2.msra.mxu0 %v1006
    %1105 = vmatprep.subr.mxu0 0.0
    %1106 = vmatpush2.msra.mxu0 %v1005
    %1107 = vmatprep.subr.mxu0 0.0
    %1108 = vmatpush2.msra.mxu0 %v1004
    %1109 = vmatprep.mubr.f32.mxu0 %v1040
    %1110 = vmatmul.mubr.f32.gmra.mxu0 %v1032
    %v1111 = vpop.f32.mrf.mxu0
    %v1112 = vadd.f32 0.0, %v1111
    %v1113 = vpop.f32.mrf.mxu0
    %1114 = vdwg.mxu0
    %1115 = vmatprep.subr.mxu0 0.0
    %1116 = vmatpush1.msra.mxu0 0.0
    %1117 = vmatprep.subr.mxu0 0.0
    %1118 = vmatpush1.msra.mxu0 0.0
    %1119 = vmatprep.subr.mxu0 0.0
    %1120 = vmatpush1.msra.mxu0 0.0
    %1121 = vmatprep.subr.mxu0 0.0
    %1122 = vmatpush1.msra.mxu0 0.0
    %1123 = vmatprep.subr.mxu0 0.0
    %1124 = vmatpush1.msra.mxu0 0.0
    %1125 = vmatprep.subr.mxu0 0.0
    %1126 = vmatpush1.msra.mxu0 0.0
    %1127 = vmatprep.subr.mxu0 0.0
    %1128 = vmatpush1.msra.mxu0 0.0
    %1129 = vmatprep.subr.mxu0 0.0
    %1130 = vmatpush1.msra.mxu0 0.0
    %1131 = vmatprep.subr.mxu0 0.0
    %1132 = vmatpush1.msra.mxu0 0.0
    %1133 = vmatprep.subr.mxu0 0.0
    %1134 = vmatpush1.msra.mxu0 0.0
    %1135 = vmatprep.subr.mxu0 0.0
    %1136 = vmatpush1.msra.mxu0 0.0
    %1137 = vmatprep.subr.mxu0 0.0
    %1138 = vmatpush1.msra.mxu0 0.0
    %1139 = vmatprep.subr.mxu0 0.0
    %1140 = vmatpush1.msra.mxu0 %v1023
    %1141 = vmatprep.subr.mxu0 0.0
    %1142 = vmatpush1.msra.mxu0 %v1022
    %1143 = vmatprep.subr.mxu0 0.0
    %1144 = vmatpush1.msra.mxu0 %v1021
    %1145 = vmatprep.subr.mxu0 0.0
    %1146 = vmatpush1.msra.mxu0 %v1020
    %1147 = vmatprep.subr.mxu0 0.0
    %1148 = vmatpush2.msra.mxu0 0.0
    %1149 = vmatprep.subr.mxu0 0.0
    %1150 = vmatpush2.msra.mxu0 0.0
    %1151 = vmatprep.subr.mxu0 0.0
    %1152 = vmatpush2.msra.mxu0 0.0
    %1153 = vmatprep.subr.mxu0 0.0
    %1154 = vmatpush2.msra.mxu0 0.0
    %1155 = vmatprep.subr.mxu0 0.0
    %1156 = vmatpush2.msra.mxu0 0.0
    %1157 = vmatprep.subr.mxu0 0.0
    %1158 = vmatpush2.msra.mxu0 0.0
    %1159 = vmatprep.subr.mxu0 0.0
    %1160 = vmatpush2.msra.mxu0 0.0
    %1161 = vmatprep.subr.mxu0 0.0
    %1162 = vmatpush2.msra.mxu0 0.0
    %1163 = vmatprep.subr.mxu0 0.0
    %1164 = vmatpush2.msra.mxu0 0.0
    %1165 = vmatprep.subr.mxu0 0.0
    %1166 = vmatpush2.msra.mxu0 0.0
    %1167 = vmatprep.subr.mxu0 0.0
    %1168 = vmatpush2.msra.mxu0 0.0
    %1169 = vmatprep.subr.mxu0 0.0
    %1170 = vmatpush2.msra.mxu0 0.0
    %1171 = vmatprep.subr.mxu0 0.0
    %1172 = vmatpush2.msra.mxu0 0.0
    %1173 = vmatprep.subr.mxu0 0.0
    %1174 = vmatpush2.msra.mxu0 0.0
    %1175 = vmatprep.subr.mxu0 0.0
    %1176 = vmatpush2.msra.mxu0 0.0
    %1177 = vmatprep.subr.mxu0 0.0
    %1178 = vmatpush2.msra.mxu0 0.0
    %1179 = vmatprep.mubr.f32.mxu0 0.0
    %1180 = vmatmul.mubr.f32.gmra.mxu0 %v1043
    %v1181 = vpop.f32.mrf.mxu0
    %v1182 = vadd.f32 %v1112, %v1181
    %v1183 = vpop.f32.mrf.mxu0
    %1184 = vdwg.mxu0
    %v1185 = vadd.f32 %v978, %v1182
    %1186 = vst.msk [vmem:[#allocation2] sm:$0x3] %vm29, %v982
    %1187 = vst.msk [vmem:[#allocation3] sm:$0x3] %vm29, %v986
    %1188 = vst.msk [vmem:[#allocation4] sm:$0x3] %vm29, %v1185
    %v1189 = vld [vmem:[%s2] sm:$0xff]
    %v1190 = vld [vmem:[%s2 + $0x8] sm:$0xff]
    %v1191 = vld [vmem:[%s2 + $0x10] sm:$0xff]
    %v1192 = vld [vmem:[%s2 + $0x18] sm:$0xff]
    %v1194 = vsel %vm103, %v982, 0
    %1196 = vmatprep.subr.mxu0 0.0
    %1197 = vmatpush1.msra.mxu0 0.0
    %1198 = vmatprep.subr.mxu0 0.0
    %1199 = vmatpush1.msra.mxu0 0.0
    %1200 = vmatprep.subr.mxu0 0.0
    %1201 = vmatpush1.msra.mxu0 0.0
    %1202 = vmatprep.subr.mxu0 0.0
    %1203 = vmatpush1.msra.mxu0 0.0
    %1204 = vmatprep.subr.mxu0 0.0
    %1205 = vmatpush1.msra.mxu0 0.0
    %1206 = vmatprep.subr.mxu0 0.0
    %1207 = vmatpush1.msra.mxu0 0.0
    %1208 = vmatprep.subr.mxu0 0.0
    %1209 = vmatpush1.msra.mxu0 0.0
    %1210 = vmatprep.subr.mxu0 0.0
    %1211 = vmatpush1.msra.mxu0 0.0
    %1212 = vmatprep.subr.mxu0 0.0
    %1213 = vmatpush1.msra.mxu0 0.0
    %1214 = vmatprep.subr.mxu0 0.0
    %1215 = vmatpush1.msra.mxu0 0.0
    %1216 = vmatprep.subr.mxu0 0.0
    %1217 = vmatpush1.msra.mxu0 0.0
    %1218 = vmatprep.subr.mxu0 0.0
    %1219 = vmatpush1.msra.mxu0 0.0
    %1220 = vmatprep.subr.mxu0 0.0
    %1221 = vmatpush1.msra.mxu0 %v1192
    %1222 = vmatprep.subr.mxu0 0.0
    %1223 = vmatpush1.msra.mxu0 %v1191
    %1224 = vmatprep.subr.mxu0 0.0
    %1225 = vmatpush1.msra.mxu0 %v1190
    %1226 = vmatprep.subr.mxu0 0.0
    %1227 = vmatpush1.msra.mxu0 %v1189
    %1228 = vmatprep.subr.mxu0 0.0
    %1229 = vmatpush2.msra.mxu0 0.0
    %1230 = vmatprep.subr.mxu0 0.0
    %1231 = vmatpush2.msra.mxu0 0.0
    %1232 = vmatprep.subr.mxu0 0.0
    %1233 = vmatpush2.msra.mxu0 0.0
    %1234 = vmatprep.subr.mxu0 0.0
    %1235 = vmatpush2.msra.mxu0 0.0
    %1236 = vmatprep.subr.mxu0 0.0
    %1237 = vmatpush2.msra.mxu0 0.0
    %1238 = vmatprep.subr.mxu0 0.0
    %1239 = vmatpush2.msra.mxu0 0.0
    %1240 = vmatprep.subr.mxu0 0.0
    %1241 = vmatpush2.msra.mxu0 0.0
    %1242 = vmatprep.subr.mxu0 0.0
    %1243 = vmatpush2.msra.mxu0 0.0
    %1244 = vmatprep.subr.mxu0 0.0
    %1245 = vmatpush2.msra.mxu0 0.0
    %1246 = vmatprep.subr.mxu0 0.0
    %1247 = vmatpush2.msra.mxu0 0.0
    %1248 = vmatprep.subr.mxu0 0.0
    %1249 = vmatpush2.msra.mxu0 0.0
    %1250 = vmatprep.subr.mxu0 0.0
    %1251 = vmatpush2.msra.mxu0 0.0
    %1252 = vmatprep.subr.mxu0 0.0
    %1253 = vmatpush2.msra.mxu0 0.0
    %1254 = vmatprep.subr.mxu0 0.0
    %1255 = vmatpush2.msra.mxu0 0.0
    %1256 = vmatprep.subr.mxu0 0.0
    %1257 = vmatpush2.msra.mxu0 0.0
    %1258 = vmatprep.subr.mxu0 0.0
    %1259 = vmatpush2.msra.mxu0 0.0
    %1260 = vmatprep.mubr.f32.mxu0 0.0
    %1261 = vmatmul.mubr.f32.gmra.mxu0 %v1194
    %v1262 = vpop.f32.mrf.mxu0
    %v1263 = vadd.f32 0.0, %v1262
    %v1264 = vpop.f32.mrf.mxu0
    %1265 = vdwg.mxu0
    %v1266 = vld [vmem:[#allocation6] sm:$0x3]
    %v1267 = vadd.f32 %v1266, %v1263
    %v1268 = vld [vmem:[#allocation5] sm:$0x3]
    %v1269 = vsub.f32 0.0, %v1268
    %v1270 = vadd.f32 %v1269, %v1267
    %v1271 = vmul.f32 %v1270, 0.1
    %v1272 = vadd.f32 %v1268, %v1271
    %v1273 = vmul.f32 %v1267, -0.2
    %v1274 = vadd.f32 %v1267, %v1273
    %1275 = vst.msk [vmem:[#allocation5] sm:$0x3] %vm336, %v1272
    %1276 = vst.msk [vmem:[#allocation6] sm:$0x3] %vm336, %v1274
    %s1277 = scalar_lea.vmem [#allocation8], 6
    %1278 = vst.msk [vmem:[%s1277] sm:$0x3] %vm336, %v1272
    %s1279 = scalar_lea.vmem %s0, 16
    %v1280 = vld [vmem:[%s1279] sm:$0xf]
    %1281 = vst [vmem:[#allocation7] sm:$0xf] %v1280
    %v1282 = vld [vmem:[#allocation2] sm:$0x3]
    %1283 = vst.msk [vmem:[#allocation7 + $0x4] sm:$0x3] %vm29, %v1282
    %v1284 = vld [vmem:[#allocation3] sm:$0x3]
    %v1285 = vld [vmem:[#allocation4] sm:$0x3]
    %v1286 = vsub.f32 0.0, %v1284
    %v1287 = vadd.f32 %v1286, %v1285
    %v1288 = vmul.f32 %v1287, 0.1
    %v1289 = vadd.f32 %v1284, %v1288
    %v1290 = vmul.f32 %v1285, -0.2
    %v1291 = vadd.f32 %v1285, %v1290
    %v1292 = vsub.f32 %v1289, 1.0
    %vm1293 = vcmp.gt.f32.partialorder %v1292, 0.0
    %v1294 = vsel %vm1293, 1, 0
    %v1295 = vcvt.s32.f32 %v1294
    %v1296 = vsub.f32 1.0, %v1295
    %v1297 = vmul.f32 %v1296, %v1289
    %v1298 = vmul.f32 %v1295, 0.0
    %v1299 = vadd.f32 %v1297, %v1298
    %v1300 = vld [vmem:[#allocation7] sm:$0x3f]
    %v1301 = vld [vmem:[%s1] sm:$0xff]
    %v1302 = vld [vmem:[%s1 + $0x8] sm:$0xff]
    %v1303 = vld [vmem:[%s1 + $0x10] sm:$0xff]
    %v1304 = vld [vmem:[%s1 + $0x18] sm:$0xff]
    %v1305 = vld [vmem:[%s1 + $0x20] sm:$0xff]
    %v1306 = vld [vmem:[%s1 + $0x28] sm:$0xff]
    %v1307 = vld [vmem:[%s1 + $0x30] sm:$0xff]
    %v1308 = vld [vmem:[%s1 + $0x38] sm:$0xff]
    %v1309 = vld [vmem:[%s1 + $0x40] sm:$0xff]
    %v1310 = vld [vmem:[%s1 + $0x48] sm:$0xff]
    %v1311 = vld [vmem:[%s1 + $0x50] sm:$0xff]
    %v1312 = vld [vmem:[%s1 + $0x58] sm:$0xff]
    %v1313 = vld [vmem:[%s1 + $0x60] sm:$0xff]
    %v1314 = vld [vmem:[%s1 + $0x68] sm:$0xff]
    %v1315 = vld [vmem:[%s1 + $0x70] sm:$0xff]
    %v1316 = vld [vmem:[%s1 + $0x78] sm:$0xff]
    %v1317 = vld [vmem:[%s1 + $0x80] sm:$0xff]
    %v1318 = vld [vmem:[%s1 + $0x88] sm:$0xff]
    %v1319 = vld [vmem:[%s1 + $0x90] sm:$0xff]
    %v1320 = vld [vmem:[%s1 + $0x98] sm:$0xff]
    %v1321 = vld [vmem:[%s1 + $0xa0] sm:$0xff]
    %v1322 = vld [vmem:[%s1 + $0xa8] sm:$0xff]
    %v1323 = vld [vmem:[%s1 + $0xb0] sm:$0xff]
    %v1324 = vld [vmem:[%s1 + $0xb8] sm:$0xff]
    %v1325 = vld [vmem:[%s1 + $0xc0] sm:$0xff]
    %v1326 = vld [vmem:[%s1 + $0xc8] sm:$0xff]
    %v1327 = vld [vmem:[%s1 + $0xd0] sm:$0xff]
    %v1328 = vld [vmem:[%s1 + $0xd8] sm:$0xff]
    %v1329 = vld [vmem:[%s1 + $0xe0] sm:$0xff]
    %v1330 = vld [vmem:[%s1 + $0xe8] sm:$0xff]
    %v1331 = vld [vmem:[%s1 + $0xf0] sm:$0xff]
    %v1332 = vld [vmem:[%s1 + $0xf8] sm:$0xff]
    %v1333 = vld [vmem:[%s1 + $0x100] sm:$0xff]
    %v1334 = vld [vmem:[%s1 + $0x108] sm:$0xff]
    %v1335 = vld [vmem:[%s1 + $0x110] sm:$0xff]
    %v1336 = vld [vmem:[%s1 + $0x118] sm:$0xff]
    %v1338 = vcombine.high %v1300, %v1300
    %v1340 = vunpack.c.l.s4 1983009808
    %v1341 = vunpack.c.0.s8 %v1340
    %v1342 = vlaneseq
    %v1343 = vshrl.u32 %v1342, 7
    %v1344 = vsub.s32 %v1341, %v1343
    %v1345 = vrot.slane %v1300, %v1344
    %v1347 = vunpack.c.l.s4 1983009808
    %v1348 = vunpack.c.0.s8 %v1347
    %v1349 = vlaneseq
    %v1350 = vshrl.u32 %v1349, 7
    %v1351 = vsub.s32 %v1348, %v1350
    %v1352 = vrot.slane %v1338, %v1351
    %v1353 = vcombine.high %v1345, %v1345
    %v1356 = vsel %vm103, %v1352, 0
    %1358 = vmatprep.subr.mxu0 0.0
    %1359 = vmatpush1.msra.mxu0 %v1316
    %1360 = vmatprep.subr.mxu0 0.0
    %1361 = vmatpush1.msra.mxu0 %v1315
    %1362 = vmatprep.subr.mxu0 0.0
    %1363 = vmatpush1.msra.mxu0 %v1314
    %1364 = vmatprep.subr.mxu0 0.0
    %1365 = vmatpush1.msra.mxu0 %v1313
    %1366 = vmatprep.subr.mxu0 0.0
    %1367 = vmatpush1.msra.mxu0 %v1312
    %1368 = vmatprep.subr.mxu0 0.0
    %1369 = vmatpush1.msra.mxu0 %v1311
    %1370 = vmatprep.subr.mxu0 0.0
    %1371 = vmatpush1.msra.mxu0 %v1310
    %1372 = vmatprep.subr.mxu0 0.0
    %1373 = vmatpush1.msra.mxu0 %v1309
    %1374 = vmatprep.subr.mxu0 0.0
    %1375 = vmatpush1.msra.mxu0 %v1308
    %1376 = vmatprep.subr.mxu0 0.0
    %1377 = vmatpush1.msra.mxu0 %v1307
    %1378 = vmatprep.subr.mxu0 0.0
    %1379 = vmatpush1.msra.mxu0 %v1306
    %1380 = vmatprep.subr.mxu0 0.0
    %1381 = vmatpush1.msra.mxu0 %v1305
    %1382 = vmatprep.subr.mxu0 0.0
    %1383 = vmatpush1.msra.mxu0 %v1304
    %1384 = vmatprep.subr.mxu0 0.0
    %1385 = vmatpush1.msra.mxu0 %v1303
    %1386 = vmatprep.subr.mxu0 0.0
    %1387 = vmatpush1.msra.mxu0 %v1302
    %1388 = vmatprep.subr.mxu0 0.0
    %1389 = vmatpush1.msra.mxu0 %v1301
    %1390 = vmatprep.subr.mxu0 0.0
    %1391 = vmatpush2.msra.mxu0 %v1332
    %1392 = vmatprep.subr.mxu0 0.0
    %1393 = vmatpush2.msra.mxu0 %v1331
    %1394 = vmatprep.subr.mxu0 0.0
    %1395 = vmatpush2.msra.mxu0 %v1330
    %1396 = vmatprep.subr.mxu0 0.0
    %1397 = vmatpush2.msra.mxu0 %v1329
    %1398 = vmatprep.subr.mxu0 0.0
    %1399 = vmatpush2.msra.mxu0 %v1328
    %1400 = vmatprep.subr.mxu0 0.0
    %1401 = vmatpush2.msra.mxu0 %v1327
    %1402 = vmatprep.subr.mxu0 0.0
    %1403 = vmatpush2.msra.mxu0 %v1326
    %1404 = vmatprep.subr.mxu0 0.0
    %1405 = vmatpush2.msra.mxu0 %v1325
    %1406 = vmatprep.subr.mxu0 0.0
    %1407 = vmatpush2.msra.mxu0 %v1324
    %1408 = vmatprep.subr.mxu0 0.0
    %1409 = vmatpush2.msra.mxu0 %v1323
    %1410 = vmatprep.subr.mxu0 0.0
    %1411 = vmatpush2.msra.mxu0 %v1322
    %1412 = vmatprep.subr.mxu0 0.0
    %1413 = vmatpush2.msra.mxu0 %v1321
    %1414 = vmatprep.subr.mxu0 0.0
    %1415 = vmatpush2.msra.mxu0 %v1320
    %1416 = vmatprep.subr.mxu0 0.0
    %1417 = vmatpush2.msra.mxu0 %v1319
    %1418 = vmatprep.subr.mxu0 0.0
    %1419 = vmatpush2.msra.mxu0 %v1318
    %1420 = vmatprep.subr.mxu0 0.0
    %1421 = vmatpush2.msra.mxu0 %v1317
    %1422 = vmatprep.mubr.f32.mxu0 %v1353
    %1423 = vmatmul.mubr.f32.gmra.mxu0 %v1345
    %v1424 = vpop.f32.mrf.mxu0
    %v1425 = vadd.f32 0.0, %v1424
    %v1426 = vpop.f32.mrf.mxu0
    %1427 = vdwg.mxu0
    %1428 = vmatprep.subr.mxu0 0.0
    %1429 = vmatpush1.msra.mxu0 0.0
    %1430 = vmatprep.subr.mxu0 0.0
    %1431 = vmatpush1.msra.mxu0 0.0
    %1432 = vmatprep.subr.mxu0 0.0
    %1433 = vmatpush1.msra.mxu0 0.0
    %1434 = vmatprep.subr.mxu0 0.0
    %1435 = vmatpush1.msra.mxu0 0.0
    %1436 = vmatprep.subr.mxu0 0.0
    %1437 = vmatpush1.msra.mxu0 0.0
    %1438 = vmatprep.subr.mxu0 0.0
    %1439 = vmatpush1.msra.mxu0 0.0
    %1440 = vmatprep.subr.mxu0 0.0
    %1441 = vmatpush1.msra.mxu0 0.0
    %1442 = vmatprep.subr.mxu0 0.0
    %1443 = vmatpush1.msra.mxu0 0.0
    %1444 = vmatprep.subr.mxu0 0.0
    %1445 = vmatpush1.msra.mxu0 0.0
    %1446 = vmatprep.subr.mxu0 0.0
    %1447 = vmatpush1.msra.mxu0 0.0
    %1448 = vmatprep.subr.mxu0 0.0
    %1449 = vmatpush1.msra.mxu0 0.0
    %1450 = vmatprep.subr.mxu0 0.0
    %1451 = vmatpush1.msra.mxu0 0.0
    %1452 = vmatprep.subr.mxu0 0.0
    %1453 = vmatpush1.msra.mxu0 %v1336
    %1454 = vmatprep.subr.mxu0 0.0
    %1455 = vmatpush1.msra.mxu0 %v1335
    %1456 = vmatprep.subr.mxu0 0.0
    %1457 = vmatpush1.msra.mxu0 %v1334
    %1458 = vmatprep.subr.mxu0 0.0
    %1459 = vmatpush1.msra.mxu0 %v1333
    %1460 = vmatprep.subr.mxu0 0.0
    %1461 = vmatpush2.msra.mxu0 0.0
    %1462 = vmatprep.subr.mxu0 0.0
    %1463 = vmatpush2.msra.mxu0 0.0
    %1464 = vmatprep.subr.mxu0 0.0
    %1465 = vmatpush2.msra.mxu0 0.0
    %1466 = vmatprep.subr.mxu0 0.0
    %1467 = vmatpush2.msra.mxu0 0.0
    %1468 = vmatprep.subr.mxu0 0.0
    %1469 = vmatpush2.msra.mxu0 0.0
    %1470 = vmatprep.subr.mxu0 0.0
    %1471 = vmatpush2.msra.mxu0 0.0
    %1472 = vmatprep.subr.mxu0 0.0
    %1473 = vmatpush2.msra.mxu0 0.0
    %1474 = vmatprep.subr.mxu0 0.0
    %1475 = vmatpush2.msra.mxu0 0.0
    %1476 = vmatprep.subr.mxu0 0.0
    %1477 = vmatpush2.msra.mxu0 0.0
    %1478 = vmatprep.subr.mxu0 0.0
    %1479 = vmatpush2.msra.mxu0 0.0
    %1480 = vmatprep.subr.mxu0 0.0
    %1481 = vmatpush2.msra.mxu0 0.0
    %1482 = vmatprep.subr.mxu0 0.0
    %1483 = vmatpush2.msra.mxu0 0.0
    %1484 = vmatprep.subr.mxu0 0.0
    %1485 = vmatpush2.msra.mxu0 0.0
    %1486 = vmatprep.subr.mxu0 0.0
    %1487 = vmatpush2.msra.mxu0 0.0
    %1488 = vmatprep.subr.mxu0 0.0
    %1489 = vmatpush2.msra.mxu0 0.0
    %1490 = vmatprep.subr.mxu0 0.0
    %1491 = vmatpush2.msra.mxu0 0.0
    %1492 = vmatprep.mubr.f32.mxu0 0.0
    %1493 = vmatmul.mubr.f32.gmra.mxu0 %v1356
    %v1494 = vpop.f32.mrf.mxu0
    %v1495 = vadd.f32 %v1425, %v1494
    %v1496 = vpop.f32.mrf.mxu0
    %1497 = vdwg.mxu0
    %v1498 = vadd.f32 %v1291, %v1495
    %1499 = vst.msk [vmem:[#allocation2] sm:$0x3] %vm29, %v1295
    %1500 = vst.msk [vmem:[#allocation3] sm:$0x3] %vm29, %v1299
    %1501 = vst.msk [vmem:[#allocation4] sm:$0x3] %vm29, %v1498
    %v1502 = vld [vmem:[%s2] sm:$0xff]
    %v1503 = vld [vmem:[%s2 + $0x8] sm:$0xff]
    %v1504 = vld [vmem:[%s2 + $0x10] sm:$0xff]
    %v1505 = vld [vmem:[%s2 + $0x18] sm:$0xff]
    %v1507 = vsel %vm103, %v1295, 0
    %1509 = vmatprep.subr.mxu0 0.0
    %1510 = vmatpush1.msra.mxu0 0.0
    %1511 = vmatprep.subr.mxu0 0.0
    %1512 = vmatpush1.msra.mxu0 0.0
    %1513 = vmatprep.subr.mxu0 0.0
    %1514 = vmatpush1.msra.mxu0 0.0
    %1515 = vmatprep.subr.mxu0 0.0
    %1516 = vmatpush1.msra.mxu0 0.0
    %1517 = vmatprep.subr.mxu0 0.0
    %1518 = vmatpush1.msra.mxu0 0.0
    %1519 = vmatprep.subr.mxu0 0.0
    %1520 = vmatpush1.msra.mxu0 0.0
    %1521 = vmatprep.subr.mxu0 0.0
    %1522 = vmatpush1.msra.mxu0 0.0
    %1523 = vmatprep.subr.mxu0 0.0
    %1524 = vmatpush1.msra.mxu0 0.0
    %1525 = vmatprep.subr.mxu0 0.0
    %1526 = vmatpush1.msra.mxu0 0.0
    %1527 = vmatprep.subr.mxu0 0.0
    %1528 = vmatpush1.msra.mxu0 0.0
    %1529 = vmatprep.subr.mxu0 0.0
    %1530 = vmatpush1.msra.mxu0 0.0
    %1531 = vmatprep.subr.mxu0 0.0
    %1532 = vmatpush1.msra.mxu0 0.0
    %1533 = vmatprep.subr.mxu0 0.0
    %1534 = vmatpush1.msra.mxu0 %v1505
    %1535 = vmatprep.subr.mxu0 0.0
    %1536 = vmatpush1.msra.mxu0 %v1504
    %1537 = vmatprep.subr.mxu0 0.0
    %1538 = vmatpush1.msra.mxu0 %v1503
    %1539 = vmatprep.subr.mxu0 0.0
    %1540 = vmatpush1.msra.mxu0 %v1502
    %1541 = vmatprep.subr.mxu0 0.0
    %1542 = vmatpush2.msra.mxu0 0.0
    %1543 = vmatprep.subr.mxu0 0.0
    %1544 = vmatpush2.msra.mxu0 0.0
    %1545 = vmatprep.subr.mxu0 0.0
    %1546 = vmatpush2.msra.mxu0 0.0
    %1547 = vmatprep.subr.mxu0 0.0
    %1548 = vmatpush2.msra.mxu0 0.0
    %1549 = vmatprep.subr.mxu0 0.0
    %1550 = vmatpush2.msra.mxu0 0.0
    %1551 = vmatprep.subr.mxu0 0.0
    %1552 = vmatpush2.msra.mxu0 0.0
    %1553 = vmatprep.subr.mxu0 0.0
    %1554 = vmatpush2.msra.mxu0 0.0
    %1555 = vmatprep.subr.mxu0 0.0
    %1556 = vmatpush2.msra.mxu0 0.0
    %1557 = vmatprep.subr.mxu0 0.0
    %1558 = vmatpush2.msra.mxu0 0.0
    %1559 = vmatprep.subr.mxu0 0.0
    %1560 = vmatpush2.msra.mxu0 0.0
    %1561 = vmatprep.subr.mxu0 0.0
    %1562 = vmatpush2.msra.mxu0 0.0
    %1563 = vmatprep.subr.mxu0 0.0
    %1564 = vmatpush2.msra.mxu0 0.0
    %1565 = vmatprep.subr.mxu0 0.0
    %1566 = vmatpush2.msra.mxu0 0.0
    %1567 = vmatprep.subr.mxu0 0.0
    %1568 = vmatpush2.msra.mxu0 0.0
    %1569 = vmatprep.subr.mxu0 0.0
    %1570 = vmatpush2.msra.mxu0 0.0
    %1571 = vmatprep.subr.mxu0 0.0
    %1572 = vmatpush2.msra.mxu0 0.0
    %1573 = vmatprep.mubr.f32.mxu0 0.0
    %1574 = vmatmul.mubr.f32.gmra.mxu0 %v1507
    %v1575 = vpop.f32.mrf.mxu0
    %v1576 = vadd.f32 0.0, %v1575
    %v1577 = vpop.f32.mrf.mxu0
    %1578 = vdwg.mxu0
    %v1579 = vld [vmem:[#allocation6] sm:$0x3]
    %v1580 = vadd.f32 %v1579, %v1576
    %v1581 = vld [vmem:[#allocation5] sm:$0x3]
    %v1582 = vsub.f32 0.0, %v1581
    %v1583 = vadd.f32 %v1582, %v1580
    %v1584 = vmul.f32 %v1583, 0.1
    %v1585 = vadd.f32 %v1581, %v1584
    %v1586 = vmul.f32 %v1580, -0.2
    %v1587 = vadd.f32 %v1580, %v1586
    %1588 = vst.msk [vmem:[#allocation5] sm:$0x3] %vm336, %v1585
    %1589 = vst.msk [vmem:[#allocation6] sm:$0x3] %vm336, %v1587
    %s1590 = scalar_lea.vmem [#allocation8], 8
    %1591 = vst.msk [vmem:[%s1590] sm:$0x3] %vm336, %v1585
    %s1592 = scalar_lea.vmem %s0, 20
    %v1593 = vld [vmem:[%s1592] sm:$0xf]
    %1594 = vst [vmem:[#allocation7] sm:$0xf] %v1593
    %v1595 = vld [vmem:[#allocation2] sm:$0x3]
    %1596 = vst.msk [vmem:[#allocation7 + $0x4] sm:$0x3] %vm29, %v1595
    %v1597 = vld [vmem:[#allocation3] sm:$0x3]
    %v1598 = vld [vmem:[#allocation4] sm:$0x3]
    %v1599 = vsub.f32 0.0, %v1597
    %v1600 = vadd.f32 %v1599, %v1598
    %v1601 = vmul.f32 %v1600, 0.1
    %v1602 = vadd.f32 %v1597, %v1601
    %v1603 = vmul.f32 %v1598, -0.2
    %v1604 = vadd.f32 %v1598, %v1603
    %v1605 = vsub.f32 %v1602, 1.0
    %vm1606 = vcmp.gt.f32.partialorder %v1605, 0.0
    %v1607 = vsel %vm1606, 1, 0
    %v1608 = vcvt.s32.f32 %v1607
    %v1609 = vsub.f32 1.0, %v1608
    %v1610 = vmul.f32 %v1609, %v1602
    %v1611 = vmul.f32 %v1608, 0.0
    %v1612 = vadd.f32 %v1610, %v1611
    %v1613 = vld [vmem:[#allocation7] sm:$0x3f]
    %v1614 = vld [vmem:[%s1] sm:$0xff]
    %v1615 = vld [vmem:[%s1 + $0x8] sm:$0xff]
    %v1616 = vld [vmem:[%s1 + $0x10] sm:$0xff]
    %v1617 = vld [vmem:[%s1 + $0x18] sm:$0xff]
    %v1618 = vld [vmem:[%s1 + $0x20] sm:$0xff]
    %v1619 = vld [vmem:[%s1 + $0x28] sm:$0xff]
    %v1620 = vld [vmem:[%s1 + $0x30] sm:$0xff]
    %v1621 = vld [vmem:[%s1 + $0x38] sm:$0xff]
    %v1622 = vld [vmem:[%s1 + $0x40] sm:$0xff]
    %v1623 = vld [vmem:[%s1 + $0x48] sm:$0xff]
    %v1624 = vld [vmem:[%s1 + $0x50] sm:$0xff]
    %v1625 = vld [vmem:[%s1 + $0x58] sm:$0xff]
    %v1626 = vld [vmem:[%s1 + $0x60] sm:$0xff]
    %v1627 = vld [vmem:[%s1 + $0x68] sm:$0xff]
    %v1628 = vld [vmem:[%s1 + $0x70] sm:$0xff]
    %v1629 = vld [vmem:[%s1 + $0x78] sm:$0xff]
    %v1630 = vld [vmem:[%s1 + $0x80] sm:$0xff]
    %v1631 = vld [vmem:[%s1 + $0x88] sm:$0xff]
    %v1632 = vld [vmem:[%s1 + $0x90] sm:$0xff]
    %v1633 = vld [vmem:[%s1 + $0x98] sm:$0xff]
    %v1634 = vld [vmem:[%s1 + $0xa0] sm:$0xff]
    %v1635 = vld [vmem:[%s1 + $0xa8] sm:$0xff]
    %v1636 = vld [vmem:[%s1 + $0xb0] sm:$0xff]
    %v1637 = vld [vmem:[%s1 + $0xb8] sm:$0xff]
    %v1638 = vld [vmem:[%s1 + $0xc0] sm:$0xff]
    %v1639 = vld [vmem:[%s1 + $0xc8] sm:$0xff]
    %v1640 = vld [vmem:[%s1 + $0xd0] sm:$0xff]
    %v1641 = vld [vmem:[%s1 + $0xd8] sm:$0xff]
    %v1642 = vld [vmem:[%s1 + $0xe0] sm:$0xff]
    %v1643 = vld [vmem:[%s1 + $0xe8] sm:$0xff]
    %v1644 = vld [vmem:[%s1 + $0xf0] sm:$0xff]
    %v1645 = vld [vmem:[%s1 + $0xf8] sm:$0xff]
    %v1646 = vld [vmem:[%s1 + $0x100] sm:$0xff]
    %v1647 = vld [vmem:[%s1 + $0x108] sm:$0xff]
    %v1648 = vld [vmem:[%s1 + $0x110] sm:$0xff]
    %v1649 = vld [vmem:[%s1 + $0x118] sm:$0xff]
    %v1651 = vcombine.high %v1613, %v1613
    %v1653 = vunpack.c.l.s4 1983009808
    %v1654 = vunpack.c.0.s8 %v1653
    %v1655 = vlaneseq
    %v1656 = vshrl.u32 %v1655, 7
    %v1657 = vsub.s32 %v1654, %v1656
    %v1658 = vrot.slane %v1613, %v1657
    %v1660 = vunpack.c.l.s4 1983009808
    %v1661 = vunpack.c.0.s8 %v1660
    %v1662 = vlaneseq
    %v1663 = vshrl.u32 %v1662, 7
    %v1664 = vsub.s32 %v1661, %v1663
    %v1665 = vrot.slane %v1651, %v1664
    %v1666 = vcombine.high %v1658, %v1658
    %v1669 = vsel %vm103, %v1665, 0
    %1671 = vmatprep.subr.mxu0 0.0
    %1672 = vmatpush1.msra.mxu0 %v1629
    %1673 = vmatprep.subr.mxu0 0.0
    %1674 = vmatpush1.msra.mxu0 %v1628
    %1675 = vmatprep.subr.mxu0 0.0
    %1676 = vmatpush1.msra.mxu0 %v1627
    %1677 = vmatprep.subr.mxu0 0.0
    %1678 = vmatpush1.msra.mxu0 %v1626
    %1679 = vmatprep.subr.mxu0 0.0
    %1680 = vmatpush1.msra.mxu0 %v1625
    %1681 = vmatprep.subr.mxu0 0.0
    %1682 = vmatpush1.msra.mxu0 %v1624
    %1683 = vmatprep.subr.mxu0 0.0
    %1684 = vmatpush1.msra.mxu0 %v1623
    %1685 = vmatprep.subr.mxu0 0.0
    %1686 = vmatpush1.msra.mxu0 %v1622
    %1687 = vmatprep.subr.mxu0 0.0
    %1688 = vmatpush1.msra.mxu0 %v1621
    %1689 = vmatprep.subr.mxu0 0.0
    %1690 = vmatpush1.msra.mxu0 %v1620
    %1691 = vmatprep.subr.mxu0 0.0
    %1692 = vmatpush1.msra.mxu0 %v1619
    %1693 = vmatprep.subr.mxu0 0.0
    %1694 = vmatpush1.msra.mxu0 %v1618
    %1695 = vmatprep.subr.mxu0 0.0
    %1696 = vmatpush1.msra.mxu0 %v1617
    %1697 = vmatprep.subr.mxu0 0.0
    %1698 = vmatpush1.msra.mxu0 %v1616
    %1699 = vmatprep.subr.mxu0 0.0
    %1700 = vmatpush1.msra.mxu0 %v1615
    %1701 = vmatprep.subr.mxu0 0.0
    %1702 = vmatpush1.msra.mxu0 %v1614
    %1703 = vmatprep.subr.mxu0 0.0
    %1704 = vmatpush2.msra.mxu0 %v1645
    %1705 = vmatprep.subr.mxu0 0.0
    %1706 = vmatpush2.msra.mxu0 %v1644
    %1707 = vmatprep.subr.mxu0 0.0
    %1708 = vmatpush2.msra.mxu0 %v1643
    %1709 = vmatprep.subr.mxu0 0.0
    %1710 = vmatpush2.msra.mxu0 %v1642
    %1711 = vmatprep.subr.mxu0 0.0
    %1712 = vmatpush2.msra.mxu0 %v1641
    %1713 = vmatprep.subr.mxu0 0.0
    %1714 = vmatpush2.msra.mxu0 %v1640
    %1715 = vmatprep.subr.mxu0 0.0
    %1716 = vmatpush2.msra.mxu0 %v1639
    %1717 = vmatprep.subr.mxu0 0.0
    %1718 = vmatpush2.msra.mxu0 %v1638
    %1719 = vmatprep.subr.mxu0 0.0
    %1720 = vmatpush2.msra.mxu0 %v1637
    %1721 = vmatprep.subr.mxu0 0.0
    %1722 = vmatpush2.msra.mxu0 %v1636
    %1723 = vmatprep.subr.mxu0 0.0
    %1724 = vmatpush2.msra.mxu0 %v1635
    %1725 = vmatprep.subr.mxu0 0.0
    %1726 = vmatpush2.msra.mxu0 %v1634
    %1727 = vmatprep.subr.mxu0 0.0
    %1728 = vmatpush2.msra.mxu0 %v1633
    %1729 = vmatprep.subr.mxu0 0.0
    %1730 = vmatpush2.msra.mxu0 %v1632
    %1731 = vmatprep.subr.mxu0 0.0
    %1732 = vmatpush2.msra.mxu0 %v1631
    %1733 = vmatprep.subr.mxu0 0.0
    %1734 = vmatpush2.msra.mxu0 %v1630
    %1735 = vmatprep.mubr.f32.mxu0 %v1666
    %1736 = vmatmul.mubr.f32.gmra.mxu0 %v1658
    %v1737 = vpop.f32.mrf.mxu0
    %v1738 = vadd.f32 0.0, %v1737
    %v1739 = vpop.f32.mrf.mxu0
    %1740 = vdwg.mxu0
    %1741 = vmatprep.subr.mxu0 0.0
    %1742 = vmatpush1.msra.mxu0 0.0
    %1743 = vmatprep.subr.mxu0 0.0
    %1744 = vmatpush1.msra.mxu0 0.0
    %1745 = vmatprep.subr.mxu0 0.0
    %1746 = vmatpush1.msra.mxu0 0.0
    %1747 = vmatprep.subr.mxu0 0.0
    %1748 = vmatpush1.msra.mxu0 0.0
    %1749 = vmatprep.subr.mxu0 0.0
    %1750 = vmatpush1.msra.mxu0 0.0
    %1751 = vmatprep.subr.mxu0 0.0
    %1752 = vmatpush1.msra.mxu0 0.0
    %1753 = vmatprep.subr.mxu0 0.0
    %1754 = vmatpush1.msra.mxu0 0.0
    %1755 = vmatprep.subr.mxu0 0.0
    %1756 = vmatpush1.msra.mxu0 0.0
    %1757 = vmatprep.subr.mxu0 0.0
    %1758 = vmatpush1.msra.mxu0 0.0
    %1759 = vmatprep.subr.mxu0 0.0
    %1760 = vmatpush1.msra.mxu0 0.0
    %1761 = vmatprep.subr.mxu0 0.0
    %1762 = vmatpush1.msra.mxu0 0.0
    %1763 = vmatprep.subr.mxu0 0.0
    %1764 = vmatpush1.msra.mxu0 0.0
    %1765 = vmatprep.subr.mxu0 0.0
    %1766 = vmatpush1.msra.mxu0 %v1649
    %1767 = vmatprep.subr.mxu0 0.0
    %1768 = vmatpush1.msra.mxu0 %v1648
    %1769 = vmatprep.subr.mxu0 0.0
    %1770 = vmatpush1.msra.mxu0 %v1647
    %1771 = vmatprep.subr.mxu0 0.0
    %1772 = vmatpush1.msra.mxu0 %v1646
    %1773 = vmatprep.subr.mxu0 0.0
    %1774 = vmatpush2.msra.mxu0 0.0
    %1775 = vmatprep.subr.mxu0 0.0
    %1776 = vmatpush2.msra.mxu0 0.0
    %1777 = vmatprep.subr.mxu0 0.0
    %1778 = vmatpush2.msra.mxu0 0.0
    %1779 = vmatprep.subr.mxu0 0.0
    %1780 = vmatpush2.msra.mxu0 0.0
    %1781 = vmatprep.subr.mxu0 0.0
    %1782 = vmatpush2.msra.mxu0 0.0
    %1783 = vmatprep.subr.mxu0 0.0
    %1784 = vmatpush2.msra.mxu0 0.0
    %1785 = vmatprep.subr.mxu0 0.0
    %1786 = vmatpush2.msra.mxu0 0.0
    %1787 = vmatprep.subr.mxu0 0.0
    %1788 = vmatpush2.msra.mxu0 0.0
    %1789 = vmatprep.subr.mxu0 0.0
    %1790 = vmatpush2.msra.mxu0 0.0
    %1791 = vmatprep.subr.mxu0 0.0
    %1792 = vmatpush2.msra.mxu0 0.0
    %1793 = vmatprep.subr.mxu0 0.0
    %1794 = vmatpush2.msra.mxu0 0.0
    %1795 = vmatprep.subr.mxu0 0.0
    %1796 = vmatpush2.msra.mxu0 0.0
    %1797 = vmatprep.subr.mxu0 0.0
    %1798 = vmatpush2.msra.mxu0 0.0
    %1799 = vmatprep.subr.mxu0 0.0
    %1800 = vmatpush2.msra.mxu0 0.0
    %1801 = vmatprep.subr.mxu0 0.0
    %1802 = vmatpush2.msra.mxu0 0.0
    %1803 = vmatprep.subr.mxu0 0.0
    %1804 = vmatpush2.msra.mxu0 0.0
    %1805 = vmatprep.mubr.f32.mxu0 0.0
    %1806 = vmatmul.mubr.f32.gmra.mxu0 %v1669
    %v1807 = vpop.f32.mrf.mxu0
    %v1808 = vadd.f32 %v1738, %v1807
    %v1809 = vpop.f32.mrf.mxu0
    %1810 = vdwg.mxu0
    %v1811 = vadd.f32 %v1604, %v1808
    %1812 = vst.msk [vmem:[#allocation2] sm:$0x3] %vm29, %v1608
    %1813 = vst.msk [vmem:[#allocation3] sm:$0x3] %vm29, %v1612
    %1814 = vst.msk [vmem:[#allocation4] sm:$0x3] %vm29, %v1811
    %v1815 = vld [vmem:[%s2] sm:$0xff]
    %v1816 = vld [vmem:[%s2 + $0x8] sm:$0xff]
    %v1817 = vld [vmem:[%s2 + $0x10] sm:$0xff]
    %v1818 = vld [vmem:[%s2 + $0x18] sm:$0xff]
    %v1820 = vsel %vm103, %v1608, 0
    %1822 = vmatprep.subr.mxu0 0.0
    %1823 = vmatpush1.msra.mxu0 0.0
    %1824 = vmatprep.subr.mxu0 0.0
    %1825 = vmatpush1.msra.mxu0 0.0
    %1826 = vmatprep.subr.mxu0 0.0
    %1827 = vmatpush1.msra.mxu0 0.0
    %1828 = vmatprep.subr.mxu0 0.0
    %1829 = vmatpush1.msra.mxu0 0.0
    %1830 = vmatprep.subr.mxu0 0.0
    %1831 = vmatpush1.msra.mxu0 0.0
    %1832 = vmatprep.subr.mxu0 0.0
    %1833 = vmatpush1.msra.mxu0 0.0
    %1834 = vmatprep.subr.mxu0 0.0
    %1835 = vmatpush1.msra.mxu0 0.0
    %1836 = vmatprep.subr.mxu0 0.0
    %1837 = vmatpush1.msra.mxu0 0.0
    %1838 = vmatprep.subr.mxu0 0.0
    %1839 = vmatpush1.msra.mxu0 0.0
    %1840 = vmatprep.subr.mxu0 0.0
    %1841 = vmatpush1.msra.mxu0 0.0
    %1842 = vmatprep.subr.mxu0 0.0
    %1843 = vmatpush1.msra.mxu0 0.0
    %1844 = vmatprep.subr.mxu0 0.0
    %1845 = vmatpush1.msra.mxu0 0.0
    %1846 = vmatprep.subr.mxu0 0.0
    %1847 = vmatpush1.msra.mxu0 %v1818
    %1848 = vmatprep.subr.mxu0 0.0
    %1849 = vmatpush1.msra.mxu0 %v1817
    %1850 = vmatprep.subr.mxu0 0.0
    %1851 = vmatpush1.msra.mxu0 %v1816
    %1852 = vmatprep.subr.mxu0 0.0
    %1853 = vmatpush1.msra.mxu0 %v1815
    %1854 = vmatprep.subr.mxu0 0.0
    %1855 = vmatpush2.msra.mxu0 0.0
    %1856 = vmatprep.subr.mxu0 0.0
    %1857 = vmatpush2.msra.mxu0 0.0
    %1858 = vmatprep.subr.mxu0 0.0
    %1859 = vmatpush2.msra.mxu0 0.0
    %1860 = vmatprep.subr.mxu0 0.0
    %1861 = vmatpush2.msra.mxu0 0.0
    %1862 = vmatprep.subr.mxu0 0.0
    %1863 = vmatpush2.msra.mxu0 0.0
    %1864 = vmatprep.subr.mxu0 0.0
    %1865 = vmatpush2.msra.mxu0 0.0
    %1866 = vmatprep.subr.mxu0 0.0
    %1867 = vmatpush2.msra.mxu0 0.0
    %1868 = vmatprep.subr.mxu0 0.0
    %1869 = vmatpush2.msra.mxu0 0.0
    %1870 = vmatprep.subr.mxu0 0.0
    %1871 = vmatpush2.msra.mxu0 0.0
    %1872 = vmatprep.subr.mxu0 0.0
    %1873 = vmatpush2.msra.mxu0 0.0
    %1874 = vmatprep.subr.mxu0 0.0
    %1875 = vmatpush2.msra.mxu0 0.0
    %1876 = vmatprep.subr.mxu0 0.0
    %1877 = vmatpush2.msra.mxu0 0.0
    %1878 = vmatprep.subr.mxu0 0.0
    %1879 = vmatpush2.msra.mxu0 0.0
    %1880 = vmatprep.subr.mxu0 0.0
    %1881 = vmatpush2.msra.mxu0 0.0
    %1882 = vmatprep.subr.mxu0 0.0
    %1883 = vmatpush2.msra.mxu0 0.0
    %1884 = vmatprep.subr.mxu0 0.0
    %1885 = vmatpush2.msra.mxu0 0.0
    %1886 = vmatprep.mubr.f32.mxu0 0.0
    %1887 = vmatmul.mubr.f32.gmra.mxu0 %v1820
    %v1888 = vpop.f32.mrf.mxu0
    %v1889 = vadd.f32 0.0, %v1888
    %v1890 = vpop.f32.mrf.mxu0
    %1891 = vdwg.mxu0
    %v1892 = vld [vmem:[#allocation6] sm:$0x3]
    %v1893 = vadd.f32 %v1892, %v1889
    %v1894 = vld [vmem:[#allocation5] sm:$0x3]
    %v1895 = vsub.f32 0.0, %v1894
    %v1896 = vadd.f32 %v1895, %v1893
    %v1897 = vmul.f32 %v1896, 0.1
    %v1898 = vadd.f32 %v1894, %v1897
    %v1899 = vmul.f32 %v1893, -0.2
    %v1900 = vadd.f32 %v1893, %v1899
    %1901 = vst.msk [vmem:[#allocation5] sm:$0x3] %vm336, %v1898
    %1902 = vst.msk [vmem:[#allocation6] sm:$0x3] %vm336, %v1900
    %s1903 = scalar_lea.vmem [#allocation8], 10
    %1904 = vst.msk [vmem:[%s1903] sm:$0x3] %vm336, %v1898
    %s1905 = scalar_lea.vmem %s0, 24
    %v1906 = vld [vmem:[%s1905] sm:$0xf]
    %1907 = vst [vmem:[#allocation7] sm:$0xf] %v1906
    %v1908 = vld [vmem:[#allocation2] sm:$0x3]
    %1909 = vst.msk [vmem:[#allocation7 + $0x4] sm:$0x3] %vm29, %v1908
    %v1910 = vld [vmem:[#allocation3] sm:$0x3]
    %v1911 = vld [vmem:[#allocation4] sm:$0x3]
    %v1912 = vsub.f32 0.0, %v1910
    %v1913 = vadd.f32 %v1912, %v1911
    %v1914 = vmul.f32 %v1913, 0.1
    %v1915 = vadd.f32 %v1910, %v1914
    %v1916 = vmul.f32 %v1911, -0.2
    %v1917 = vadd.f32 %v1911, %v1916
    %v1918 = vsub.f32 %v1915, 1.0
    %vm1919 = vcmp.gt.f32.partialorder %v1918, 0.0
    %v1920 = vsel %vm1919, 1, 0
    %v1921 = vcvt.s32.f32 %v1920
    %v1922 = vsub.f32 1.0, %v1921
    %v1923 = vmul.f32 %v1922, %v1915
    %v1924 = vmul.f32 %v1921, 0.0
    %v1925 = vadd.f32 %v1923, %v1924
    %v1926 = vld [vmem:[#allocation7] sm:$0x3f]
    %v1927 = vld [vmem:[%s1] sm:$0xff]
    %v1928 = vld [vmem:[%s1 + $0x8] sm:$0xff]
    %v1929 = vld [vmem:[%s1 + $0x10] sm:$0xff]
    %v1930 = vld [vmem:[%s1 + $0x18] sm:$0xff]
    %v1931 = vld [vmem:[%s1 + $0x20] sm:$0xff]
    %v1932 = vld [vmem:[%s1 + $0x28] sm:$0xff]
    %v1933 = vld [vmem:[%s1 + $0x30] sm:$0xff]
    %v1934 = vld [vmem:[%s1 + $0x38] sm:$0xff]
    %v1935 = vld [vmem:[%s1 + $0x40] sm:$0xff]
    %v1936 = vld [vmem:[%s1 + $0x48] sm:$0xff]
    %v1937 = vld [vmem:[%s1 + $0x50] sm:$0xff]
    %v1938 = vld [vmem:[%s1 + $0x58] sm:$0xff]
    %v1939 = vld [vmem:[%s1 + $0x60] sm:$0xff]
    %v1940 = vld [vmem:[%s1 + $0x68] sm:$0xff]
    %v1941 = vld [vmem:[%s1 + $0x70] sm:$0xff]
    %v1942 = vld [vmem:[%s1 + $0x78] sm:$0xff]
    %v1943 = vld [vmem:[%s1 + $0x80] sm:$0xff]
    %v1944 = vld [vmem:[%s1 + $0x88] sm:$0xff]
    %v1945 = vld [vmem:[%s1 + $0x90] sm:$0xff]
    %v1946 = vld [vmem:[%s1 + $0x98] sm:$0xff]
    %v1947 = vld [vmem:[%s1 + $0xa0] sm:$0xff]
    %v1948 = vld [vmem:[%s1 + $0xa8] sm:$0xff]
    %v1949 = vld [vmem:[%s1 + $0xb0] sm:$0xff]
    %v1950 = vld [vmem:[%s1 + $0xb8] sm:$0xff]
    %v1951 = vld [vmem:[%s1 + $0xc0] sm:$0xff]
    %v1952 = vld [vmem:[%s1 + $0xc8] sm:$0xff]
    %v1953 = vld [vmem:[%s1 + $0xd0] sm:$0xff]
    %v1954 = vld [vmem:[%s1 + $0xd8] sm:$0xff]
    %v1955 = vld [vmem:[%s1 + $0xe0] sm:$0xff]
    %v1956 = vld [vmem:[%s1 + $0xe8] sm:$0xff]
    %v1957 = vld [vmem:[%s1 + $0xf0] sm:$0xff]
    %v1958 = vld [vmem:[%s1 + $0xf8] sm:$0xff]
    %v1959 = vld [vmem:[%s1 + $0x100] sm:$0xff]
    %v1960 = vld [vmem:[%s1 + $0x108] sm:$0xff]
    %v1961 = vld [vmem:[%s1 + $0x110] sm:$0xff]
    %v1962 = vld [vmem:[%s1 + $0x118] sm:$0xff]
    %v1964 = vcombine.high %v1926, %v1926
    %v1966 = vunpack.c.l.s4 1983009808
    %v1967 = vunpack.c.0.s8 %v1966
    %v1968 = vlaneseq
    %v1969 = vshrl.u32 %v1968, 7
    %v1970 = vsub.s32 %v1967, %v1969
    %v1971 = vrot.slane %v1926, %v1970
    %v1973 = vunpack.c.l.s4 1983009808
    %v1974 = vunpack.c.0.s8 %v1973
    %v1975 = vlaneseq
    %v1976 = vshrl.u32 %v1975, 7
    %v1977 = vsub.s32 %v1974, %v1976
    %v1978 = vrot.slane %v1964, %v1977
    %v1979 = vcombine.high %v1971, %v1971
    %v1982 = vsel %vm103, %v1978, 0
    %1984 = vmatprep.subr.mxu0 0.0
    %1985 = vmatpush1.msra.mxu0 %v1942
    %1986 = vmatprep.subr.mxu0 0.0
    %1987 = vmatpush1.msra.mxu0 %v1941
    %1988 = vmatprep.subr.mxu0 0.0
    %1989 = vmatpush1.msra.mxu0 %v1940
    %1990 = vmatprep.subr.mxu0 0.0
    %1991 = vmatpush1.msra.mxu0 %v1939
    %1992 = vmatprep.subr.mxu0 0.0
    %1993 = vmatpush1.msra.mxu0 %v1938
    %1994 = vmatprep.subr.mxu0 0.0
    %1995 = vmatpush1.msra.mxu0 %v1937
    %1996 = vmatprep.subr.mxu0 0.0
    %1997 = vmatpush1.msra.mxu0 %v1936
    %1998 = vmatprep.subr.mxu0 0.0
    %1999 = vmatpush1.msra.mxu0 %v1935
    %2000 = vmatprep.subr.mxu0 0.0
    %2001 = vmatpush1.msra.mxu0 %v1934
    %2002 = vmatprep.subr.mxu0 0.0
    %2003 = vmatpush1.msra.mxu0 %v1933
    %2004 = vmatprep.subr.mxu0 0.0
    %2005 = vmatpush1.msra.mxu0 %v1932
    %2006 = vmatprep.subr.mxu0 0.0
    %2007 = vmatpush1.msra.mxu0 %v1931
    %2008 = vmatprep.subr.mxu0 0.0
    %2009 = vmatpush1.msra.mxu0 %v1930
    %2010 = vmatprep.subr.mxu0 0.0
    %2011 = vmatpush1.msra.mxu0 %v1929
    %2012 = vmatprep.subr.mxu0 0.0
    %2013 = vmatpush1.msra.mxu0 %v1928
    %2014 = vmatprep.subr.mxu0 0.0
    %2015 = vmatpush1.msra.mxu0 %v1927
    %2016 = vmatprep.subr.mxu0 0.0
    %2017 = vmatpush2.msra.mxu0 %v1958
    %2018 = vmatprep.subr.mxu0 0.0
    %2019 = vmatpush2.msra.mxu0 %v1957
    %2020 = vmatprep.subr.mxu0 0.0
    %2021 = vmatpush2.msra.mxu0 %v1956
    %2022 = vmatprep.subr.mxu0 0.0
    %2023 = vmatpush2.msra.mxu0 %v1955
    %2024 = vmatprep.subr.mxu0 0.0
    %2025 = vmatpush2.msra.mxu0 %v1954
    %2026 = vmatprep.subr.mxu0 0.0
    %2027 = vmatpush2.msra.mxu0 %v1953
    %2028 = vmatprep.subr.mxu0 0.0
    %2029 = vmatpush2.msra.mxu0 %v1952
    %2030 = vmatprep.subr.mxu0 0.0
    %2031 = vmatpush2.msra.mxu0 %v1951
    %2032 = vmatprep.subr.mxu0 0.0
    %2033 = vmatpush2.msra.mxu0 %v1950
    %2034 = vmatprep.subr.mxu0 0.0
    %2035 = vmatpush2.msra.mxu0 %v1949
    %2036 = vmatprep.subr.mxu0 0.0
    %2037 = vmatpush2.msra.mxu0 %v1948
    %2038 = vmatprep.subr.mxu0 0.0
    %2039 = vmatpush2.msra.mxu0 %v1947
    %2040 = vmatprep.subr.mxu0 0.0
    %2041 = vmatpush2.msra.mxu0 %v1946
    %2042 = vmatprep.subr.mxu0 0.0
    %2043 = vmatpush2.msra.mxu0 %v1945
    %2044 = vmatprep.subr.mxu0 0.0
    %2045 = vmatpush2.msra.mxu0 %v1944
    %2046 = vmatprep.subr.mxu0 0.0
    %2047 = vmatpush2.msra.mxu0 %v1943
    %2048 = vmatprep.mubr.f32.mxu0 %v1979
    %2049 = vmatmul.mubr.f32.gmra.mxu0 %v1971
    %v2050 = vpop.f32.mrf.mxu0
    %v2051 = vadd.f32 0.0, %v2050
    %v2052 = vpop.f32.mrf.mxu0
    %2053 = vdwg.mxu0
    %2054 = vmatprep.subr.mxu0 0.0
    %2055 = vmatpush1.msra.mxu0 0.0
    %2056 = vmatprep.subr.mxu0 0.0
    %2057 = vmatpush1.msra.mxu0 0.0
    %2058 = vmatprep.subr.mxu0 0.0
    %2059 = vmatpush1.msra.mxu0 0.0
    %2060 = vmatprep.subr.mxu0 0.0
    %2061 = vmatpush1.msra.mxu0 0.0
    %2062 = vmatprep.subr.mxu0 0.0
    %2063 = vmatpush1.msra.mxu0 0.0
    %2064 = vmatprep.subr.mxu0 0.0
    %2065 = vmatpush1.msra.mxu0 0.0
    %2066 = vmatprep.subr.mxu0 0.0
    %2067 = vmatpush1.msra.mxu0 0.0
    %2068 = vmatprep.subr.mxu0 0.0
    %2069 = vmatpush1.msra.mxu0 0.0
    %2070 = vmatprep.subr.mxu0 0.0
    %2071 = vmatpush1.msra.mxu0 0.0
    %2072 = vmatprep.subr.mxu0 0.0
    %2073 = vmatpush1.msra.mxu0 0.0
    %2074 = vmatprep.subr.mxu0 0.0
    %2075 = vmatpush1.msra.mxu0 0.0
    %2076 = vmatprep.subr.mxu0 0.0
    %2077 = vmatpush1.msra.mxu0 0.0
    %2078 = vmatprep.subr.mxu0 0.0
    %2079 = vmatpush1.msra.mxu0 %v1962
    %2080 = vmatprep.subr.mxu0 0.0
    %2081 = vmatpush1.msra.mxu0 %v1961
    %2082 = vmatprep.subr.mxu0 0.0
    %2083 = vmatpush1.msra.mxu0 %v1960
    %2084 = vmatprep.subr.mxu0 0.0
    %2085 = vmatpush1.msra.mxu0 %v1959
    %2086 = vmatprep.subr.mxu0 0.0
    %2087 = vmatpush2.msra.mxu0 0.0
    %2088 = vmatprep.subr.mxu0 0.0
    %2089 = vmatpush2.msra.mxu0 0.0
    %2090 = vmatprep.subr.mxu0 0.0
    %2091 = vmatpush2.msra.mxu0 0.0
    %2092 = vmatprep.subr.mxu0 0.0
    %2093 = vmatpush2.msra.mxu0 0.0
    %2094 = vmatprep.subr.mxu0 0.0
    %2095 = vmatpush2.msra.mxu0 0.0
    %2096 = vmatprep.subr.mxu0 0.0
    %2097 = vmatpush2.msra.mxu0 0.0
    %2098 = vmatprep.subr.mxu0 0.0
    %2099 = vmatpush2.msra.mxu0 0.0
    %2100 = vmatprep.subr.mxu0 0.0
    %2101 = vmatpush2.msra.mxu0 0.0
    %2102 = vmatprep.subr.mxu0 0.0
    %2103 = vmatpush2.msra.mxu0 0.0
    %2104 = vmatprep.subr.mxu0 0.0
    %2105 = vmatpush2.msra.mxu0 0.0
    %2106 = vmatprep.subr.mxu0 0.0
    %2107 = vmatpush2.msra.mxu0 0.0
    %2108 = vmatprep.subr.mxu0 0.0
    %2109 = vmatpush2.msra.mxu0 0.0
    %2110 = vmatprep.subr.mxu0 0.0
    %2111 = vmatpush2.msra.mxu0 0.0
    %2112 = vmatprep.subr.mxu0 0.0
    %2113 = vmatpush2.msra.mxu0 0.0
    %2114 = vmatprep.subr.mxu0 0.0
    %2115 = vmatpush2.msra.mxu0 0.0
    %2116 = vmatprep.subr.mxu0 0.0
    %2117 = vmatpush2.msra.mxu0 0.0
    %2118 = vmatprep.mubr.f32.mxu0 0.0
    %2119 = vmatmul.mubr.f32.gmra.mxu0 %v1982
    %v2120 = vpop.f32.mrf.mxu0
    %v2121 = vadd.f32 %v2051, %v2120
    %v2122 = vpop.f32.mrf.mxu0
    %2123 = vdwg.mxu0
    %v2124 = vadd.f32 %v1917, %v2121
    %2125 = vst.msk [vmem:[#allocation2] sm:$0x3] %vm29, %v1921
    %2126 = vst.msk [vmem:[#allocation3] sm:$0x3] %vm29, %v1925
    %2127 = vst.msk [vmem:[#allocation4] sm:$0x3] %vm29, %v2124
    %v2128 = vld [vmem:[%s2] sm:$0xff]
    %v2129 = vld [vmem:[%s2 + $0x8] sm:$0xff]
    %v2130 = vld [vmem:[%s2 + $0x10] sm:$0xff]
    %v2131 = vld [vmem:[%s2 + $0x18] sm:$0xff]
    %v2133 = vsel %vm103, %v1921, 0
    %2135 = vmatprep.subr.mxu0 0.0
    %2136 = vmatpush1.msra.mxu0 0.0
    %2137 = vmatprep.subr.mxu0 0.0
    %2138 = vmatpush1.msra.mxu0 0.0
    %2139 = vmatprep.subr.mxu0 0.0
    %2140 = vmatpush1.msra.mxu0 0.0
    %2141 = vmatprep.subr.mxu0 0.0
    %2142 = vmatpush1.msra.mxu0 0.0
    %2143 = vmatprep.subr.mxu0 0.0
    %2144 = vmatpush1.msra.mxu0 0.0
    %2145 = vmatprep.subr.mxu0 0.0
    %2146 = vmatpush1.msra.mxu0 0.0
    %2147 = vmatprep.subr.mxu0 0.0
    %2148 = vmatpush1.msra.mxu0 0.0
    %2149 = vmatprep.subr.mxu0 0.0
    %2150 = vmatpush1.msra.mxu0 0.0
    %2151 = vmatprep.subr.mxu0 0.0
    %2152 = vmatpush1.msra.mxu0 0.0
    %2153 = vmatprep.subr.mxu0 0.0
    %2154 = vmatpush1.msra.mxu0 0.0
    %2155 = vmatprep.subr.mxu0 0.0
    %2156 = vmatpush1.msra.mxu0 0.0
    %2157 = vmatprep.subr.mxu0 0.0
    %2158 = vmatpush1.msra.mxu0 0.0
    %2159 = vmatprep.subr.mxu0 0.0
    %2160 = vmatpush1.msra.mxu0 %v2131
    %2161 = vmatprep.subr.mxu0 0.0
    %2162 = vmatpush1.msra.mxu0 %v2130
    %2163 = vmatprep.subr.mxu0 0.0
    %2164 = vmatpush1.msra.mxu0 %v2129
    %2165 = vmatprep.subr.mxu0 0.0
    %2166 = vmatpush1.msra.mxu0 %v2128
    %2167 = vmatprep.subr.mxu0 0.0
    %2168 = vmatpush2.msra.mxu0 0.0
    %2169 = vmatprep.subr.mxu0 0.0
    %2170 = vmatpush2.msra.mxu0 0.0
    %2171 = vmatprep.subr.mxu0 0.0
    %2172 = vmatpush2.msra.mxu0 0.0
    %2173 = vmatprep.subr.mxu0 0.0
    %2174 = vmatpush2.msra.mxu0 0.0
    %2175 = vmatprep.subr.mxu0 0.0
    %2176 = vmatpush2.msra.mxu0 0.0
    %2177 = vmatprep.subr.mxu0 0.0
    %2178 = vmatpush2.msra.mxu0 0.0
    %2179 = vmatprep.subr.mxu0 0.0
    %2180 = vmatpush2.msra.mxu0 0.0
    %2181 = vmatprep.subr.mxu0 0.0
    %2182 = vmatpush2.msra.mxu0 0.0
    %2183 = vmatprep.subr.mxu0 0.0
    %2184 = vmatpush2.msra.mxu0 0.0
    %2185 = vmatprep.subr.mxu0 0.0
    %2186 = vmatpush2.msra.mxu0 0.0
    %2187 = vmatprep.subr.mxu0 0.0
    %2188 = vmatpush2.msra.mxu0 0.0
    %2189 = vmatprep.subr.mxu0 0.0
    %2190 = vmatpush2.msra.mxu0 0.0
    %2191 = vmatprep.subr.mxu0 0.0
    %2192 = vmatpush2.msra.mxu0 0.0
    %2193 = vmatprep.subr.mxu0 0.0
    %2194 = vmatpush2.msra.mxu0 0.0
    %2195 = vmatprep.subr.mxu0 0.0
    %2196 = vmatpush2.msra.mxu0 0.0
    %2197 = vmatprep.subr.mxu0 0.0
    %2198 = vmatpush2.msra.mxu0 0.0
    %2199 = vmatprep.mubr.f32.mxu0 0.0
    %2200 = vmatmul.mubr.f32.gmra.mxu0 %v2133
    %v2201 = vpop.f32.mrf.mxu0
    %v2202 = vadd.f32 0.0, %v2201
    %v2203 = vpop.f32.mrf.mxu0
    %2204 = vdwg.mxu0
    %v2205 = vld [vmem:[#allocation6] sm:$0x3]
    %v2206 = vadd.f32 %v2205, %v2202
    %v2207 = vld [vmem:[#allocation5] sm:$0x3]
    %v2208 = vsub.f32 0.0, %v2207
    %v2209 = vadd.f32 %v2208, %v2206
    %v2210 = vmul.f32 %v2209, 0.1
    %v2211 = vadd.f32 %v2207, %v2210
    %v2212 = vmul.f32 %v2206, -0.2
    %v2213 = vadd.f32 %v2206, %v2212
    %2214 = vst.msk [vmem:[#allocation5] sm:$0x3] %vm336, %v2211
    %2215 = vst.msk [vmem:[#allocation6] sm:$0x3] %vm336, %v2213
    %s2216 = scalar_lea.vmem [#allocation8], 12
    %2217 = vst.msk [vmem:[%s2216] sm:$0x3] %vm336, %v2211
    %s2218 = scalar_lea.vmem %s0, 28
    %v2219 = vld [vmem:[%s2218] sm:$0xf]
    %2220 = vst [vmem:[#allocation7] sm:$0xf] %v2219
    %v2221 = vld [vmem:[#allocation2] sm:$0x3]
    %2222 = vst.msk [vmem:[#allocation7 + $0x4] sm:$0x3] %vm29, %v2221
    %v2223 = vld [vmem:[#allocation3] sm:$0x3]
    %v2224 = vld [vmem:[#allocation4] sm:$0x3]
    %v2225 = vsub.f32 0.0, %v2223
    %v2226 = vadd.f32 %v2225, %v2224
    %v2227 = vmul.f32 %v2226, 0.1
    %v2228 = vadd.f32 %v2223, %v2227
    %v2229 = vmul.f32 %v2224, -0.2
    %v2230 = vadd.f32 %v2224, %v2229
    %v2231 = vsub.f32 %v2228, 1.0
    %vm2232 = vcmp.gt.f32.partialorder %v2231, 0.0
    %v2233 = vsel %vm2232, 1, 0
    %v2234 = vcvt.s32.f32 %v2233
    %v2235 = vsub.f32 1.0, %v2234
    %v2236 = vmul.f32 %v2235, %v2228
    %v2237 = vmul.f32 %v2234, 0.0
    %v2238 = vadd.f32 %v2236, %v2237
    %v2239 = vld [vmem:[#allocation7] sm:$0x3f]
    %v2240 = vld [vmem:[%s1] sm:$0xff]
    %v2241 = vld [vmem:[%s1 + $0x8] sm:$0xff]
    %v2242 = vld [vmem:[%s1 + $0x10] sm:$0xff]
    %v2243 = vld [vmem:[%s1 + $0x18] sm:$0xff]
    %v2244 = vld [vmem:[%s1 + $0x20] sm:$0xff]
    %v2245 = vld [vmem:[%s1 + $0x28] sm:$0xff]
    %v2246 = vld [vmem:[%s1 + $0x30] sm:$0xff]
    %v2247 = vld [vmem:[%s1 + $0x38] sm:$0xff]
    %v2248 = vld [vmem:[%s1 + $0x40] sm:$0xff]
    %v2249 = vld [vmem:[%s1 + $0x48] sm:$0xff]
    %v2250 = vld [vmem:[%s1 + $0x50] sm:$0xff]
    %v2251 = vld [vmem:[%s1 + $0x58] sm:$0xff]
    %v2252 = vld [vmem:[%s1 + $0x60] sm:$0xff]
    %v2253 = vld [vmem:[%s1 + $0x68] sm:$0xff]
    %v2254 = vld [vmem:[%s1 + $0x70] sm:$0xff]
    %v2255 = vld [vmem:[%s1 + $0x78] sm:$0xff]
    %v2256 = vld [vmem:[%s1 + $0x80] sm:$0xff]
    %v2257 = vld [vmem:[%s1 + $0x88] sm:$0xff]
    %v2258 = vld [vmem:[%s1 + $0x90] sm:$0xff]
    %v2259 = vld [vmem:[%s1 + $0x98] sm:$0xff]
    %v2260 = vld [vmem:[%s1 + $0xa0] sm:$0xff]
    %v2261 = vld [vmem:[%s1 + $0xa8] sm:$0xff]
    %v2262 = vld [vmem:[%s1 + $0xb0] sm:$0xff]
    %v2263 = vld [vmem:[%s1 + $0xb8] sm:$0xff]
    %v2264 = vld [vmem:[%s1 + $0xc0] sm:$0xff]
    %v2265 = vld [vmem:[%s1 + $0xc8] sm:$0xff]
    %v2266 = vld [vmem:[%s1 + $0xd0] sm:$0xff]
    %v2267 = vld [vmem:[%s1 + $0xd8] sm:$0xff]
    %v2268 = vld [vmem:[%s1 + $0xe0] sm:$0xff]
    %v2269 = vld [vmem:[%s1 + $0xe8] sm:$0xff]
    %v2270 = vld [vmem:[%s1 + $0xf0] sm:$0xff]
    %v2271 = vld [vmem:[%s1 + $0xf8] sm:$0xff]
    %v2272 = vld [vmem:[%s1 + $0x100] sm:$0xff]
    %v2273 = vld [vmem:[%s1 + $0x108] sm:$0xff]
    %v2274 = vld [vmem:[%s1 + $0x110] sm:$0xff]
    %v2275 = vld [vmem:[%s1 + $0x118] sm:$0xff]
    %v2277 = vcombine.high %v2239, %v2239
    %v2279 = vunpack.c.l.s4 1983009808
    %v2280 = vunpack.c.0.s8 %v2279
    %v2281 = vlaneseq
    %v2282 = vshrl.u32 %v2281, 7
    %v2283 = vsub.s32 %v2280, %v2282
    %v2284 = vrot.slane %v2239, %v2283
    %v2286 = vunpack.c.l.s4 1983009808
    %v2287 = vunpack.c.0.s8 %v2286
    %v2288 = vlaneseq
    %v2289 = vshrl.u32 %v2288, 7
    %v2290 = vsub.s32 %v2287, %v2289
    %v2291 = vrot.slane %v2277, %v2290
    %v2292 = vcombine.high %v2284, %v2284
    %v2295 = vsel %vm103, %v2291, 0
    %2297 = vmatprep.subr.mxu0 0.0
    %2298 = vmatpush1.msra.mxu0 %v2255
    %2299 = vmatprep.subr.mxu0 0.0
    %2300 = vmatpush1.msra.mxu0 %v2254
    %2301 = vmatprep.subr.mxu0 0.0
    %2302 = vmatpush1.msra.mxu0 %v2253
    %2303 = vmatprep.subr.mxu0 0.0
    %2304 = vmatpush1.msra.mxu0 %v2252
    %2305 = vmatprep.subr.mxu0 0.0
    %2306 = vmatpush1.msra.mxu0 %v2251
    %2307 = vmatprep.subr.mxu0 0.0
    %2308 = vmatpush1.msra.mxu0 %v2250
    %2309 = vmatprep.subr.mxu0 0.0
    %2310 = vmatpush1.msra.mxu0 %v2249
    %2311 = vmatprep.subr.mxu0 0.0
    %2312 = vmatpush1.msra.mxu0 %v2248
    %2313 = vmatprep.subr.mxu0 0.0
    %2314 = vmatpush1.msra.mxu0 %v2247
    %2315 = vmatprep.subr.mxu0 0.0
    %2316 = vmatpush1.msra.mxu0 %v2246
    %2317 = vmatprep.subr.mxu0 0.0
    %2318 = vmatpush1.msra.mxu0 %v2245
    %2319 = vmatprep.subr.mxu0 0.0
    %2320 = vmatpush1.msra.mxu0 %v2244
    %2321 = vmatprep.subr.mxu0 0.0
    %2322 = vmatpush1.msra.mxu0 %v2243
    %2323 = vmatprep.subr.mxu0 0.0
    %2324 = vmatpush1.msra.mxu0 %v2242
    %2325 = vmatprep.subr.mxu0 0.0
    %2326 = vmatpush1.msra.mxu0 %v2241
    %2327 = vmatprep.subr.mxu0 0.0
    %2328 = vmatpush1.msra.mxu0 %v2240
    %2329 = vmatprep.subr.mxu0 0.0
    %2330 = vmatpush2.msra.mxu0 %v2271
    %2331 = vmatprep.subr.mxu0 0.0
    %2332 = vmatpush2.msra.mxu0 %v2270
    %2333 = vmatprep.subr.mxu0 0.0
    %2334 = vmatpush2.msra.mxu0 %v2269
    %2335 = vmatprep.subr.mxu0 0.0
    %2336 = vmatpush2.msra.mxu0 %v2268
    %2337 = vmatprep.subr.mxu0 0.0
    %2338 = vmatpush2.msra.mxu0 %v2267
    %2339 = vmatprep.subr.mxu0 0.0
    %2340 = vmatpush2.msra.mxu0 %v2266
    %2341 = vmatprep.subr.mxu0 0.0
    %2342 = vmatpush2.msra.mxu0 %v2265
    %2343 = vmatprep.subr.mxu0 0.0
    %2344 = vmatpush2.msra.mxu0 %v2264
    %2345 = vmatprep.subr.mxu0 0.0
    %2346 = vmatpush2.msra.mxu0 %v2263
    %2347 = vmatprep.subr.mxu0 0.0
    %2348 = vmatpush2.msra.mxu0 %v2262
    %2349 = vmatprep.subr.mxu0 0.0
    %2350 = vmatpush2.msra.mxu0 %v2261
    %2351 = vmatprep.subr.mxu0 0.0
    %2352 = vmatpush2.msra.mxu0 %v2260
    %2353 = vmatprep.subr.mxu0 0.0
    %2354 = vmatpush2.msra.mxu0 %v2259
    %2355 = vmatprep.subr.mxu0 0.0
    %2356 = vmatpush2.msra.mxu0 %v2258
    %2357 = vmatprep.subr.mxu0 0.0
    %2358 = vmatpush2.msra.mxu0 %v2257
    %2359 = vmatprep.subr.mxu0 0.0
    %2360 = vmatpush2.msra.mxu0 %v2256
    %2361 = vmatprep.mubr.f32.mxu0 %v2292
    %2362 = vmatmul.mubr.f32.gmra.mxu0 %v2284
    %v2363 = vpop.f32.mrf.mxu0
    %v2364 = vadd.f32 0.0, %v2363
    %v2365 = vpop.f32.mrf.mxu0
    %2366 = vdwg.mxu0
    %2367 = vmatprep.subr.mxu0 0.0
    %2368 = vmatpush1.msra.mxu0 0.0
    %2369 = vmatprep.subr.mxu0 0.0
    %2370 = vmatpush1.msra.mxu0 0.0
    %2371 = vmatprep.subr.mxu0 0.0
    %2372 = vmatpush1.msra.mxu0 0.0
    %2373 = vmatprep.subr.mxu0 0.0
    %2374 = vmatpush1.msra.mxu0 0.0
    %2375 = vmatprep.subr.mxu0 0.0
    %2376 = vmatpush1.msra.mxu0 0.0
    %2377 = vmatprep.subr.mxu0 0.0
    %2378 = vmatpush1.msra.mxu0 0.0
    %2379 = vmatprep.subr.mxu0 0.0
    %2380 = vmatpush1.msra.mxu0 0.0
    %2381 = vmatprep.subr.mxu0 0.0
    %2382 = vmatpush1.msra.mxu0 0.0
    %2383 = vmatprep.subr.mxu0 0.0
    %2384 = vmatpush1.msra.mxu0 0.0
    %2385 = vmatprep.subr.mxu0 0.0
    %2386 = vmatpush1.msra.mxu0 0.0
    %2387 = vmatprep.subr.mxu0 0.0
    %2388 = vmatpush1.msra.mxu0 0.0
    %2389 = vmatprep.subr.mxu0 0.0
    %2390 = vmatpush1.msra.mxu0 0.0
    %2391 = vmatprep.subr.mxu0 0.0
    %2392 = vmatpush1.msra.mxu0 %v2275
    %2393 = vmatprep.subr.mxu0 0.0
    %2394 = vmatpush1.msra.mxu0 %v2274
    %2395 = vmatprep.subr.mxu0 0.0
    %2396 = vmatpush1.msra.mxu0 %v2273
    %2397 = vmatprep.subr.mxu0 0.0
    %2398 = vmatpush1.msra.mxu0 %v2272
    %2399 = vmatprep.subr.mxu0 0.0
    %2400 = vmatpush2.msra.mxu0 0.0
    %2401 = vmatprep.subr.mxu0 0.0
    %2402 = vmatpush2.msra.mxu0 0.0
    %2403 = vmatprep.subr.mxu0 0.0
    %2404 = vmatpush2.msra.mxu0 0.0
    %2405 = vmatprep.subr.mxu0 0.0
    %2406 = vmatpush2.msra.mxu0 0.0
    %2407 = vmatprep.subr.mxu0 0.0
    %2408 = vmatpush2.msra.mxu0 0.0
    %2409 = vmatprep.subr.mxu0 0.0
    %2410 = vmatpush2.msra.mxu0 0.0
    %2411 = vmatprep.subr.mxu0 0.0
    %2412 = vmatpush2.msra.mxu0 0.0
    %2413 = vmatprep.subr.mxu0 0.0
    %2414 = vmatpush2.msra.mxu0 0.0
    %2415 = vmatprep.subr.mxu0 0.0
    %2416 = vmatpush2.msra.mxu0 0.0
    %2417 = vmatprep.subr.mxu0 0.0
    %2418 = vmatpush2.msra.mxu0 0.0
    %2419 = vmatprep.subr.mxu0 0.0
    %2420 = vmatpush2.msra.mxu0 0.0
    %2421 = vmatprep.subr.mxu0 0.0
    %2422 = vmatpush2.msra.mxu0 0.0
    %2423 = vmatprep.subr.mxu0 0.0
    %2424 = vmatpush2.msra.mxu0 0.0
    %2425 = vmatprep.subr.mxu0 0.0
    %2426 = vmatpush2.msra.mxu0 0.0
    %2427 = vmatprep.subr.mxu0 0.0
    %2428 = vmatpush2.msra.mxu0 0.0
    %2429 = vmatprep.subr.mxu0 0.0
    %2430 = vmatpush2.msra.mxu0 0.0
    %2431 = vmatprep.mubr.f32.mxu0 0.0
    %2432 = vmatmul.mubr.f32.gmra.mxu0 %v2295
    %v2433 = vpop.f32.mrf.mxu0
    %v2434 = vadd.f32 %v2364, %v2433
    %v2435 = vpop.f32.mrf.mxu0
    %2436 = vdwg.mxu0
    %v2437 = vadd.f32 %v2230, %v2434
    %2438 = vst.msk [vmem:[#allocation2] sm:$0x3] %vm29, %v2234
    %2439 = vst.msk [vmem:[#allocation3] sm:$0x3] %vm29, %v2238
    %2440 = vst.msk [vmem:[#allocation4] sm:$0x3] %vm29, %v2437
    %v2441 = vld [vmem:[%s2] sm:$0xff]
    %v2442 = vld [vmem:[%s2 + $0x8] sm:$0xff]
    %v2443 = vld [vmem:[%s2 + $0x10] sm:$0xff]
    %v2444 = vld [vmem:[%s2 + $0x18] sm:$0xff]
    %v2446 = vsel %vm103, %v2234, 0
    %2448 = vmatprep.subr.mxu0 0.0
    %2449 = vmatpush1.msra.mxu0 0.0
    %2450 = vmatprep.subr.mxu0 0.0
    %2451 = vmatpush1.msra.mxu0 0.0
    %2452 = vmatprep.subr.mxu0 0.0
    %2453 = vmatpush1.msra.mxu0 0.0
    %2454 = vmatprep.subr.mxu0 0.0
    %2455 = vmatpush1.msra.mxu0 0.0
    %2456 = vmatprep.subr.mxu0 0.0
    %2457 = vmatpush1.msra.mxu0 0.0
    %2458 = vmatprep.subr.mxu0 0.0
    %2459 = vmatpush1.msra.mxu0 0.0
    %2460 = vmatprep.subr.mxu0 0.0
    %2461 = vmatpush1.msra.mxu0 0.0
    %2462 = vmatprep.subr.mxu0 0.0
    %2463 = vmatpush1.msra.mxu0 0.0
    %2464 = vmatprep.subr.mxu0 0.0
    %2465 = vmatpush1.msra.mxu0 0.0
    %2466 = vmatprep.subr.mxu0 0.0
    %2467 = vmatpush1.msra.mxu0 0.0
    %2468 = vmatprep.subr.mxu0 0.0
    %2469 = vmatpush1.msra.mxu0 0.0
    %2470 = vmatprep.subr.mxu0 0.0
    %2471 = vmatpush1.msra.mxu0 0.0
    %2472 = vmatprep.subr.mxu0 0.0
    %2473 = vmatpush1.msra.mxu0 %v2444
    %2474 = vmatprep.subr.mxu0 0.0
    %2475 = vmatpush1.msra.mxu0 %v2443
    %2476 = vmatprep.subr.mxu0 0.0
    %2477 = vmatpush1.msra.mxu0 %v2442
    %2478 = vmatprep.subr.mxu0 0.0
    %2479 = vmatpush1.msra.mxu0 %v2441
    %2480 = vmatprep.subr.mxu0 0.0
    %2481 = vmatpush2.msra.mxu0 0.0
    %2482 = vmatprep.subr.mxu0 0.0
    %2483 = vmatpush2.msra.mxu0 0.0
    %2484 = vmatprep.subr.mxu0 0.0
    %2485 = vmatpush2.msra.mxu0 0.0
    %2486 = vmatprep.subr.mxu0 0.0
    %2487 = vmatpush2.msra.mxu0 0.0
    %2488 = vmatprep.subr.mxu0 0.0
    %2489 = vmatpush2.msra.mxu0 0.0
    %2490 = vmatprep.subr.mxu0 0.0
    %2491 = vmatpush2.msra.mxu0 0.0
    %2492 = vmatprep.subr.mxu0 0.0
    %2493 = vmatpush2.msra.mxu0 0.0
    %2494 = vmatprep.subr.mxu0 0.0
    %2495 = vmatpush2.msra.mxu0 0.0
    %2496 = vmatprep.subr.mxu0 0.0
    %2497 = vmatpush2.msra.mxu0 0.0
    %2498 = vmatprep.subr.mxu0 0.0
    %2499 = vmatpush2.msra.mxu0 0.0
    %2500 = vmatprep.subr.mxu0 0.0
    %2501 = vmatpush2.msra.mxu0 0.0
    %2502 = vmatprep.subr.mxu0 0.0
    %2503 = vmatpush2.msra.mxu0 0.0
    %2504 = vmatprep.subr.mxu0 0.0
    %2505 = vmatpush2.msra.mxu0 0.0
    %2506 = vmatprep.subr.mxu0 0.0
    %2507 = vmatpush2.msra.mxu0 0.0
    %2508 = vmatprep.subr.mxu0 0.0
    %2509 = vmatpush2.msra.mxu0 0.0
    %2510 = vmatprep.subr.mxu0 0.0
    %2511 = vmatpush2.msra.mxu0 0.0
    %2512 = vmatprep.mubr.f32.mxu0 0.0
    %2513 = vmatmul.mubr.f32.gmra.mxu0 %v2446
    %v2514 = vpop.f32.mrf.mxu0
    %v2515 = vadd.f32 0.0, %v2514
    %v2516 = vpop.f32.mrf.mxu0
    %2517 = vdwg.mxu0
    %v2518 = vld [vmem:[#allocation6] sm:$0x3]
    %v2519 = vadd.f32 %v2518, %v2515
    %v2520 = vld [vmem:[#allocation5] sm:$0x3]
    %v2521 = vsub.f32 0.0, %v2520
    %v2522 = vadd.f32 %v2521, %v2519
    %v2523 = vmul.f32 %v2522, 0.1
    %v2524 = vadd.f32 %v2520, %v2523
    %v2525 = vmul.f32 %v2519, -0.2
    %v2526 = vadd.f32 %v2519, %v2525
    %2527 = vst.msk [vmem:[#allocation5] sm:$0x3] %vm336, %v2524
    %2528 = vst.msk [vmem:[#allocation6] sm:$0x3] %vm336, %v2526
    %s2529 = scalar_lea.vmem [#allocation8], 14
    %2530 = vst.msk [vmem:[%s2529] sm:$0x3] %vm336, %v2524
    // Predicated region
    $region18: #{tpu_custom_call.1} parent=1 // pred_check
      _
    $region19: #{tpu_custom_call.1} parent=1 // pred_check_branch
      %2532 = sbr.rel (0) target = $region21
    $region20: #{tpu_custom_call.1} parent=1 // pred_region
      %s2534 = ssub.s32 256, 256
      %2535 = vsyncadd [#allocation9], %s2534
      %s2536 = sshll.u32 [#allocation8], 4
      %s2537 = int_to_ptr.vmem [resolvable:$true] %s2536
      %2542 = dma.vmem_to_hbm [thread:$0]  %s2537, 256, %s3, [#allocation9], 32, 32, 2
    $region21: #{tpu_custom_call.1} parent=1 // pred_fallthru
      _
    // Predicated region
    $region22: #{tpu_custom_call.1} parent=1 // pred_check
      _
    $region23: #{tpu_custom_call.1} parent=1 // pred_check_branch
      %2544 = sbr.rel (0) target = $region25
    $region24: #{tpu_custom_call.1} parent=1 // pred_region
      %2545 = dma.done [#allocation9], 256
    $region25: #{tpu_custom_call.1} parent=1 // pred_fallthru
      _
    %2546 = vsyncpa [#allocation9], 1

</llo_original>
